<compile_context>
chip_gen: v7x
topology: tpu7x:2x2x1
jax: 0.10.0
libtpu: 0.0.40
codegen_flags: <defaults>
</compile_context>

<pallas_src>
import jax
import jax.numpy as jnp
from jax.experimental import pallas as pl
from jax.experimental.pallas import tpu as pltpu


def _round_up(x: int, m: int) -> int:
    return ((x + m - 1) // m) * m


def _pad_to(arr, shape):
    pads = [(0, t - s) for s, t in zip(arr.shape, shape)]
    if all(p == (0, 0) for p in pads):
        return arr
    return jnp.pad(arr, pads)


def _fused_mlp_kernel(x_ref, w1_ref, w2_ref, w3_ref, w4_ref,
                      b1_ref, b2_ref, b3_ref, b4_ref, o_ref):
    # x_ref: (tm, Kp) bf16; w*: bf16 full blocks (VMEM-resident);
    # b*: (1, Hp/Np) f32; o_ref: (tm, Np) f32.
    h = jnp.dot(x_ref[...], w1_ref[...], preferred_element_type=jnp.float32)
    h = jnp.maximum(h + b1_ref[...], 0.0).astype(jnp.bfloat16)

    h = jnp.dot(h, w2_ref[...], preferred_element_type=jnp.float32)
    h = jnp.maximum(h + b2_ref[...], 0.0).astype(jnp.bfloat16)

    h = jnp.dot(h, w3_ref[...], preferred_element_type=jnp.float32)
    h = jnp.maximum(h + b3_ref[...], 0.0).astype(jnp.bfloat16)

    out = jnp.dot(h, w4_ref[...], preferred_element_type=jnp.float32)
    out = out + b4_ref[...]
    o_ref[...] = out.astype(o_ref.dtype)


def prepare_params(params):
    """Pad feature dims to lane width (128) and cast to bf16 ONCE, outside jit."""
    (w1, b1), (w2, b2), (w3, b3), (w4, b4) = params
    K, H = w1.shape
    N = w4.shape[1]
    Kp, Hp, Np = _round_up(K, 128), _round_up(H, 128), _round_up(N, 128)
    prepared = {
        "w1": _pad_to(w1, (Kp, Hp)).astype(jnp.bfloat16),
        "w2": _pad_to(w2, (Hp, Hp)).astype(jnp.bfloat16),
        "w3": _pad_to(w3, (Hp, Hp)).astype(jnp.bfloat16),
        "w4": _pad_to(w4, (Hp, Np)).astype(jnp.bfloat16),
        "b1": _pad_to(b1.reshape(1, -1), (1, Hp)).astype(jnp.float32),
        "b2": _pad_to(b2.reshape(1, -1), (1, Hp)).astype(jnp.float32),
        "b3": _pad_to(b3.reshape(1, -1), (1, Hp)).astype(jnp.float32),
        "b4": _pad_to(b4.reshape(1, -1), (1, Np)).astype(jnp.float32),
    }
    return jax.device_put(prepared)


def _vmem_capacity_bytes() -> int:
    try:
        cap = getattr(pltpu.get_tpu_info(), "vmem_capacity_bytes", None)
        if cap:
            return int(cap)
    except Exception:
        pass
    return 64 << 20  # conservative default (v7x per-TensorCore size)


def _pick_tm(M: int) -> int:
    if M <= 128:
        # Small batch: single tile (no forced megacore split in the
        # weight-DMA-bound regime); multiple of 16 keeps bf16 vregs dense.
        return max(16, _round_up(M, 16))
    if M < 512:
        return 128
    return 256  # match 256-wide MXU (v6e/v7x); fewer grid steps on v5e


def adjustable_nn_forward(x, prepared, *, out_dim, single_buffer_weights=True):
    """Forward pass of AdjustableNN: 3x (Linear + ReLU), then Linear."""
    w1p, w2p, w3p, w4p = prepared["w1"], prepared["w2"], prepared["w3"], prepared["w4"]
    b1p, b2p, b3p, b4p = prepared["b1"], prepared["b2"], prepared["b3"], prepared["b4"]

    M, K = x.shape
    Kp, Hp = w1p.shape
    Np = w4p.shape[1]
    N = out_dim

    tm = _pick_tm(M)
    Mp = _round_up(M, tm)
    xp = _pad_to(x, (Mp, Kp)).astype(jnp.bfloat16)

    # VMEM budget (generation-aware, with Buffered(1) removing the 2x on weights).
    n_wbuf = 1 if single_buffer_weights else 2
    weight_bytes = n_wbuf * 2 * (Kp * Hp + 2 * Hp * Hp + Hp * Np)
    bias_bytes = n_wbuf * 4 * (3 * Hp + Np)
    act_bytes = 4 * tm * max(Kp, Hp) * 4                 # f32 temporaries in the body
    io_bytes = 2 * (tm * Kp * 2) + 2 * (tm * Np * 4)     # double-buffered x / out tiles
    est = weight_bytes + bias_bytes + act_bytes + io_bytes + (4 << 20)
    cap = int(0.85 * _vmem_capacity_bytes())             # ~15% compiler-scratch headroom
    vmem_limit = int(min(max(int(1.5 * est), 32 << 20), cap))

    flops = 2 * Mp * (Kp * Hp + 2 * Hp * Hp + Hp * Np)
    bytes_accessed = (Mp * Kp * 2
                      + 2 * (Kp * Hp + 2 * Hp * Hp + Hp * Np)
                      + 4 * (3 * Hp + Np)
                      + Mp * Np * 4)
    cost = pl.CostEstimate(flops=int(flops), transcendentals=0,
                           bytes_accessed=int(bytes_accessed))

    res_kwargs = {}
    if single_buffer_weights:
        # Constant block index -> no need to double-buffer; halves resident VMEM.
        res_kwargs = dict(pipeline_mode=pl.Buffered(1))

    def resident(shape):
        return pl.BlockSpec(shape, lambda i: (0, 0), **res_kwargs)

    out = pl.pallas_call(
        _fused_mlp_kernel,
        out_shape=jax.ShapeDtypeStruct((Mp, Np), jnp.float32),
        grid_spec=pltpu.PrefetchScalarGridSpec(
            num_scalar_prefetch=0,
            grid=(Mp // tm,),
            in_specs=[
                pl.BlockSpec((tm, Kp), lambda i: (i, 0)),  # x batch tile
                resident((Kp, Hp)),                        # w1 (VMEM-resident)
                resident((Hp, Hp)),                        # w2
                resident((Hp, Hp)),                        # w3
                resident((Hp, Np)),                        # w4
                resident((1, Hp)),                         # b1
                resident((1, Hp)),                         # b2
                resident((1, Hp)),                         # b3
                resident((1, Np)),                         # b4
            ],
            out_specs=pl.BlockSpec((tm, Np), lambda i: (i, 0)),
        ),
        compiler_params=pltpu.CompilerParams(
            dimension_semantics=("parallel",),
            vmem_limit_bytes=vmem_limit,
        ),
        cost_estimate=cost,
    )(xp, w1p, w2p, w3p, w4p, b1p, b2p, b3p, b4p)

    return out[:M, :N]


def init_params(key, in_dim, hidden, out_dim, dtype=jnp.float32):
    """Deterministic PyTorch-Linear-style init: U(-1/sqrt(fan_in), 1/sqrt(fan_in))."""
    dims = [(in_dim, hidden), (hidden, hidden), (hidden, hidden), (hidden, out_dim)]
    params = []
    for (fan_in, fan_out) in dims:
        key, kw, kb = jax.random.split(key, 3)
        bound = 1.0 / (fan_in ** 0.5)
        w = jax.random.uniform(kw, (fan_in, fan_out), dtype, -bound, bound)
        b = jax.random.uniform(kb, (fan_out,), dtype, -bound, bound)
        params.append((w, b))
    return params


if __name__ == "__main__":
    # Small, kernel-friendly shapes consistent with the module:
    # batch=64, input=784 (MNIST-flat), hidden scaled down to 256, output=10.
    batch, in_dim, hidden, out_dim = 64, 784, 256, 10

    key = jax.random.PRNGKey(0)
    key, kx = jax.random.split(key)
    x = jax.random.normal(kx, (batch, in_dim), dtype=jnp.float32)
    params = init_params(key, in_dim, hidden, out_dim)

    # Pad + bf16-cast the weights exactly once, outside the jitted forward.
    prepared = prepare_params(params)

    fwd = jax.jit(adjustable_nn_forward,
                  static_argnames=("out_dim", "single_buffer_weights"))

    try:
        out = jax.block_until_ready(
            fwd(x, prepared, out_dim=out_dim, single_buffer_weights=True))
    except Exception:
        # Fallback if this jax build rejects single-buffered (Buffered(1))
        # constant-index blocks in the top-level pallas_call pipeline.
        out = jax.block_until_ready(
            fwd(x, prepared, out_dim=out_dim, single_buffer_weights=False))

    # Plain-JAX reference with identical bf16-operand / f32-accumulate numerics.
    ref = x.astype(jnp.bfloat16)
    for i, (w, b) in enumerate(params):
        ref = jnp.dot(ref, w.astype(jnp.bfloat16),
                      preferred_element_type=jnp.float32) + b
        if i < 3:
            ref = jnp.maximum(ref, 0.0).astype(jnp.bfloat16)
    ref = ref.astype(jnp.float32)

    assert out.shape == (batch, out_dim)
    max_err = float(jnp.max(jnp.abs(out - ref)))
    assert jnp.allclose(out, ref, atol=5e-2, rtol=5e-2), max_err

    print("KERNEL_OK")
</pallas_src>

<mosaic_0001>
module attributes {stable_mosaic.version = 11 : i64} {
  func.func @_fused_mlp_kernel(%arg0: i32, %arg1: memref<64x896xbf16, #tpu.memory_space<vmem>>, %arg2: memref<896x256xbf16, #tpu.memory_space<vmem>>, %arg3: memref<256x256xbf16, #tpu.memory_space<vmem>>, %arg4: memref<256x256xbf16, #tpu.memory_space<vmem>>, %arg5: memref<256x128xbf16, #tpu.memory_space<vmem>>, %arg6: memref<1x256xf32, #tpu.memory_space<vmem>>, %arg7: memref<1x256xf32, #tpu.memory_space<vmem>>, %arg8: memref<1x256xf32, #tpu.memory_space<vmem>>, %arg9: memref<1x128xf32, #tpu.memory_space<vmem>>, %arg10: memref<64x128xf32, #tpu.memory_space<vmem>>) attributes {dimension_semantics = [#tpu.dimension_semantics<parallel>], iteration_bounds = array<i64: 1>, scalar_prefetch = 0 : i64, scratch_operands = 0 : i64, tpu.core_type = #tpu.core_type<tc>, window_params = [{transform_indices = @transform_0, window_bounds = array<i64: 64, 896>}, {pipeline_mode = #tpu.pipeline_mode<synchronous>, transform_indices = @transform_1, window_bounds = array<i64: 896, 256>}, {pipeline_mode = #tpu.pipeline_mode<synchronous>, transform_indices = @transform_2, window_bounds = array<i64: 256, 256>}, {pipeline_mode = #tpu.pipeline_mode<synchronous>, transform_indices = @transform_3, window_bounds = array<i64: 256, 256>}, {pipeline_mode = #tpu.pipeline_mode<synchronous>, transform_indices = @transform_4, window_bounds = array<i64: 256, 128>}, {pipeline_mode = #tpu.pipeline_mode<synchronous>, transform_indices = @transform_5, window_bounds = array<i64: 1, 256>}, {pipeline_mode = #tpu.pipeline_mode<synchronous>, transform_indices = @transform_6, window_bounds = array<i64: 1, 256>}, {pipeline_mode = #tpu.pipeline_mode<synchronous>, transform_indices = @transform_7, window_bounds = array<i64: 1, 256>}, {pipeline_mode = #tpu.pipeline_mode<synchronous>, transform_indices = @transform_8, window_bounds = array<i64: 1, 128>}, {transform_indices = @transform_9, window_bounds = array<i64: 64, 128>}]} {
    %c0 = arith.constant 0 : index
    %c0_0 = arith.constant 0 : index
    %0 = vector.load %arg1[%c0, %c0_0] : memref<64x896xbf16, #tpu.memory_space<vmem>>, vector<64x896xbf16>
    %c0_1 = arith.constant 0 : index
    %c0_2 = arith.constant 0 : index
    %1 = vector.load %arg2[%c0_1, %c0_2] : memref<896x256xbf16, #tpu.memory_space<vmem>>, vector<896x256xbf16>
    %cst = arith.constant dense<0.000000e+00> : vector<64x256xf32>
    %2 = tpu.matmul %0, %1, %cst {dimension_numbers = #tpu.dot_dimension_numbers<[1], [0], [0], [1], [0, 0, 1, 1], [], []>} : vector<64x896xbf16>, vector<896x256xbf16>, vector<64x256xf32> -> vector<64x256xf32>
    %c0_3 = arith.constant 0 : index
    %c0_4 = arith.constant 0 : index
    %3 = vector.load %arg6[%c0_3, %c0_4] : memref<1x256xf32, #tpu.memory_space<vmem>>, vector<1x256xf32>
    %4 = vector.broadcast %3 : vector<1x256xf32> to vector<64x256xf32>
    %5 = arith.addf %2, %4 : vector<64x256xf32>
    %cst_5 = arith.constant 0.000000e+00 : f32
    %6 = vector.broadcast %cst_5 : f32 to vector<64x256xf32>
    %7 = arith.maximumf %5, %6 : vector<64x256xf32>
    %8 = arith.truncf %7 : vector<64x256xf32> to vector<64x256xbf16>
    %c0_6 = arith.constant 0 : index
    %c0_7 = arith.constant 0 : index
    %9 = vector.load %arg3[%c0_6, %c0_7] : memref<256x256xbf16, #tpu.memory_space<vmem>>, vector<256x256xbf16>
    %cst_8 = arith.constant dense<0.000000e+00> : vector<64x256xf32>
    %10 = tpu.matmul %8, %9, %cst_8 {dimension_numbers = #tpu.dot_dimension_numbers<[1], [0], [0], [1], [0, 0, 1, 1], [], []>} : vector<64x256xbf16>, vector<256x256xbf16>, vector<64x256xf32> -> vector<64x256xf32>
    %c0_9 = arith.constant 0 : index
    %c0_10 = arith.constant 0 : index
    %11 = vector.load %arg7[%c0_9, %c0_10] : memref<1x256xf32, #tpu.memory_space<vmem>>, vector<1x256xf32>
    %12 = vector.broadcast %11 : vector<1x256xf32> to vector<64x256xf32>
    %13 = arith.addf %10, %12 : vector<64x256xf32>
    %cst_11 = arith.constant 0.000000e+00 : f32
    %14 = vector.broadcast %cst_11 : f32 to vector<64x256xf32>
    %15 = arith.maximumf %13, %14 : vector<64x256xf32>
    %16 = arith.truncf %15 : vector<64x256xf32> to vector<64x256xbf16>
    %c0_12 = arith.constant 0 : index
    %c0_13 = arith.constant 0 : index
    %17 = vector.load %arg4[%c0_12, %c0_13] : memref<256x256xbf16, #tpu.memory_space<vmem>>, vector<256x256xbf16>
    %cst_14 = arith.constant dense<0.000000e+00> : vector<64x256xf32>
    %18 = tpu.matmul %16, %17, %cst_14 {dimension_numbers = #tpu.dot_dimension_numbers<[1], [0], [0], [1], [0, 0, 1, 1], [], []>} : vector<64x256xbf16>, vector<256x256xbf16>, vector<64x256xf32> -> vector<64x256xf32>
    %c0_15 = arith.constant 0 : index
    %c0_16 = arith.constant 0 : index
    %19 = vector.load %arg8[%c0_15, %c0_16] : memref<1x256xf32, #tpu.memory_space<vmem>>, vector<1x256xf32>
    %20 = vector.broadcast %19 : vector<1x256xf32> to vector<64x256xf32>
    %21 = arith.addf %18, %20 : vector<64x256xf32>
    %cst_17 = arith.constant 0.000000e+00 : f32
    %22 = vector.broadcast %cst_17 : f32 to vector<64x256xf32>
    %23 = arith.maximumf %21, %22 : vector<64x256xf32>
    %24 = arith.truncf %23 : vector<64x256xf32> to vector<64x256xbf16>
    %c0_18 = arith.constant 0 : index
    %c0_19 = arith.constant 0 : index
    %25 = vector.load %arg5[%c0_18, %c0_19] : memref<256x128xbf16, #tpu.memory_space<vmem>>, vector<256x128xbf16>
    %cst_20 = arith.constant dense<0.000000e+00> : vector<64x128xf32>
    %26 = tpu.matmul %24, %25, %cst_20 {dimension_numbers = #tpu.dot_dimension_numbers<[1], [0], [0], [1], [0, 0, 1, 1], [], []>} : vector<64x256xbf16>, vector<256x128xbf16>, vector<64x128xf32> -> vector<64x128xf32>
    %c0_21 = arith.constant 0 : index
    %c0_22 = arith.constant 0 : index
    %27 = vector.load %arg9[%c0_21, %c0_22] : memref<1x128xf32, #tpu.memory_space<vmem>>, vector<1x128xf32>
    %28 = vector.broadcast %27 : vector<1x128xf32> to vector<64x128xf32>
    %29 = arith.addf %26, %28 : vector<64x128xf32>
    %c0_23 = arith.constant 0 : index
    %c0_24 = arith.constant 0 : index
    %30 = vector.load %arg10[%c0_23, %c0_24] : memref<64x128xf32, #tpu.memory_space<vmem>>, vector<64x128xf32>
    tpu.vector_store %arg10[%c0_23, %c0_24], %29 {strides = array<i32>} : memref<64x128xf32, #tpu.memory_space<vmem>>, vector<64x128xf32>,
    return
  }
  func.func @transform_0(%arg0: i32) -> (i32, i32) {
    %c0_i32 = arith.constant 0 : i32
    %c0_i32_0 = arith.constant 0 : i32
    return %arg0, %c0_i32 : i32, i32
  }
  func.func @transform_1(%arg0: i32) -> (i32, i32) {
    %c0_i32 = arith.constant 0 : i32
    %c0_i32_0 = arith.constant 0 : i32
    %c0_i32_1 = arith.constant 0 : i32
    return %c0_i32, %c0_i32_0 : i32, i32
  }
  func.func @transform_2(%arg0: i32) -> (i32, i32) {
    %c0_i32 = arith.constant 0 : i32
    %c0_i32_0 = arith.constant 0 : i32
    %c0_i32_1 = arith.constant 0 : i32
    return %c0_i32, %c0_i32_0 : i32, i32
  }
  func.func @transform_3(%arg0: i32) -> (i32, i32) {
    %c0_i32 = arith.constant 0 : i32
    %c0_i32_0 = arith.constant 0 : i32
    %c0_i32_1 = arith.constant 0 : i32
    return %c0_i32, %c0_i32_0 : i32, i32
  }
  func.func @transform_4(%arg0: i32) -> (i32, i32) {
    %c0_i32 = arith.constant 0 : i32
    %c0_i32_0 = arith.constant 0 : i32
    %c0_i32_1 = arith.constant 0 : i32
    return %c0_i32, %c0_i32_0 : i32, i32
  }
  func.func @transform_5(%arg0: i32) -> (i32, i32) {
    %c0_i32 = arith.constant 0 : i32
    %c0_i32_0 = arith.constant 0 : i32
    %c0_i32_1 = arith.constant 0 : i32
    return %c0_i32, %c0_i32_0 : i32, i32
  }
  func.func @transform_6(%arg0: i32) -> (i32, i32) {
    %c0_i32 = arith.constant 0 : i32
    %c0_i32_0 = arith.constant 0 : i32
    %c0_i32_1 = arith.constant 0 : i32
    return %c0_i32, %c0_i32_0 : i32, i32
  }
  func.func @transform_7(%arg0: i32) -> (i32, i32) {
    %c0_i32 = arith.constant 0 : i32
    %c0_i32_0 = arith.constant 0 : i32
    %c0_i32_1 = arith.constant 0 : i32
    return %c0_i32, %c0_i32_0 : i32, i32
  }
  func.func @transform_8(%arg0: i32) -> (i32, i32) {
    %c0_i32 = arith.constant 0 : i32
    %c0_i32_0 = arith.constant 0 : i32
    %c0_i32_1 = arith.constant 0 : i32
    return %c0_i32, %c0_i32_0 : i32, i32
  }
  func.func @transform_9(%arg0: i32) -> (i32, i32) {
    %c0_i32 = arith.constant 0 : i32
    %c0_i32_0 = arith.constant 0 : i32
    return %arg0, %c0_i32 : i32, i32
  }
}

module attributes {stable_mosaic.version = 11 : i64} {
  func.func @_fused_mlp_kernel(%arg0: i32, %arg1: memref<64x896xbf16, #tpu.memory_space<vmem>>, %arg2: memref<896x256xbf16, #tpu.memory_space<vmem>>, %arg3: memref<256x256xbf16, #tpu.memory_space<vmem>>, %arg4: memref<256x256xbf16, #tpu.memory_space<vmem>>, %arg5: memref<256x128xbf16, #tpu.memory_space<vmem>>, %arg6: memref<1x256xf32, #tpu.memory_space<vmem>>, %arg7: memref<1x256xf32, #tpu.memory_space<vmem>>, %arg8: memref<1x256xf32, #tpu.memory_space<vmem>>, %arg9: memref<1x128xf32, #tpu.memory_space<vmem>>, %arg10: memref<64x128xf32, #tpu.memory_space<vmem>>) attributes {dimension_semantics = [#tpu.dimension_semantics<parallel>], iteration_bounds = array<i64: 1>, scalar_prefetch = 0 : i64, scratch_operands = 0 : i64, tpu.core_type = #tpu.core_type<tc>, window_params = [{transform_indices = @transform_0, window_bounds = array<i64: 64, 896>}, {pipeline_mode = #tpu.pipeline_mode<synchronous>, transform_indices = @transform_1, window_bounds = array<i64: 896, 256>}, {pipeline_mode = #tpu.pipeline_mode<synchronous>, transform_indices = @transform_2, window_bounds = array<i64: 256, 256>}, {pipeline_mode = #tpu.pipeline_mode<synchronous>, transform_indices = @transform_3, window_bounds = array<i64: 256, 256>}, {pipeline_mode = #tpu.pipeline_mode<synchronous>, transform_indices = @transform_4, window_bounds = array<i64: 256, 128>}, {pipeline_mode = #tpu.pipeline_mode<synchronous>, transform_indices = @transform_5, window_bounds = array<i64: 1, 256>}, {pipeline_mode = #tpu.pipeline_mode<synchronous>, transform_indices = @transform_6, window_bounds = array<i64: 1, 256>}, {pipeline_mode = #tpu.pipeline_mode<synchronous>, transform_indices = @transform_7, window_bounds = array<i64: 1, 256>}, {pipeline_mode = #tpu.pipeline_mode<synchronous>, transform_indices = @transform_8, window_bounds = array<i64: 1, 128>}, {transform_indices = @transform_9, window_bounds = array<i64: 64, 128>}]} {
    %c0 = arith.constant 0 : index
    %c0_0 = arith.constant 0 : index
    %0 = vector.load %arg1[%c0, %c0_0] : memref<64x896xbf16, #tpu.memory_space<vmem>>, vector<64x896xbf16>
    %c0_1 = arith.constant 0 : index
    %c0_2 = arith.constant 0 : index
    %1 = vector.load %arg2[%c0_1, %c0_2] : memref<896x256xbf16, #tpu.memory_space<vmem>>, vector<896x256xbf16>
    %cst = arith.constant dense<0.000000e+00> : vector<64x256xf32>
    %2 = tpu.matmul %0, %1, %cst {dimension_numbers = #tpu.dot_dimension_numbers<[1], [0], [0], [1], [0, 0, 1, 1], [], []>} : vector<64x896xbf16>, vector<896x256xbf16>, vector<64x256xf32> -> vector<64x256xf32>
    %c0_3 = arith.constant 0 : index
    %c0_4 = arith.constant 0 : index
    %3 = vector.load %arg6[%c0_3, %c0_4] : memref<1x256xf32, #tpu.memory_space<vmem>>, vector<1x256xf32>
    %4 = vector.broadcast %3 : vector<1x256xf32> to vector<64x256xf32>
    %5 = arith.addf %2, %4 : vector<64x256xf32>
    %cst_5 = arith.constant 0.000000e+00 : f32
    %6 = vector.broadcast %cst_5 : f32 to vector<64x256xf32>
    %7 = arith.maximumf %5, %6 : vector<64x256xf32>
    %8 = arith.truncf %7 : vector<64x256xf32> to vector<64x256xbf16>
    %c0_6 = arith.constant 0 : index
    %c0_7 = arith.constant 0 : index
    %9 = vector.load %arg3[%c0_6, %c0_7] : memref<256x256xbf16, #tpu.memory_space<vmem>>, vector<256x256xbf16>
    %cst_8 = arith.constant dense<0.000000e+00> : vector<64x256xf32>
    %10 = tpu.matmul %8, %9, %cst_8 {dimension_numbers = #tpu.dot_dimension_numbers<[1], [0], [0], [1], [0, 0, 1, 1], [], []>} : vector<64x256xbf16>, vector<256x256xbf16>, vector<64x256xf32> -> vector<64x256xf32>
    %c0_9 = arith.constant 0 : index
    %c0_10 = arith.constant 0 : index
    %11 = vector.load %arg7[%c0_9, %c0_10] : memref<1x256xf32, #tpu.memory_space<vmem>>, vector<1x256xf32>
    %12 = vector.broadcast %11 : vector<1x256xf32> to vector<64x256xf32>
    %13 = arith.addf %10, %12 : vector<64x256xf32>
    %cst_11 = arith.constant 0.000000e+00 : f32
    %14 = vector.broadcast %cst_11 : f32 to vector<64x256xf32>
    %15 = arith.maximumf %13, %14 : vector<64x256xf32>
    %16 = arith.truncf %15 : vector<64x256xf32> to vector<64x256xbf16>
    %c0_12 = arith.constant 0 : index
    %c0_13 = arith.constant 0 : index
    %17 = vector.load %arg4[%c0_12, %c0_13] : memref<256x256xbf16, #tpu.memory_space<vmem>>, vector<256x256xbf16>
    %cst_14 = arith.constant dense<0.000000e+00> : vector<64x256xf32>
    %18 = tpu.matmul %16, %17, %cst_14 {dimension_numbers = #tpu.dot_dimension_numbers<[1], [0], [0], [1], [0, 0, 1, 1], [], []>} : vector<64x256xbf16>, vector<256x256xbf16>, vector<64x256xf32> -> vector<64x256xf32>
    %c0_15 = arith.constant 0 : index
    %c0_16 = arith.constant 0 : index
    %19 = vector.load %arg8[%c0_15, %c0_16] : memref<1x256xf32, #tpu.memory_space<vmem>>, vector<1x256xf32>
    %20 = vector.broadcast %19 : vector<1x256xf32> to vector<64x256xf32>
    %21 = arith.addf %18, %20 : vector<64x256xf32>
    %cst_17 = arith.constant 0.000000e+00 : f32
    %22 = vector.broadcast %cst_17 : f32 to vector<64x256xf32>
    %23 = arith.maximumf %21, %22 : vector<64x256xf32>
    %24 = arith.truncf %23 : vector<64x256xf32> to vector<64x256xbf16>
    %c0_18 = arith.constant 0 : index
    %c0_19 = arith.constant 0 : index
    %25 = vector.load %arg5[%c0_18, %c0_19] : memref<256x128xbf16, #tpu.memory_space<vmem>>, vector<256x128xbf16>
    %cst_20 = arith.constant dense<0.000000e+00> : vector<64x128xf32>
    %26 = tpu.matmul %24, %25, %cst_20 {dimension_numbers = #tpu.dot_dimension_numbers<[1], [0], [0], [1], [0, 0, 1, 1], [], []>} : vector<64x256xbf16>, vector<256x128xbf16>, vector<64x128xf32> -> vector<64x128xf32>
    %c0_21 = arith.constant 0 : index
    %c0_22 = arith.constant 0 : index
    %27 = vector.load %arg9[%c0_21, %c0_22] : memref<1x128xf32, #tpu.memory_space<vmem>>, vector<1x128xf32>
    %28 = vector.broadcast %27 : vector<1x128xf32> to vector<64x128xf32>
    %29 = arith.addf %26, %28 : vector<64x128xf32>
    %c0_23 = arith.constant 0 : index
    %c0_24 = arith.constant 0 : index
    %30 = vector.load %arg10[%c0_23, %c0_24] : memref<64x128xf32, #tpu.memory_space<vmem>>, vector<64x128xf32>
    tpu.vector_store %arg10[%c0_23, %c0_24], %29 {strides = array<i32>} : memref<64x128xf32, #tpu.memory_space<vmem>>, vector<64x128xf32>,
    return
  }
  func.func @transform_0(%arg0: i32) -> (i32, i32) {
    %c0_i32 = arith.constant 0 : i32
    %c0_i32_0 = arith.constant 0 : i32
    return %arg0, %c0_i32 : i32, i32
  }
  func.func @transform_1(%arg0: i32) -> (i32, i32) {
    %c0_i32 = arith.constant 0 : i32
    %c0_i32_0 = arith.constant 0 : i32
    %c0_i32_1 = arith.constant 0 : i32
    return %c0_i32, %c0_i32_0 : i32, i32
  }
  func.func @transform_2(%arg0: i32) -> (i32, i32) {
    %c0_i32 = arith.constant 0 : i32
    %c0_i32_0 = arith.constant 0 : i32
    %c0_i32_1 = arith.constant 0 : i32
    return %c0_i32, %c0_i32_0 : i32, i32
  }
  func.func @transform_3(%arg0: i32) -> (i32, i32) {
    %c0_i32 = arith.constant 0 : i32
    %c0_i32_0 = arith.constant 0 : i32
    %c0_i32_1 = arith.constant 0 : i32
    return %c0_i32, %c0_i32_0 : i32, i32
  }
  func.func @transform_4(%arg0: i32) -> (i32, i32) {
    %c0_i32 = arith.constant 0 : i32
    %c0_i32_0 = arith.constant 0 : i32
    %c0_i32_1 = arith.constant 0 : i32
    return %c0_i32, %c0_i32_0 : i32, i32
  }
  func.func @transform_5(%arg0: i32) -> (i32, i32) {
    %c0_i32 = arith.constant 0 : i32
    %c0_i32_0 = arith.constant 0 : i32
    %c0_i32_1 = arith.constant 0 : i32
    return %c0_i32, %c0_i32_0 : i32, i32
  }
  func.func @transform_6(%arg0: i32) -> (i32, i32) {
    %c0_i32 = arith.constant 0 : i32
    %c0_i32_0 = arith.constant 0 : i32
    %c0_i32_1 = arith.constant 0 : i32
    return %c0_i32, %c0_i32_0 : i32, i32
  }
  func.func @transform_7(%arg0: i32) -> (i32, i32) {
    %c0_i32 = arith.constant 0 : i32
    %c0_i32_0 = arith.constant 0 : i32
    %c0_i32_1 = arith.constant 0 : i32
    return %c0_i32, %c0_i32_0 : i32, i32
  }
  func.func @transform_8(%arg0: i32) -> (i32, i32) {
    %c0_i32 = arith.constant 0 : i32
    %c0_i32_0 = arith.constant 0 : i32
    %c0_i32_1 = arith.constant 0 : i32
    return %c0_i32, %c0_i32_0 : i32, i32
  }
  func.func @transform_9(%arg0: i32) -> (i32, i32) {
    %c0_i32 = arith.constant 0 : i32
    %c0_i32_0 = arith.constant 0 : i32
    return %arg0, %c0_i32 : i32, i32
  }
}

</mosaic_0001>

<llo_original>
// kernel: adjustable_nn_forward.1
$region0: #{adjustable_nn_forward.1}
  #allocation0 [shape = 'u32[]', space=smem, size = 0x4, offset = 0x4, fixed_abs, tag = 'smem constant byte address 0x4 - core index']
  #allocation1 [shape = 'u32[144,128]{1,0:T(1,128)}', space=vmem, size = 0x12000, scoped, tag = 'internal scratch']
  %s0 = inlined_call_operand.vmem [shape: bf16[64,896], index: 0, kind: input, shape index: {}]
  %s1 = inlined_call_operand.vmem [shape: bf16[896,256], index: 1, kind: input, shape index: {}]
  %s2 = inlined_call_operand.hbm [shape: bf16[256,256], index: 2, kind: input, shape index: {}]
  %s3 = inlined_call_operand.hbm [shape: bf16[256,256], index: 3, kind: input, shape index: {}]
  %s4 = inlined_call_operand.vmem [shape: bf16[256,128], index: 4, kind: input, shape index: {}]
  %s5 = inlined_call_operand.vmem [shape: f32[1,256], index: 5, kind: input, shape index: {}]
  %s6 = inlined_call_operand.vmem [shape: f32[1,256], index: 6, kind: input, shape index: {}]
  %s7 = inlined_call_operand.vmem [shape: f32[1,256], index: 7, kind: input, shape index: {}]
  %s8 = inlined_call_operand.vmem [shape: f32[1,128], index: 8, kind: input, shape index: {}]
  %s9 = inlined_call_operand.vmem [shape: f32[64,128], index: 9, kind: output, shape index: {}]
  %s10 = sld [smem:[#allocation0]]
  $region54: #{adjustable_nn_forward.1} parent=0
    _
  %s12 = ssub.s32 1, %s10
  %s13 = scalar_select 0, %s12, %s10
  $region1: #{adjustable_nn_forward.1} parent=0
    #allocation2 [shape = 'u8[131072]{0}', space=vmem, size = 0x20000, scoped, tag = 'input window, operand 2, single buffered']
    #allocation3 [shape = 's32[1]{0}', space=sflag, size = 0x4, scoped, tag = 'scoped memory for adjustable_nn_forward.1']
    #allocation4 [shape = 'u8[131072]{0}', space=vmem, size = 0x20000, scoped, tag = 'input window, operand 3, single buffered']
    #allocation5 [shape = 's32[1]{0}', space=sflag, size = 0x4, scoped, tag = 'scoped memory for adjustable_nn_forward.1']
    %14 = vsyncpa [#allocation3], 0
    %15 = vsyncpa [#allocation5], 0
    // Predicated region
    $region2: #{adjustable_nn_forward.1} parent=1 // pred_check
      _
    $region3: #{adjustable_nn_forward.1} parent=1 // pred_check_branch
      %17 = sbr.rel (0) target = $region5
    $region4: #{adjustable_nn_forward.1} parent=1 // pred_region
      _
    $region5: #{adjustable_nn_forward.1} parent=1 // pred_fallthru
      _
    // Predicated region
    $region6: #{adjustable_nn_forward.1} parent=1 // pred_check
      _
    $region7: #{adjustable_nn_forward.1} parent=1 // pred_check_branch
      %19 = sbr.rel (0) target = $region9
    $region8: #{adjustable_nn_forward.1} parent=1 // pred_region
      _
    $region9: #{adjustable_nn_forward.1} parent=1 // pred_fallthru
      _
    // Predicated region
    $region10: #{adjustable_nn_forward.1} parent=1 // pred_check
      _
    $region11: #{adjustable_nn_forward.1} parent=1 // pred_check_branch
      %21 = sbr.rel (0) target = $region13
    $region12: #{adjustable_nn_forward.1} parent=1 // pred_region
      %s23 = ssub.s32 4096, 4096
      %24 = vsyncadd [#allocation3], %s23
      %s25 = sshll.u32 [#allocation2], 4
      %s26 = int_to_ptr.vmem [resolvable:$true] %s25
      %31 = dma.hbm_to_vmem [thread:$0]  %s2, 4096, %s26, [#allocation3], 128, 128, 8
    $region13: #{adjustable_nn_forward.1} parent=1 // pred_fallthru
      _
    // Predicated region
    $region14: #{adjustable_nn_forward.1} parent=1 // pred_check
      _
    $region15: #{adjustable_nn_forward.1} parent=1 // pred_check_branch
      %33 = sbr.rel (0) target = $region17
    $region16: #{adjustable_nn_forward.1} parent=1 // pred_region
      %s35 = ssub.s32 4096, 4096
      %36 = vsyncadd [#allocation5], %s35
      %s37 = sshll.u32 [#allocation4], 4
      %s38 = int_to_ptr.vmem [resolvable:$true] %s37
      %43 = dma.hbm_to_vmem [thread:$0]  %s3, 4096, %s38, [#allocation5], 128, 128, 8
    $region17: #{adjustable_nn_forward.1} parent=1 // pred_fallthru
      _
    // Predicated region
    $region18: #{adjustable_nn_forward.1} parent=1 // pred_check
      _
    $region19: #{adjustable_nn_forward.1} parent=1 // pred_check_branch
      %45 = sbr.rel (0) target = $region21
    $region20: #{adjustable_nn_forward.1} parent=1 // pred_region
      _
    $region21: #{adjustable_nn_forward.1} parent=1 // pred_fallthru
      _
    // Predicated region
    $region22: #{adjustable_nn_forward.1} parent=1 // pred_check
      _
    $region23: #{adjustable_nn_forward.1} parent=1 // pred_check_branch
      %47 = sbr.rel (0) target = $region25
    $region24: #{adjustable_nn_forward.1} parent=1 // pred_region
      _
    $region25: #{adjustable_nn_forward.1} parent=1 // pred_fallthru
      _
    // Predicated region
    $region26: #{adjustable_nn_forward.1} parent=1 // pred_check
      _
    $region27: #{adjustable_nn_forward.1} parent=1 // pred_check_branch
      %49 = sbr.rel (0) target = $region29
    $region28: #{adjustable_nn_forward.1} parent=1 // pred_region
      _
    $region29: #{adjustable_nn_forward.1} parent=1 // pred_fallthru
      _
    // Predicated region
    $region30: #{adjustable_nn_forward.1} parent=1 // pred_check
      _
    $region31: #{adjustable_nn_forward.1} parent=1 // pred_check_branch
      %51 = sbr.rel (0) target = $region33
    $region32: #{adjustable_nn_forward.1} parent=1 // pred_region
      _
    $region33: #{adjustable_nn_forward.1} parent=1 // pred_fallthru
      _
    // Predicated region
    $region34: #{adjustable_nn_forward.1} parent=1 // pred_check
      _
    $region35: #{adjustable_nn_forward.1} parent=1 // pred_check_branch
      %53 = sbr.rel (0) target = $region37
    $region36: #{adjustable_nn_forward.1} parent=1 // pred_region
      _
    $region37: #{adjustable_nn_forward.1} parent=1 // pred_fallthru
      _
    // Predicated region
    $region38: #{adjustable_nn_forward.1} parent=1 // pred_check
      _
    $region39: #{adjustable_nn_forward.1} parent=1 // pred_check_branch
      %55 = sbr.rel (0) target = $region41
    $region40: #{adjustable_nn_forward.1} parent=1 // pred_region
      %56 = dma.done [#allocation3], 4096
    $region41: #{adjustable_nn_forward.1} parent=1 // pred_fallthru
      _
    // Predicated region
    $region42: #{adjustable_nn_forward.1} parent=1 // pred_check
      _
    $region43: #{adjustable_nn_forward.1} parent=1 // pred_check_branch
      %58 = sbr.rel (0) target = $region45
    $region44: #{adjustable_nn_forward.1} parent=1 // pred_region
      %59 = dma.done [#allocation5], 4096
    $region45: #{adjustable_nn_forward.1} parent=1 // pred_fallthru
      _
    %v61 = vld [vmem:[%s0] sm:$0xff]
    %v62 = vld [vmem:[%s0 + $0x8] sm:$0xff]
    %v63 = vld [vmem:[%s0 + $0x10] sm:$0xff]
    %v64 = vld [vmem:[%s0 + $0x18] sm:$0xf]
    %v65 = vld [vmem:[%s0 + $0x1c] sm:$0xff]
    %v66 = vld [vmem:[%s0 + $0x24] sm:$0xff]
    %v67 = vld [vmem:[%s0 + $0x2c] sm:$0xff]
    %v68 = vld [vmem:[%s0 + $0x34] sm:$0xf]
    %v69 = vld [vmem:[%s0 + $0x38] sm:$0xff]
    %v70 = vld [vmem:[%s0 + $0x40] sm:$0xff]
    %v71 = vld [vmem:[%s0 + $0x48] sm:$0xff]
    %v72 = vld [vmem:[%s0 + $0x50] sm:$0xf]
    %v73 = vld [vmem:[%s0 + $0x54] sm:$0xff]
    %v74 = vld [vmem:[%s0 + $0x5c] sm:$0xff]
    %v75 = vld [vmem:[%s0 + $0x64] sm:$0xff]
    %v76 = vld [vmem:[%s0 + $0x6c] sm:$0xf]
    %v77 = vld [vmem:[%s0 + $0x70] sm:$0xff]
    %v78 = vld [vmem:[%s0 + $0x78] sm:$0xff]
    %v79 = vld [vmem:[%s0 + $0x80] sm:$0xff]
    %v80 = vld [vmem:[%s0 + $0x88] sm:$0xf]
    %v81 = vld [vmem:[%s0 + $0x8c] sm:$0xff]
    %v82 = vld [vmem:[%s0 + $0x94] sm:$0xff]
    %v83 = vld [vmem:[%s0 + $0x9c] sm:$0xff]
    %v84 = vld [vmem:[%s0 + $0xa4] sm:$0xf]
    %v85 = vld [vmem:[%s0 + $0xa8] sm:$0xff]
    %v86 = vld [vmem:[%s0 + $0xb0] sm:$0xff]
    %v87 = vld [vmem:[%s0 + $0xb8] sm:$0xff]
    %v88 = vld [vmem:[%s0 + $0xc0] sm:$0xf]
    %v89 = vld [vmem:[%s0 + $0xc4] sm:$0xff]
    %v90 = vld [vmem:[%s0 + $0xcc] sm:$0xff]
    %v91 = vld [vmem:[%s0 + $0xd4] sm:$0xff]
    %v92 = vld [vmem:[%s0 + $0xdc] sm:$0xf]
    %v93 = vld [vmem:[%s1] sm:$0xff]
    %v94 = vld [vmem:[%s1 + $0x8] sm:$0xff]
    %v95 = vld [vmem:[%s1 + $0x10] sm:$0xff]
    %v96 = vld [vmem:[%s1 + $0x18] sm:$0xff]
    %v97 = vld [vmem:[%s1 + $0x20] sm:$0xff]
    %v98 = vld [vmem:[%s1 + $0x28] sm:$0xff]
    %v99 = vld [vmem:[%s1 + $0x30] sm:$0xff]
    %v100 = vld [vmem:[%s1 + $0x38] sm:$0xff]
    %v101 = vld [vmem:[%s1 + $0x40] sm:$0xff]
    %v102 = vld [vmem:[%s1 + $0x48] sm:$0xff]
    %v103 = vld [vmem:[%s1 + $0x50] sm:$0xff]
    %v104 = vld [vmem:[%s1 + $0x58] sm:$0xff]
    %v105 = vld [vmem:[%s1 + $0x60] sm:$0xff]
    %v106 = vld [vmem:[%s1 + $0x68] sm:$0xff]
    %v107 = vld [vmem:[%s1 + $0x70] sm:$0xff]
    %v108 = vld [vmem:[%s1 + $0x78] sm:$0xff]
    %v109 = vld [vmem:[%s1 + $0x80] sm:$0xff]
    %v110 = vld [vmem:[%s1 + $0x88] sm:$0xff]
    %v111 = vld [vmem:[%s1 + $0x90] sm:$0xff]
    %v112 = vld [vmem:[%s1 + $0x98] sm:$0xff]
    %v113 = vld [vmem:[%s1 + $0xa0] sm:$0xff]
    %v114 = vld [vmem:[%s1 + $0xa8] sm:$0xff]
    %v115 = vld [vmem:[%s1 + $0xb0] sm:$0xff]
    %v116 = vld [vmem:[%s1 + $0xb8] sm:$0xff]
    %v117 = vld [vmem:[%s1 + $0xc0] sm:$0xff]
    %v118 = vld [vmem:[%s1 + $0xc8] sm:$0xff]
    %v119 = vld [vmem:[%s1 + $0xd0] sm:$0xff]
    %v120 = vld [vmem:[%s1 + $0xd8] sm:$0xff]
    %v121 = vld [vmem:[%s1 + $0xe0] sm:$0xff]
    %v122 = vld [vmem:[%s1 + $0xe8] sm:$0xff]
    %v123 = vld [vmem:[%s1 + $0xf0] sm:$0xff]
    %v124 = vld [vmem:[%s1 + $0xf8] sm:$0xff]
    %v125 = vld [vmem:[%s1 + $0x100] sm:$0xff]
    %v126 = vld [vmem:[%s1 + $0x108] sm:$0xff]
    %v127 = vld [vmem:[%s1 + $0x110] sm:$0xff]
    %v128 = vld [vmem:[%s1 + $0x118] sm:$0xff]
    %v129 = vld [vmem:[%s1 + $0x120] sm:$0xff]
    %v130 = vld [vmem:[%s1 + $0x128] sm:$0xff]
    %v131 = vld [vmem:[%s1 + $0x130] sm:$0xff]
    %v132 = vld [vmem:[%s1 + $0x138] sm:$0xff]
    %v133 = vld [vmem:[%s1 + $0x140] sm:$0xff]
    %v134 = vld [vmem:[%s1 + $0x148] sm:$0xff]
    %v135 = vld [vmem:[%s1 + $0x150] sm:$0xff]
    %v136 = vld [vmem:[%s1 + $0x158] sm:$0xff]
    %v137 = vld [vmem:[%s1 + $0x160] sm:$0xff]
    %v138 = vld [vmem:[%s1 + $0x168] sm:$0xff]
    %v139 = vld [vmem:[%s1 + $0x170] sm:$0xff]
    %v140 = vld [vmem:[%s1 + $0x178] sm:$0xff]
    %v141 = vld [vmem:[%s1 + $0x180] sm:$0xff]
    %v142 = vld [vmem:[%s1 + $0x188] sm:$0xff]
    %v143 = vld [vmem:[%s1 + $0x190] sm:$0xff]
    %v144 = vld [vmem:[%s1 + $0x198] sm:$0xff]
    %v145 = vld [vmem:[%s1 + $0x1a0] sm:$0xff]
    %v146 = vld [vmem:[%s1 + $0x1a8] sm:$0xff]
    %v147 = vld [vmem:[%s1 + $0x1b0] sm:$0xff]
    %v148 = vld [vmem:[%s1 + $0x1b8] sm:$0xff]
    %v149 = vld [vmem:[%s1 + $0x1c0] sm:$0xff]
    %v150 = vld [vmem:[%s1 + $0x1c8] sm:$0xff]
    %v151 = vld [vmem:[%s1 + $0x1d0] sm:$0xff]
    %v152 = vld [vmem:[%s1 + $0x1d8] sm:$0xff]
    %v153 = vld [vmem:[%s1 + $0x1e0] sm:$0xff]
    %v154 = vld [vmem:[%s1 + $0x1e8] sm:$0xff]
    %v155 = vld [vmem:[%s1 + $0x1f0] sm:$0xff]
    %v156 = vld [vmem:[%s1 + $0x1f8] sm:$0xff]
    %v157 = vld [vmem:[%s1 + $0x200] sm:$0xff]
    %v158 = vld [vmem:[%s1 + $0x208] sm:$0xff]
    %v159 = vld [vmem:[%s1 + $0x210] sm:$0xff]
    %v160 = vld [vmem:[%s1 + $0x218] sm:$0xff]
    %v161 = vld [vmem:[%s1 + $0x220] sm:$0xff]
    %v162 = vld [vmem:[%s1 + $0x228] sm:$0xff]
    %v163 = vld [vmem:[%s1 + $0x230] sm:$0xff]
    %v164 = vld [vmem:[%s1 + $0x238] sm:$0xff]
    %v165 = vld [vmem:[%s1 + $0x240] sm:$0xff]
    %v166 = vld [vmem:[%s1 + $0x248] sm:$0xff]
    %v167 = vld [vmem:[%s1 + $0x250] sm:$0xff]
    %v168 = vld [vmem:[%s1 + $0x258] sm:$0xff]
    %v169 = vld [vmem:[%s1 + $0x260] sm:$0xff]
    %v170 = vld [vmem:[%s1 + $0x268] sm:$0xff]
    %v171 = vld [vmem:[%s1 + $0x270] sm:$0xff]
    %v172 = vld [vmem:[%s1 + $0x278] sm:$0xff]
    %v173 = vld [vmem:[%s1 + $0x280] sm:$0xff]
    %v174 = vld [vmem:[%s1 + $0x288] sm:$0xff]
    %v175 = vld [vmem:[%s1 + $0x290] sm:$0xff]
    %v176 = vld [vmem:[%s1 + $0x298] sm:$0xff]
    %v177 = vld [vmem:[%s1 + $0x2a0] sm:$0xff]
    %v178 = vld [vmem:[%s1 + $0x2a8] sm:$0xff]
    %v179 = vld [vmem:[%s1 + $0x2b0] sm:$0xff]
    %v180 = vld [vmem:[%s1 + $0x2b8] sm:$0xff]
    %v181 = vld [vmem:[%s1 + $0x2c0] sm:$0xff]
    %v182 = vld [vmem:[%s1 + $0x2c8] sm:$0xff]
    %v183 = vld [vmem:[%s1 + $0x2d0] sm:$0xff]
    %v184 = vld [vmem:[%s1 + $0x2d8] sm:$0xff]
    %v185 = vld [vmem:[%s1 + $0x2e0] sm:$0xff]
    %v186 = vld [vmem:[%s1 + $0x2e8] sm:$0xff]
    %v187 = vld [vmem:[%s1 + $0x2f0] sm:$0xff]
    %v188 = vld [vmem:[%s1 + $0x2f8] sm:$0xff]
    %v189 = vld [vmem:[%s1 + $0x300] sm:$0xff]
    %v190 = vld [vmem:[%s1 + $0x308] sm:$0xff]
    %v191 = vld [vmem:[%s1 + $0x310] sm:$0xff]
    %v192 = vld [vmem:[%s1 + $0x318] sm:$0xff]
    %v193 = vld [vmem:[%s1 + $0x320] sm:$0xff]
    %v194 = vld [vmem:[%s1 + $0x328] sm:$0xff]
    %v195 = vld [vmem:[%s1 + $0x330] sm:$0xff]
    %v196 = vld [vmem:[%s1 + $0x338] sm:$0xff]
    %v197 = vld [vmem:[%s1 + $0x340] sm:$0xff]
    %v198 = vld [vmem:[%s1 + $0x348] sm:$0xff]
    %v199 = vld [vmem:[%s1 + $0x350] sm:$0xff]
    %v200 = vld [vmem:[%s1 + $0x358] sm:$0xff]
    %v201 = vld [vmem:[%s1 + $0x360] sm:$0xff]
    %v202 = vld [vmem:[%s1 + $0x368] sm:$0xff]
    %v203 = vld [vmem:[%s1 + $0x370] sm:$0xff]
    %v204 = vld [vmem:[%s1 + $0x378] sm:$0xff]
    %v205 = vld [vmem:[%s5] sm:$0x3]
    %v207 = vlaneseq
    %v208 = vshrl.u32 %v207, 7
    %v209 = vsub.s32 0, %v208
    %v210 = vrot.slane %v205, %v209
    %v211 = vlaneseq
    %v212 = vshrl.u32 %v211, 7
    %v213 = vsub.s32 1, %v212
    %v214 = vrot.slane %v205, %v213
    %v249 = vunpack.c.l.b16 %v61
    %v250 = vunpack.c.h.b16 %v61
    %v251 = vunpack.c.l.b16 %v62
    %v252 = vunpack.c.h.b16 %v62
    %v253 = vunpack.c.l.b16 %v63
    %v254 = vunpack.c.h.b16 %v63
    %v255 = vunpack.c.l.b16 %v64
    %v256 = vunpack.c.l.b16 %v65
    %v257 = vunpack.c.h.b16 %v65
    %v258 = vunpack.c.l.b16 %v66
    %v259 = vunpack.c.h.b16 %v66
    %v260 = vunpack.c.l.b16 %v67
    %v261 = vunpack.c.h.b16 %v67
    %v262 = vunpack.c.l.b16 %v68
    %v263 = vunpack.c.l.b16 %v69
    %v264 = vunpack.c.h.b16 %v69
    %v265 = vunpack.c.l.b16 %v70
    %v266 = vunpack.c.h.b16 %v70
    %v267 = vunpack.c.l.b16 %v71
    %v268 = vunpack.c.h.b16 %v71
    %v269 = vunpack.c.l.b16 %v72
    %v270 = vunpack.c.l.b16 %v73
    %v271 = vunpack.c.h.b16 %v73
    %v272 = vunpack.c.l.b16 %v74
    %v273 = vunpack.c.h.b16 %v74
    %v274 = vunpack.c.l.b16 %v75
    %v275 = vunpack.c.h.b16 %v75
    %v276 = vunpack.c.l.b16 %v76
    %v277 = vunpack.c.l.b16 %v77
    %v278 = vunpack.c.h.b16 %v77
    %v279 = vunpack.c.l.b16 %v78
    %v280 = vunpack.c.h.b16 %v78
    %v281 = vunpack.c.l.b16 %v79
    %v282 = vunpack.c.h.b16 %v79
    %v283 = vunpack.c.l.b16 %v80
    %v284 = vunpack.c.l.b16 %v81
    %v285 = vunpack.c.h.b16 %v81
    %v286 = vunpack.c.l.b16 %v82
    %v287 = vunpack.c.h.b16 %v82
    %v288 = vunpack.c.l.b16 %v83
    %v289 = vunpack.c.h.b16 %v83
    %v290 = vunpack.c.l.b16 %v84
    %v291 = vunpack.c.l.b16 %v85
    %v292 = vunpack.c.h.b16 %v85
    %v293 = vunpack.c.l.b16 %v86
    %v294 = vunpack.c.h.b16 %v86
    %v295 = vunpack.c.l.b16 %v87
    %v296 = vunpack.c.h.b16 %v87
    %v297 = vunpack.c.l.b16 %v88
    %v298 = vunpack.c.l.b16 %v89
    %v299 = vunpack.c.h.b16 %v89
    %v300 = vunpack.c.l.b16 %v90
    %v301 = vunpack.c.h.b16 %v90
    %v302 = vunpack.c.l.b16 %v91
    %v303 = vunpack.c.h.b16 %v91
    %v304 = vunpack.c.l.b16 %v92
    %v305 = vpack.c.b16 %v256, %v249
    %v306 = vpack.c.b16 %v257, %v250
    %v307 = vpack.c.b16 %v258, %v251
    %v308 = vpack.c.b16 %v259, %v252
    %v309 = vpack.c.b16 %v260, %v253
    %v310 = vpack.c.b16 %v261, %v254
    %v311 = vpack.c.b16 %v262, %v255
    %v312 = vpack.c.b16 %v270, %v263
    %v313 = vpack.c.b16 %v271, %v264
    %v314 = vpack.c.b16 %v272, %v265
    %v315 = vpack.c.b16 %v273, %v266
    %v316 = vpack.c.b16 %v274, %v267
    %v317 = vpack.c.b16 %v275, %v268
    %v318 = vpack.c.b16 %v276, %v269
    %v319 = vpack.c.b16 %v284, %v277
    %v320 = vpack.c.b16 %v285, %v278
    %v321 = vpack.c.b16 %v286, %v279
    %v322 = vpack.c.b16 %v287, %v280
    %v323 = vpack.c.b16 %v288, %v281
    %v324 = vpack.c.b16 %v289, %v282
    %v325 = vpack.c.b16 %v290, %v283
    %v326 = vpack.c.b16 %v298, %v291
    %v327 = vpack.c.b16 %v299, %v292
    %v328 = vpack.c.b16 %v300, %v293
    %v329 = vpack.c.b16 %v301, %v294
    %v330 = vpack.c.b16 %v302, %v295
    %v331 = vpack.c.b16 %v303, %v296
    %v332 = vpack.c.b16 %v304, %v297
    %v473 = vunpack.c.l.b16 %v93
    %v474 = vunpack.c.h.b16 %v93
    %v475 = vunpack.c.l.b16 %v94
    %v476 = vunpack.c.h.b16 %v94
    %v477 = vunpack.c.l.b16 %v95
    %v478 = vunpack.c.h.b16 %v95
    %v479 = vunpack.c.l.b16 %v96
    %v480 = vunpack.c.h.b16 %v96
    %v481 = vunpack.c.l.b16 %v97
    %v482 = vunpack.c.h.b16 %v97
    %v483 = vunpack.c.l.b16 %v98
    %v484 = vunpack.c.h.b16 %v98
    %v485 = vunpack.c.l.b16 %v99
    %v486 = vunpack.c.h.b16 %v99
    %v487 = vunpack.c.l.b16 %v100
    %v488 = vunpack.c.h.b16 %v100
    %v489 = vunpack.c.l.b16 %v101
    %v490 = vunpack.c.h.b16 %v101
    %v491 = vunpack.c.l.b16 %v102
    %v492 = vunpack.c.h.b16 %v102
    %v493 = vunpack.c.l.b16 %v103
    %v494 = vunpack.c.h.b16 %v103
    %v495 = vunpack.c.l.b16 %v104
    %v496 = vunpack.c.h.b16 %v104
    %v497 = vunpack.c.l.b16 %v105
    %v498 = vunpack.c.h.b16 %v105
    %v499 = vunpack.c.l.b16 %v106
    %v500 = vunpack.c.h.b16 %v106
    %v501 = vunpack.c.l.b16 %v107
    %v502 = vunpack.c.h.b16 %v107
    %v503 = vunpack.c.l.b16 %v108
    %v504 = vunpack.c.h.b16 %v108
    %v505 = vunpack.c.l.b16 %v109
    %v506 = vunpack.c.h.b16 %v109
    %v507 = vunpack.c.l.b16 %v110
    %v508 = vunpack.c.h.b16 %v110
    %v509 = vunpack.c.l.b16 %v111
    %v510 = vunpack.c.h.b16 %v111
    %v511 = vunpack.c.l.b16 %v112
    %v512 = vunpack.c.h.b16 %v112
    %v513 = vunpack.c.l.b16 %v113
    %v514 = vunpack.c.h.b16 %v113
    %v515 = vunpack.c.l.b16 %v114
    %v516 = vunpack.c.h.b16 %v114
    %v517 = vunpack.c.l.b16 %v115
    %v518 = vunpack.c.h.b16 %v115
    %v519 = vunpack.c.l.b16 %v116
    %v520 = vunpack.c.h.b16 %v116
    %v521 = vunpack.c.l.b16 %v117
    %v522 = vunpack.c.h.b16 %v117
    %v523 = vunpack.c.l.b16 %v118
    %v524 = vunpack.c.h.b16 %v118
    %v525 = vunpack.c.l.b16 %v119
    %v526 = vunpack.c.h.b16 %v119
    %v527 = vunpack.c.l.b16 %v120
    %v528 = vunpack.c.h.b16 %v120
    %v529 = vunpack.c.l.b16 %v121
    %v530 = vunpack.c.h.b16 %v121
    %v531 = vunpack.c.l.b16 %v122
    %v532 = vunpack.c.h.b16 %v122
    %v533 = vunpack.c.l.b16 %v123
    %v534 = vunpack.c.h.b16 %v123
    %v535 = vunpack.c.l.b16 %v124
    %v536 = vunpack.c.h.b16 %v124
    %v537 = vunpack.c.l.b16 %v125
    %v538 = vunpack.c.h.b16 %v125
    %v539 = vunpack.c.l.b16 %v126
    %v540 = vunpack.c.h.b16 %v126
    %v541 = vunpack.c.l.b16 %v127
    %v542 = vunpack.c.h.b16 %v127
    %v543 = vunpack.c.l.b16 %v128
    %v544 = vunpack.c.h.b16 %v128
    %v545 = vunpack.c.l.b16 %v129
    %v546 = vunpack.c.h.b16 %v129
    %v547 = vunpack.c.l.b16 %v130
    %v548 = vunpack.c.h.b16 %v130
    %v549 = vunpack.c.l.b16 %v131
    %v550 = vunpack.c.h.b16 %v131
    %v551 = vunpack.c.l.b16 %v132
    %v552 = vunpack.c.h.b16 %v132
    %v553 = vunpack.c.l.b16 %v133
    %v554 = vunpack.c.h.b16 %v133
    %v555 = vunpack.c.l.b16 %v134
    %v556 = vunpack.c.h.b16 %v134
    %v557 = vunpack.c.l.b16 %v135
    %v558 = vunpack.c.h.b16 %v135
    %v559 = vunpack.c.l.b16 %v136
    %v560 = vunpack.c.h.b16 %v136
    %v561 = vunpack.c.l.b16 %v137
    %v562 = vunpack.c.h.b16 %v137
    %v563 = vunpack.c.l.b16 %v138
    %v564 = vunpack.c.h.b16 %v138
    %v565 = vunpack.c.l.b16 %v139
    %v566 = vunpack.c.h.b16 %v139
    %v567 = vunpack.c.l.b16 %v140
    %v568 = vunpack.c.h.b16 %v140
    %v569 = vunpack.c.l.b16 %v141
    %v570 = vunpack.c.h.b16 %v141
    %v571 = vunpack.c.l.b16 %v142
    %v572 = vunpack.c.h.b16 %v142
    %v573 = vunpack.c.l.b16 %v143
    %v574 = vunpack.c.h.b16 %v143
    %v575 = vunpack.c.l.b16 %v144
    %v576 = vunpack.c.h.b16 %v144
    %v577 = vunpack.c.l.b16 %v145
    %v578 = vunpack.c.h.b16 %v145
    %v579 = vunpack.c.l.b16 %v146
    %v580 = vunpack.c.h.b16 %v146
    %v581 = vunpack.c.l.b16 %v147
    %v582 = vunpack.c.h.b16 %v147
    %v583 = vunpack.c.l.b16 %v148
    %v584 = vunpack.c.h.b16 %v148
    %v585 = vunpack.c.l.b16 %v149
    %v586 = vunpack.c.h.b16 %v149
    %v587 = vunpack.c.l.b16 %v150
    %v588 = vunpack.c.h.b16 %v150
    %v589 = vunpack.c.l.b16 %v151
    %v590 = vunpack.c.h.b16 %v151
    %v591 = vunpack.c.l.b16 %v152
    %v592 = vunpack.c.h.b16 %v152
    %v593 = vunpack.c.l.b16 %v153
    %v594 = vunpack.c.h.b16 %v153
    %v595 = vunpack.c.l.b16 %v154
    %v596 = vunpack.c.h.b16 %v154
    %v597 = vunpack.c.l.b16 %v155
    %v598 = vunpack.c.h.b16 %v155
    %v599 = vunpack.c.l.b16 %v156
    %v600 = vunpack.c.h.b16 %v156
    %v601 = vunpack.c.l.b16 %v157
    %v602 = vunpack.c.h.b16 %v157
    %v603 = vunpack.c.l.b16 %v158
    %v604 = vunpack.c.h.b16 %v158
    %v605 = vunpack.c.l.b16 %v159
    %v606 = vunpack.c.h.b16 %v159
    %v607 = vunpack.c.l.b16 %v160
    %v608 = vunpack.c.h.b16 %v160
    %v609 = vunpack.c.l.b16 %v161
    %v610 = vunpack.c.h.b16 %v161
    %v611 = vunpack.c.l.b16 %v162
    %v612 = vunpack.c.h.b16 %v162
    %v613 = vunpack.c.l.b16 %v163
    %v614 = vunpack.c.h.b16 %v163
    %v615 = vunpack.c.l.b16 %v164
    %v616 = vunpack.c.h.b16 %v164
    %v617 = vunpack.c.l.b16 %v165
    %v618 = vunpack.c.h.b16 %v165
    %v619 = vunpack.c.l.b16 %v166
    %v620 = vunpack.c.h.b16 %v166
    %v621 = vunpack.c.l.b16 %v167
    %v622 = vunpack.c.h.b16 %v167
    %v623 = vunpack.c.l.b16 %v168
    %v624 = vunpack.c.h.b16 %v168
    %v625 = vunpack.c.l.b16 %v169
    %v626 = vunpack.c.h.b16 %v169
    %v627 = vunpack.c.l.b16 %v170
    %v628 = vunpack.c.h.b16 %v170
    %v629 = vunpack.c.l.b16 %v171
    %v630 = vunpack.c.h.b16 %v171
    %v631 = vunpack.c.l.b16 %v172
    %v632 = vunpack.c.h.b16 %v172
    %v633 = vunpack.c.l.b16 %v173
    %v634 = vunpack.c.h.b16 %v173
    %v635 = vunpack.c.l.b16 %v174
    %v636 = vunpack.c.h.b16 %v174
    %v637 = vunpack.c.l.b16 %v175
    %v638 = vunpack.c.h.b16 %v175
    %v639 = vunpack.c.l.b16 %v176
    %v640 = vunpack.c.h.b16 %v176
    %v641 = vunpack.c.l.b16 %v177
    %v642 = vunpack.c.h.b16 %v177
    %v643 = vunpack.c.l.b16 %v178
    %v644 = vunpack.c.h.b16 %v178
    %v645 = vunpack.c.l.b16 %v179
    %v646 = vunpack.c.h.b16 %v179
    %v647 = vunpack.c.l.b16 %v180
    %v648 = vunpack.c.h.b16 %v180
    %v649 = vunpack.c.l.b16 %v181
    %v650 = vunpack.c.h.b16 %v181
    %v651 = vunpack.c.l.b16 %v182
    %v652 = vunpack.c.h.b16 %v182
    %v653 = vunpack.c.l.b16 %v183
    %v654 = vunpack.c.h.b16 %v183
    %v655 = vunpack.c.l.b16 %v184
    %v656 = vunpack.c.h.b16 %v184
    %v657 = vunpack.c.l.b16 %v185
    %v658 = vunpack.c.h.b16 %v185
    %v659 = vunpack.c.l.b16 %v186
    %v660 = vunpack.c.h.b16 %v186
    %v661 = vunpack.c.l.b16 %v187
    %v662 = vunpack.c.h.b16 %v187
    %v663 = vunpack.c.l.b16 %v188
    %v664 = vunpack.c.h.b16 %v188
    %v665 = vunpack.c.l.b16 %v189
    %v666 = vunpack.c.h.b16 %v189
    %v667 = vunpack.c.l.b16 %v190
    %v668 = vunpack.c.h.b16 %v190
    %v669 = vunpack.c.l.b16 %v191
    %v670 = vunpack.c.h.b16 %v191
    %v671 = vunpack.c.l.b16 %v192
    %v672 = vunpack.c.h.b16 %v192
    %v673 = vunpack.c.l.b16 %v193
    %v674 = vunpack.c.h.b16 %v193
    %v675 = vunpack.c.l.b16 %v194
    %v676 = vunpack.c.h.b16 %v194
    %v677 = vunpack.c.l.b16 %v195
    %v678 = vunpack.c.h.b16 %v195
    %v679 = vunpack.c.l.b16 %v196
    %v680 = vunpack.c.h.b16 %v196
    %v681 = vunpack.c.l.b16 %v197
    %v682 = vunpack.c.h.b16 %v197
    %v683 = vunpack.c.l.b16 %v198
    %v684 = vunpack.c.h.b16 %v198
    %v685 = vunpack.c.l.b16 %v199
    %v686 = vunpack.c.h.b16 %v199
    %v687 = vunpack.c.l.b16 %v200
    %v688 = vunpack.c.h.b16 %v200
    %v689 = vunpack.c.l.b16 %v201
    %v690 = vunpack.c.h.b16 %v201
    %v691 = vunpack.c.l.b16 %v202
    %v692 = vunpack.c.h.b16 %v202
    %v693 = vunpack.c.l.b16 %v203
    %v694 = vunpack.c.h.b16 %v203
    %v695 = vunpack.c.l.b16 %v204
    %v696 = vunpack.c.h.b16 %v204
    %v697 = vpack.c.b16 %v475, %v473
    %v698 = vpack.c.b16 %v476, %v474
    %v699 = vpack.c.b16 %v479, %v477
    %v700 = vpack.c.b16 %v480, %v478
    %v701 = vpack.c.b16 %v483, %v481
    %v702 = vpack.c.b16 %v484, %v482
    %v703 = vpack.c.b16 %v487, %v485
    %v704 = vpack.c.b16 %v488, %v486
    %v705 = vpack.c.b16 %v491, %v489
    %v706 = vpack.c.b16 %v492, %v490
    %v707 = vpack.c.b16 %v495, %v493
    %v708 = vpack.c.b16 %v496, %v494
    %v709 = vpack.c.b16 %v499, %v497
    %v710 = vpack.c.b16 %v500, %v498
    %v711 = vpack.c.b16 %v503, %v501
    %v712 = vpack.c.b16 %v504, %v502
    %v713 = vpack.c.b16 %v507, %v505
    %v714 = vpack.c.b16 %v508, %v506
    %v715 = vpack.c.b16 %v511, %v509
    %v716 = vpack.c.b16 %v512, %v510
    %v717 = vpack.c.b16 %v515, %v513
    %v718 = vpack.c.b16 %v516, %v514
    %v719 = vpack.c.b16 %v519, %v517
    %v720 = vpack.c.b16 %v520, %v518
    %v721 = vpack.c.b16 %v523, %v521
    %v722 = vpack.c.b16 %v524, %v522
    %v723 = vpack.c.b16 %v527, %v525
    %v724 = vpack.c.b16 %v528, %v526
    %v725 = vpack.c.b16 %v531, %v529
    %v726 = vpack.c.b16 %v532, %v530
    %v727 = vpack.c.b16 %v535, %v533
    %v728 = vpack.c.b16 %v536, %v534
    %v729 = vpack.c.b16 %v539, %v537
    %v730 = vpack.c.b16 %v540, %v538
    %v731 = vpack.c.b16 %v543, %v541
    %v732 = vpack.c.b16 %v544, %v542
    %v733 = vpack.c.b16 %v547, %v545
    %v734 = vpack.c.b16 %v548, %v546
    %v735 = vpack.c.b16 %v551, %v549
    %v736 = vpack.c.b16 %v552, %v550
    %v737 = vpack.c.b16 %v555, %v553
    %v738 = vpack.c.b16 %v556, %v554
    %v739 = vpack.c.b16 %v559, %v557
    %v740 = vpack.c.b16 %v560, %v558
    %v741 = vpack.c.b16 %v563, %v561
    %v742 = vpack.c.b16 %v564, %v562
    %v743 = vpack.c.b16 %v567, %v565
    %v744 = vpack.c.b16 %v568, %v566
    %v745 = vpack.c.b16 %v571, %v569
    %v746 = vpack.c.b16 %v572, %v570
    %v747 = vpack.c.b16 %v575, %v573
    %v748 = vpack.c.b16 %v576, %v574
    %v749 = vpack.c.b16 %v579, %v577
    %v750 = vpack.c.b16 %v580, %v578
    %v751 = vpack.c.b16 %v583, %v581
    %v752 = vpack.c.b16 %v584, %v582
    %v753 = vpack.c.b16 %v587, %v585
    %v754 = vpack.c.b16 %v588, %v586
    %v755 = vpack.c.b16 %v591, %v589
    %v756 = vpack.c.b16 %v592, %v590
    %v757 = vpack.c.b16 %v595, %v593
    %v758 = vpack.c.b16 %v596, %v594
    %v759 = vpack.c.b16 %v599, %v597
    %v760 = vpack.c.b16 %v600, %v598
    %v761 = vpack.c.b16 %v603, %v601
    %v762 = vpack.c.b16 %v604, %v602
    %v763 = vpack.c.b16 %v607, %v605
    %v764 = vpack.c.b16 %v608, %v606
    %v765 = vpack.c.b16 %v611, %v609
    %v766 = vpack.c.b16 %v612, %v610
    %v767 = vpack.c.b16 %v615, %v613
    %v768 = vpack.c.b16 %v616, %v614
    %v769 = vpack.c.b16 %v619, %v617
    %v770 = vpack.c.b16 %v620, %v618
    %v771 = vpack.c.b16 %v623, %v621
    %v772 = vpack.c.b16 %v624, %v622
    %v773 = vpack.c.b16 %v627, %v625
    %v774 = vpack.c.b16 %v628, %v626
    %v775 = vpack.c.b16 %v631, %v629
    %v776 = vpack.c.b16 %v632, %v630
    %v777 = vpack.c.b16 %v635, %v633
    %v778 = vpack.c.b16 %v636, %v634
    %v779 = vpack.c.b16 %v639, %v637
    %v780 = vpack.c.b16 %v640, %v638
    %v781 = vpack.c.b16 %v643, %v641
    %v782 = vpack.c.b16 %v644, %v642
    %v783 = vpack.c.b16 %v647, %v645
    %v784 = vpack.c.b16 %v648, %v646
    %v785 = vpack.c.b16 %v651, %v649
    %v786 = vpack.c.b16 %v652, %v650
    %v787 = vpack.c.b16 %v655, %v653
    %v788 = vpack.c.b16 %v656, %v654
    %v789 = vpack.c.b16 %v659, %v657
    %v790 = vpack.c.b16 %v660, %v658
    %v791 = vpack.c.b16 %v663, %v661
    %v792 = vpack.c.b16 %v664, %v662
    %v793 = vpack.c.b16 %v667, %v665
    %v794 = vpack.c.b16 %v668, %v666
    %v795 = vpack.c.b16 %v671, %v669
    %v796 = vpack.c.b16 %v672, %v670
    %v797 = vpack.c.b16 %v675, %v673
    %v798 = vpack.c.b16 %v676, %v674
    %v799 = vpack.c.b16 %v679, %v677
    %v800 = vpack.c.b16 %v680, %v678
    %v801 = vpack.c.b16 %v683, %v681
    %v802 = vpack.c.b16 %v684, %v682
    %v803 = vpack.c.b16 %v687, %v685
    %v804 = vpack.c.b16 %v688, %v686
    %v805 = vpack.c.b16 %v691, %v689
    %v806 = vpack.c.b16 %v692, %v690
    %v807 = vpack.c.b16 %v695, %v693
    %v808 = vpack.c.b16 %v696, %v694
    %921 = vmatprep.subr.bf16.mxu0 %v698
    %922 = vmatpush1.bf16.msra.mxu0 %v697
    %923 = vmatprep.subr.bf16.mxu0 %v700
    %924 = vmatpush1.bf16.msra.mxu0 %v699
    %925 = vmatprep.subr.bf16.mxu0 %v702
    %926 = vmatpush1.bf16.msra.mxu0 %v701
    %927 = vmatprep.subr.bf16.mxu0 %v704
    %928 = vmatpush1.bf16.msra.mxu0 %v703
    %929 = vmatprep.subr.bf16.mxu0 %v706
    %930 = vmatpush1.bf16.msra.mxu0 %v705
    %931 = vmatprep.subr.bf16.mxu0 %v708
    %932 = vmatpush1.bf16.msra.mxu0 %v707
    %933 = vmatprep.subr.bf16.mxu0 %v710
    %934 = vmatpush1.bf16.msra.mxu0 %v709
    %935 = vmatprep.subr.bf16.mxu0 %v712
    %936 = vmatpush1.bf16.msra.mxu0 %v711
    %937 = vmatprep.subr.bf16.mxu0 %v714
    %938 = vmatpush1.bf16.msra.mxu0 %v713
    %939 = vmatprep.subr.bf16.mxu0 %v716
    %940 = vmatpush1.bf16.msra.mxu0 %v715
    %941 = vmatprep.subr.bf16.mxu0 %v718
    %942 = vmatpush1.bf16.msra.mxu0 %v717
    %943 = vmatprep.subr.bf16.mxu0 %v720
    %944 = vmatpush1.bf16.msra.mxu0 %v719
    %945 = vmatprep.subr.bf16.mxu0 %v722
    %946 = vmatpush1.bf16.msra.mxu0 %v721
    %947 = vmatprep.subr.bf16.mxu0 %v724
    %948 = vmatpush1.bf16.msra.mxu0 %v723
    %949 = vmatprep.subr.bf16.mxu0 %v726
    %950 = vmatpush1.bf16.msra.mxu0 %v725
    %951 = vmatprep.subr.bf16.mxu0 %v728
    %952 = vmatpush1.bf16.msra.mxu0 %v727
    %953 = vmatprep.mubr.bf16.mxu0 %v306
    %954 = vmatmul.mubr.bf16.gmra.mrb[0].mxu0 %v305
    %v955 = vpop.f32.mrb[0].mxu0
    %v956 = vadd.f32 %v210, %v955
    %v957 = vpop.f32.mrb[0].mxu0
    %v958 = vadd.f32 %v214, %v957
    %v959 = vpop.f32.mrb[0].mxu0
    %v960 = vadd.f32 %v210, %v959
    %v961 = vpop.f32.mrb[0].mxu0
    %v962 = vadd.f32 %v214, %v961
    %963 = vmatprep.mubr.bf16.mxu0 %v313
    %964 = vmatmul.mubr.bf16.gmra.mrb[0].mxu0 %v312
    %v965 = vpop.f32.mrb[0].mxu0
    %v966 = vadd.f32 %v210, %v965
    %v967 = vpop.f32.mrb[0].mxu0
    %v968 = vadd.f32 %v214, %v967
    %v969 = vpop.f32.mrb[0].mxu0
    %v970 = vadd.f32 %v210, %v969
    %v971 = vpop.f32.mrb[0].mxu0
    %v972 = vadd.f32 %v214, %v971
    %973 = vmatprep.mubr.bf16.mxu0 %v320
    %974 = vmatmul.mubr.bf16.gmra.mrb[0].mxu0 %v319
    %v975 = vpop.f32.mrb[0].mxu0
    %v976 = vadd.f32 %v210, %v975
    %v977 = vpop.f32.mrb[0].mxu0
    %v978 = vadd.f32 %v214, %v977
    %v979 = vpop.f32.mrb[0].mxu0
    %v980 = vadd.f32 %v210, %v979
    %v981 = vpop.f32.mrb[0].mxu0
    %v982 = vadd.f32 %v214, %v981
    %983 = vmatprep.mubr.bf16.mxu0 %v327
    %984 = vmatmul.mubr.bf16.gmra.mrb[0].mxu0 %v326
    %v985 = vpop.f32.mrb[0].mxu0
    %v986 = vadd.f32 %v210, %v985
    %v987 = vpop.f32.mrb[0].mxu0
    %v988 = vadd.f32 %v214, %v987
    %v989 = vpop.f32.mrb[0].mxu0
    %v990 = vadd.f32 %v210, %v989
    %v991 = vpop.f32.mrb[0].mxu0
    %v992 = vadd.f32 %v214, %v991
    %993 = vdwg.mxu0
    %994 = vmatprep.subr.bf16.mxu0 %v730
    %995 = vmatpush1.bf16.msra.mxu0 %v729
    %996 = vmatprep.subr.bf16.mxu0 %v732
    %997 = vmatpush1.bf16.msra.mxu0 %v731
    %998 = vmatprep.subr.bf16.mxu0 %v734
    %999 = vmatpush1.bf16.msra.mxu0 %v733
    %1000 = vmatprep.subr.bf16.mxu0 %v736
    %1001 = vmatpush1.bf16.msra.mxu0 %v735
    %1002 = vmatprep.subr.bf16.mxu0 %v738
    %1003 = vmatpush1.bf16.msra.mxu0 %v737
    %1004 = vmatprep.subr.bf16.mxu0 %v740
    %1005 = vmatpush1.bf16.msra.mxu0 %v739
    %1006 = vmatprep.subr.bf16.mxu0 %v742
    %1007 = vmatpush1.bf16.msra.mxu0 %v741
    %1008 = vmatprep.subr.bf16.mxu0 %v744
    %1009 = vmatpush1.bf16.msra.mxu0 %v743
    %1010 = vmatprep.subr.bf16.mxu0 %v746
    %1011 = vmatpush1.bf16.msra.mxu0 %v745
    %1012 = vmatprep.subr.bf16.mxu0 %v748
    %1013 = vmatpush1.bf16.msra.mxu0 %v747
    %1014 = vmatprep.subr.bf16.mxu0 %v750
    %1015 = vmatpush1.bf16.msra.mxu0 %v749
    %1016 = vmatprep.subr.bf16.mxu0 %v752
    %1017 = vmatpush1.bf16.msra.mxu0 %v751
    %1018 = vmatprep.subr.bf16.mxu0 %v754
    %1019 = vmatpush1.bf16.msra.mxu0 %v753
    %1020 = vmatprep.subr.bf16.mxu0 %v756
    %1021 = vmatpush1.bf16.msra.mxu0 %v755
    %1022 = vmatprep.subr.bf16.mxu0 %v758
    %1023 = vmatpush1.bf16.msra.mxu0 %v757
    %1024 = vmatprep.subr.bf16.mxu0 %v760
    %1025 = vmatpush1.bf16.msra.mxu0 %v759
    %1026 = vmatprep.mubr.bf16.mxu0 %v308
    %1027 = vmatmul.mubr.bf16.gmra.mrb[0].mxu0 %v307
    %v1028 = vpop.f32.mrb[0].mxu0
    %v1029 = vadd.f32 %v956, %v1028
    %v1030 = vpop.f32.mrb[0].mxu0
    %v1031 = vadd.f32 %v958, %v1030
    %v1032 = vpop.f32.mrb[0].mxu0
    %v1033 = vadd.f32 %v960, %v1032
    %v1034 = vpop.f32.mrb[0].mxu0
    %v1035 = vadd.f32 %v962, %v1034
    %1036 = vmatprep.mubr.bf16.mxu0 %v315
    %1037 = vmatmul.mubr.bf16.gmra.mrb[0].mxu0 %v314
    %v1038 = vpop.f32.mrb[0].mxu0
    %v1039 = vadd.f32 %v966, %v1038
    %v1040 = vpop.f32.mrb[0].mxu0
    %v1041 = vadd.f32 %v968, %v1040
    %v1042 = vpop.f32.mrb[0].mxu0
    %v1043 = vadd.f32 %v970, %v1042
    %v1044 = vpop.f32.mrb[0].mxu0
    %v1045 = vadd.f32 %v972, %v1044
    %1046 = vmatprep.mubr.bf16.mxu0 %v322
    %1047 = vmatmul.mubr.bf16.gmra.mrb[0].mxu0 %v321
    %v1048 = vpop.f32.mrb[0].mxu0
    %v1049 = vadd.f32 %v976, %v1048
    %v1050 = vpop.f32.mrb[0].mxu0
    %v1051 = vadd.f32 %v978, %v1050
    %v1052 = vpop.f32.mrb[0].mxu0
    %v1053 = vadd.f32 %v980, %v1052
    %v1054 = vpop.f32.mrb[0].mxu0
    %v1055 = vadd.f32 %v982, %v1054
    %1056 = vmatprep.mubr.bf16.mxu0 %v329
    %1057 = vmatmul.mubr.bf16.gmra.mrb[0].mxu0 %v328
    %v1058 = vpop.f32.mrb[0].mxu0
    %v1059 = vadd.f32 %v986, %v1058
    %v1060 = vpop.f32.mrb[0].mxu0
    %v1061 = vadd.f32 %v988, %v1060
    %v1062 = vpop.f32.mrb[0].mxu0
    %v1063 = vadd.f32 %v990, %v1062
    %v1064 = vpop.f32.mrb[0].mxu0
    %v1065 = vadd.f32 %v992, %v1064
    %1066 = vdwg.mxu0
    %1067 = vmatprep.subr.bf16.mxu0 %v762
    %1068 = vmatpush1.bf16.msra.mxu0 %v761
    %1069 = vmatprep.subr.bf16.mxu0 %v764
    %1070 = vmatpush1.bf16.msra.mxu0 %v763
    %1071 = vmatprep.subr.bf16.mxu0 %v766
    %1072 = vmatpush1.bf16.msra.mxu0 %v765
    %1073 = vmatprep.subr.bf16.mxu0 %v768
    %1074 = vmatpush1.bf16.msra.mxu0 %v767
    %1075 = vmatprep.subr.bf16.mxu0 %v770
    %1076 = vmatpush1.bf16.msra.mxu0 %v769
    %1077 = vmatprep.subr.bf16.mxu0 %v772
    %1078 = vmatpush1.bf16.msra.mxu0 %v771
    %1079 = vmatprep.subr.bf16.mxu0 %v774
    %1080 = vmatpush1.bf16.msra.mxu0 %v773
    %1081 = vmatprep.subr.bf16.mxu0 %v776
    %1082 = vmatpush1.bf16.msra.mxu0 %v775
    %1083 = vmatprep.subr.bf16.mxu0 %v778
    %1084 = vmatpush1.bf16.msra.mxu0 %v777
    %1085 = vmatprep.subr.bf16.mxu0 %v780
    %1086 = vmatpush1.bf16.msra.mxu0 %v779
    %1087 = vmatprep.subr.bf16.mxu0 %v782
    %1088 = vmatpush1.bf16.msra.mxu0 %v781
    %1089 = vmatprep.subr.bf16.mxu0 %v784
    %1090 = vmatpush1.bf16.msra.mxu0 %v783
    %1091 = vmatprep.subr.bf16.mxu0 %v786
    %1092 = vmatpush1.bf16.msra.mxu0 %v785
    %1093 = vmatprep.subr.bf16.mxu0 %v788
    %1094 = vmatpush1.bf16.msra.mxu0 %v787
    %1095 = vmatprep.subr.bf16.mxu0 %v790
    %1096 = vmatpush1.bf16.msra.mxu0 %v789
    %1097 = vmatprep.subr.bf16.mxu0 %v792
    %1098 = vmatpush1.bf16.msra.mxu0 %v791
    %1099 = vmatprep.mubr.bf16.mxu0 %v310
    %1100 = vmatmul.mubr.bf16.gmra.mrb[0].mxu0 %v309
    %v1101 = vpop.f32.mrb[0].mxu0
    %v1102 = vadd.f32 %v1029, %v1101
    %v1103 = vpop.f32.mrb[0].mxu0
    %v1104 = vadd.f32 %v1031, %v1103
    %v1105 = vpop.f32.mrb[0].mxu0
    %v1106 = vadd.f32 %v1033, %v1105
    %v1107 = vpop.f32.mrb[0].mxu0
    %v1108 = vadd.f32 %v1035, %v1107
    %1109 = vmatprep.mubr.bf16.mxu0 %v317
    %1110 = vmatmul.mubr.bf16.gmra.mrb[0].mxu0 %v316
    %v1111 = vpop.f32.mrb[0].mxu0
    %v1112 = vadd.f32 %v1039, %v1111
    %v1113 = vpop.f32.mrb[0].mxu0
    %v1114 = vadd.f32 %v1041, %v1113
    %v1115 = vpop.f32.mrb[0].mxu0
    %v1116 = vadd.f32 %v1043, %v1115
    %v1117 = vpop.f32.mrb[0].mxu0
    %v1118 = vadd.f32 %v1045, %v1117
    %1119 = vmatprep.mubr.bf16.mxu0 %v324
    %1120 = vmatmul.mubr.bf16.gmra.mrb[0].mxu0 %v323
    %v1121 = vpop.f32.mrb[0].mxu0
    %v1122 = vadd.f32 %v1049, %v1121
    %v1123 = vpop.f32.mrb[0].mxu0
    %v1124 = vadd.f32 %v1051, %v1123
    %v1125 = vpop.f32.mrb[0].mxu0
    %v1126 = vadd.f32 %v1053, %v1125
    %v1127 = vpop.f32.mrb[0].mxu0
    %v1128 = vadd.f32 %v1055, %v1127
    %1129 = vmatprep.mubr.bf16.mxu0 %v331
    %1130 = vmatmul.mubr.bf16.gmra.mrb[0].mxu0 %v330
    %v1131 = vpop.f32.mrb[0].mxu0
    %v1132 = vadd.f32 %v1059, %v1131
    %v1133 = vpop.f32.mrb[0].mxu0
    %v1134 = vadd.f32 %v1061, %v1133
    %v1135 = vpop.f32.mrb[0].mxu0
    %v1136 = vadd.f32 %v1063, %v1135
    %v1137 = vpop.f32.mrb[0].mxu0
    %v1138 = vadd.f32 %v1065, %v1137
    %1139 = vdwg.mxu0
    %1140 = vmatprep.subr.bf16.mxu0 %v794
    %1141 = vmatpush1.bf16.msra.mxu0 %v793
    %1142 = vmatprep.subr.bf16.mxu0 %v796
    %1143 = vmatpush1.bf16.msra.mxu0 %v795
    %1144 = vmatprep.subr.bf16.mxu0 %v798
    %1145 = vmatpush1.bf16.msra.mxu0 %v797
    %1146 = vmatprep.subr.bf16.mxu0 %v800
    %1147 = vmatpush1.bf16.msra.mxu0 %v799
    %1148 = vmatprep.subr.bf16.mxu0 %v802
    %1149 = vmatpush1.bf16.msra.mxu0 %v801
    %1150 = vmatprep.subr.bf16.mxu0 %v804
    %1151 = vmatpush1.bf16.msra.mxu0 %v803
    %1152 = vmatprep.subr.bf16.mxu0 %v806
    %1153 = vmatpush1.bf16.msra.mxu0 %v805
    %1154 = vmatprep.subr.bf16.mxu0 %v808
    %1155 = vmatpush1.bf16.msra.mxu0 %v807
    %1156 = vmatprep.subr.bf16.mxu0 0
    %1157 = vmatpush1.bf16.msra.mxu0 0
    %1158 = vmatprep.subr.bf16.mxu0 0
    %1159 = vmatpush1.bf16.msra.mxu0 0
    %1160 = vmatprep.subr.bf16.mxu0 0
    %1161 = vmatpush1.bf16.msra.mxu0 0
    %1162 = vmatprep.subr.bf16.mxu0 0
    %1163 = vmatpush1.bf16.msra.mxu0 0
    %1164 = vmatprep.subr.bf16.mxu0 0
    %1165 = vmatpush1.bf16.msra.mxu0 0
    %1166 = vmatprep.subr.bf16.mxu0 0
    %1167 = vmatpush1.bf16.msra.mxu0 0
    %1168 = vmatprep.subr.bf16.mxu0 0
    %1169 = vmatpush1.bf16.msra.mxu0 0
    %1170 = vmatprep.subr.bf16.mxu0 0
    %1171 = vmatpush1.bf16.msra.mxu0 0
    %1172 = vmatprep.mubr.bf16.mxu0 0
    %1173 = vmatmul.mubr.bf16.gmra.mrb[0].mxu0 %v311
    %v1174 = vpop.f32.mrb[0].mxu0
    %v1175 = vadd.f32 %v1102, %v1174
    %v1176 = vpop.f32.mrb[0].mxu0
    %v1177 = vadd.f32 %v1104, %v1176
    %v1178 = vpop.f32.mrb[0].mxu0
    %v1179 = vadd.f32 %v1106, %v1178
    %v1180 = vpop.f32.mrb[0].mxu0
    %v1181 = vadd.f32 %v1108, %v1180
    %1182 = vmatprep.mubr.bf16.mxu0 0
    %1183 = vmatmul.mubr.bf16.gmra.mrb[0].mxu0 %v318
    %v1184 = vpop.f32.mrb[0].mxu0
    %v1185 = vadd.f32 %v1112, %v1184
    %v1186 = vpop.f32.mrb[0].mxu0
    %v1187 = vadd.f32 %v1114, %v1186
    %v1188 = vpop.f32.mrb[0].mxu0
    %v1189 = vadd.f32 %v1116, %v1188
    %v1190 = vpop.f32.mrb[0].mxu0
    %v1191 = vadd.f32 %v1118, %v1190
    %1192 = vmatprep.mubr.bf16.mxu0 0
    %1193 = vmatmul.mubr.bf16.gmra.mrb[0].mxu0 %v325
    %v1194 = vpop.f32.mrb[0].mxu0
    %v1195 = vadd.f32 %v1122, %v1194
    %v1196 = vpop.f32.mrb[0].mxu0
    %v1197 = vadd.f32 %v1124, %v1196
    %v1198 = vpop.f32.mrb[0].mxu0
    %v1199 = vadd.f32 %v1126, %v1198
    %v1200 = vpop.f32.mrb[0].mxu0
    %v1201 = vadd.f32 %v1128, %v1200
    %1202 = vmatprep.mubr.bf16.mxu0 0
    %1203 = vmatmul.mubr.bf16.gmra.mrb[0].mxu0 %v332
    %v1204 = vpop.f32.mrb[0].mxu0
    %v1205 = vadd.f32 %v1132, %v1204
    %v1206 = vpop.f32.mrb[0].mxu0
    %v1207 = vadd.f32 %v1134, %v1206
    %v1208 = vpop.f32.mrb[0].mxu0
    %v1209 = vadd.f32 %v1136, %v1208
    %v1210 = vpop.f32.mrb[0].mxu0
    %v1211 = vadd.f32 %v1138, %v1210
    %1212 = vdwg.mxu0
    %v1213 = vmax.f32 %v1175, 0.0
    %v1214 = vmax.f32 %v1177, 0.0
    %v1215 = vmax.f32 %v1179, 0.0
    %v1216 = vmax.f32 %v1181, 0.0
    %v1217 = vmax.f32 %v1185, 0.0
    %v1218 = vmax.f32 %v1187, 0.0
    %v1219 = vmax.f32 %v1189, 0.0
    %v1220 = vmax.f32 %v1191, 0.0
    %v1221 = vmax.f32 %v1195, 0.0
    %v1222 = vmax.f32 %v1197, 0.0
    %v1223 = vmax.f32 %v1199, 0.0
    %v1224 = vmax.f32 %v1201, 0.0
    %v1225 = vmax.f32 %v1205, 0.0
    %v1226 = vmax.f32 %v1207, 0.0
    %v1227 = vmax.f32 %v1209, 0.0
    %v1228 = vmax.f32 %v1211, 0.0
    %v1229 = vpack.c.bf16 %v1215, %v1213
    %v1230 = vpack.c.bf16 %v1216, %v1214
    %v1231 = vpack.c.bf16 %v1219, %v1217
    %v1232 = vpack.c.bf16 %v1220, %v1218
    %v1233 = vpack.c.bf16 %v1223, %v1221
    %v1234 = vpack.c.bf16 %v1224, %v1222
    %v1235 = vpack.c.bf16 %v1227, %v1225
    %v1236 = vpack.c.bf16 %v1228, %v1226
    %v1237 = vld [vmem:[#allocation2] sm:$0xff]
    %v1238 = vld [vmem:[#allocation2 + $0x8] sm:$0xff]
    %v1239 = vld [vmem:[#allocation2 + $0x10] sm:$0xff]
    %v1240 = vld [vmem:[#allocation2 + $0x18] sm:$0xff]
    %v1241 = vld [vmem:[#allocation2 + $0x20] sm:$0xff]
    %v1242 = vld [vmem:[#allocation2 + $0x28] sm:$0xff]
    %v1243 = vld [vmem:[#allocation2 + $0x30] sm:$0xff]
    %v1244 = vld [vmem:[#allocation2 + $0x38] sm:$0xff]
    %v1245 = vld [vmem:[#allocation2 + $0x40] sm:$0xff]
    %v1246 = vld [vmem:[#allocation2 + $0x48] sm:$0xff]
    %v1247 = vld [vmem:[#allocation2 + $0x50] sm:$0xff]
    %v1248 = vld [vmem:[#allocation2 + $0x58] sm:$0xff]
    %v1249 = vld [vmem:[#allocation2 + $0x60] sm:$0xff]
    %v1250 = vld [vmem:[#allocation2 + $0x68] sm:$0xff]
    %v1251 = vld [vmem:[#allocation2 + $0x70] sm:$0xff]
    %v1252 = vld [vmem:[#allocation2 + $0x78] sm:$0xff]
    %v1253 = vld [vmem:[#allocation2 + $0x80] sm:$0xff]
    %v1254 = vld [vmem:[#allocation2 + $0x88] sm:$0xff]
    %v1255 = vld [vmem:[#allocation2 + $0x90] sm:$0xff]
    %v1256 = vld [vmem:[#allocation2 + $0x98] sm:$0xff]
    %v1257 = vld [vmem:[#allocation2 + $0xa0] sm:$0xff]
    %v1258 = vld [vmem:[#allocation2 + $0xa8] sm:$0xff]
    %v1259 = vld [vmem:[#allocation2 + $0xb0] sm:$0xff]
    %v1260 = vld [vmem:[#allocation2 + $0xb8] sm:$0xff]
    %v1261 = vld [vmem:[#allocation2 + $0xc0] sm:$0xff]
    %v1262 = vld [vmem:[#allocation2 + $0xc8] sm:$0xff]
    %v1263 = vld [vmem:[#allocation2 + $0xd0] sm:$0xff]
    %v1264 = vld [vmem:[#allocation2 + $0xd8] sm:$0xff]
    %v1265 = vld [vmem:[#allocation2 + $0xe0] sm:$0xff]
    %v1266 = vld [vmem:[#allocation2 + $0xe8] sm:$0xff]
    %v1267 = vld [vmem:[#allocation2 + $0xf0] sm:$0xff]
    %v1268 = vld [vmem:[#allocation2 + $0xf8] sm:$0xff]
    %v1269 = vld [vmem:[%s6] sm:$0x3]
    %v1271 = vlaneseq
    %v1272 = vshrl.u32 %v1271, 7
    %v1273 = vsub.s32 0, %v1272
    %v1274 = vrot.slane %v1269, %v1273
    %v1275 = vlaneseq
    %v1276 = vshrl.u32 %v1275, 7
    %v1277 = vsub.s32 1, %v1276
    %v1278 = vrot.slane %v1269, %v1277
    %v1313 = vunpack.c.l.b16 %v1237
    %v1314 = vunpack.c.h.b16 %v1237
    %v1315 = vunpack.c.l.b16 %v1238
    %v1316 = vunpack.c.h.b16 %v1238
    %v1317 = vunpack.c.l.b16 %v1239
    %v1318 = vunpack.c.h.b16 %v1239
    %v1319 = vunpack.c.l.b16 %v1240
    %v1320 = vunpack.c.h.b16 %v1240
    %v1321 = vunpack.c.l.b16 %v1241
    %v1322 = vunpack.c.h.b16 %v1241
    %v1323 = vunpack.c.l.b16 %v1242
    %v1324 = vunpack.c.h.b16 %v1242
    %v1325 = vunpack.c.l.b16 %v1243
    %v1326 = vunpack.c.h.b16 %v1243
    %v1327 = vunpack.c.l.b16 %v1244
    %v1328 = vunpack.c.h.b16 %v1244
    %v1329 = vunpack.c.l.b16 %v1245
    %v1330 = vunpack.c.h.b16 %v1245
    %v1331 = vunpack.c.l.b16 %v1246
    %v1332 = vunpack.c.h.b16 %v1246
    %v1333 = vunpack.c.l.b16 %v1247
    %v1334 = vunpack.c.h.b16 %v1247
    %v1335 = vunpack.c.l.b16 %v1248
    %v1336 = vunpack.c.h.b16 %v1248
    %v1337 = vunpack.c.l.b16 %v1249
    %v1338 = vunpack.c.h.b16 %v1249
    %v1339 = vunpack.c.l.b16 %v1250
    %v1340 = vunpack.c.h.b16 %v1250
    %v1341 = vunpack.c.l.b16 %v1251
    %v1342 = vunpack.c.h.b16 %v1251
    %v1343 = vunpack.c.l.b16 %v1252
    %v1344 = vunpack.c.h.b16 %v1252
    %v1345 = vunpack.c.l.b16 %v1253
    %v1346 = vunpack.c.h.b16 %v1253
    %v1347 = vunpack.c.l.b16 %v1254
    %v1348 = vunpack.c.h.b16 %v1254
    %v1349 = vunpack.c.l.b16 %v1255
    %v1350 = vunpack.c.h.b16 %v1255
    %v1351 = vunpack.c.l.b16 %v1256
    %v1352 = vunpack.c.h.b16 %v1256
    %v1353 = vunpack.c.l.b16 %v1257
    %v1354 = vunpack.c.h.b16 %v1257
    %v1355 = vunpack.c.l.b16 %v1258
    %v1356 = vunpack.c.h.b16 %v1258
    %v1357 = vunpack.c.l.b16 %v1259
    %v1358 = vunpack.c.h.b16 %v1259
    %v1359 = vunpack.c.l.b16 %v1260
    %v1360 = vunpack.c.h.b16 %v1260
    %v1361 = vunpack.c.l.b16 %v1261
    %v1362 = vunpack.c.h.b16 %v1261
    %v1363 = vunpack.c.l.b16 %v1262
    %v1364 = vunpack.c.h.b16 %v1262
    %v1365 = vunpack.c.l.b16 %v1263
    %v1366 = vunpack.c.h.b16 %v1263
    %v1367 = vunpack.c.l.b16 %v1264
    %v1368 = vunpack.c.h.b16 %v1264
    %v1369 = vunpack.c.l.b16 %v1265
    %v1370 = vunpack.c.h.b16 %v1265
    %v1371 = vunpack.c.l.b16 %v1266
    %v1372 = vunpack.c.h.b16 %v1266
    %v1373 = vunpack.c.l.b16 %v1267
    %v1374 = vunpack.c.h.b16 %v1267
    %v1375 = vunpack.c.l.b16 %v1268
    %v1376 = vunpack.c.h.b16 %v1268
    %v1377 = vpack.c.b16 %v1315, %v1313
    %v1378 = vpack.c.b16 %v1316, %v1314
    %v1379 = vpack.c.b16 %v1319, %v1317
    %v1380 = vpack.c.b16 %v1320, %v1318
    %v1381 = vpack.c.b16 %v1323, %v1321
    %v1382 = vpack.c.b16 %v1324, %v1322
    %v1383 = vpack.c.b16 %v1327, %v1325
    %v1384 = vpack.c.b16 %v1328, %v1326
    %v1385 = vpack.c.b16 %v1331, %v1329
    %v1386 = vpack.c.b16 %v1332, %v1330
    %v1387 = vpack.c.b16 %v1335, %v1333
    %v1388 = vpack.c.b16 %v1336, %v1334
    %v1389 = vpack.c.b16 %v1339, %v1337
    %v1390 = vpack.c.b16 %v1340, %v1338
    %v1391 = vpack.c.b16 %v1343, %v1341
    %v1392 = vpack.c.b16 %v1344, %v1342
    %v1393 = vpack.c.b16 %v1347, %v1345
    %v1394 = vpack.c.b16 %v1348, %v1346
    %v1395 = vpack.c.b16 %v1351, %v1349
    %v1396 = vpack.c.b16 %v1352, %v1350
    %v1397 = vpack.c.b16 %v1355, %v1353
    %v1398 = vpack.c.b16 %v1356, %v1354
    %v1399 = vpack.c.b16 %v1359, %v1357
    %v1400 = vpack.c.b16 %v1360, %v1358
    %v1401 = vpack.c.b16 %v1363, %v1361
    %v1402 = vpack.c.b16 %v1364, %v1362
    %v1403 = vpack.c.b16 %v1367, %v1365
    %v1404 = vpack.c.b16 %v1368, %v1366
    %v1405 = vpack.c.b16 %v1371, %v1369
    %v1406 = vpack.c.b16 %v1372, %v1370
    %v1407 = vpack.c.b16 %v1375, %v1373
    %v1408 = vpack.c.b16 %v1376, %v1374
    %1441 = vmatprep.subr.bf16.mxu0 %v1378
    %1442 = vmatpush1.bf16.msra.mxu0 %v1377
    %1443 = vmatprep.subr.bf16.mxu0 %v1380
    %1444 = vmatpush1.bf16.msra.mxu0 %v1379
    %1445 = vmatprep.subr.bf16.mxu0 %v1382
    %1446 = vmatpush1.bf16.msra.mxu0 %v1381
    %1447 = vmatprep.subr.bf16.mxu0 %v1384
    %1448 = vmatpush1.bf16.msra.mxu0 %v1383
    %1449 = vmatprep.subr.bf16.mxu0 %v1386
    %1450 = vmatpush1.bf16.msra.mxu0 %v1385
    %1451 = vmatprep.subr.bf16.mxu0 %v1388
    %1452 = vmatpush1.bf16.msra.mxu0 %v1387
    %1453 = vmatprep.subr.bf16.mxu0 %v1390
    %1454 = vmatpush1.bf16.msra.mxu0 %v1389
    %1455 = vmatprep.subr.bf16.mxu0 %v1392
    %1456 = vmatpush1.bf16.msra.mxu0 %v1391
    %1457 = vmatprep.subr.bf16.mxu0 %v1394
    %1458 = vmatpush1.bf16.msra.mxu0 %v1393
    %1459 = vmatprep.subr.bf16.mxu0 %v1396
    %1460 = vmatpush1.bf16.msra.mxu0 %v1395
    %1461 = vmatprep.subr.bf16.mxu0 %v1398
    %1462 = vmatpush1.bf16.msra.mxu0 %v1397
    %1463 = vmatprep.subr.bf16.mxu0 %v1400
    %1464 = vmatpush1.bf16.msra.mxu0 %v1399
    %1465 = vmatprep.subr.bf16.mxu0 %v1402
    %1466 = vmatpush1.bf16.msra.mxu0 %v1401
    %1467 = vmatprep.subr.bf16.mxu0 %v1404
    %1468 = vmatpush1.bf16.msra.mxu0 %v1403
    %1469 = vmatprep.subr.bf16.mxu0 %v1406
    %1470 = vmatpush1.bf16.msra.mxu0 %v1405
    %1471 = vmatprep.subr.bf16.mxu0 %v1408
    %1472 = vmatpush1.bf16.msra.mxu0 %v1407
    %1473 = vmatprep.mubr.bf16.mxu0 %v1230
    %1474 = vmatmul.mubr.bf16.gmra.mrb[0].mxu0 %v1229
    %v1475 = vpop.f32.mrb[0].mxu0
    %v1476 = vadd.f32 %v1274, %v1475
    %v1477 = vpop.f32.mrb[0].mxu0
    %v1478 = vadd.f32 %v1278, %v1477
    %v1479 = vpop.f32.mrb[0].mxu0
    %v1480 = vadd.f32 %v1274, %v1479
    %v1481 = vpop.f32.mrb[0].mxu0
    %v1482 = vadd.f32 %v1278, %v1481
    %1483 = vmatprep.mubr.bf16.mxu0 %v1232
    %1484 = vmatmul.mubr.bf16.gmra.mrb[0].mxu0 %v1231
    %v1485 = vpop.f32.mrb[0].mxu0
    %v1486 = vadd.f32 %v1274, %v1485
    %v1487 = vpop.f32.mrb[0].mxu0
    %v1488 = vadd.f32 %v1278, %v1487
    %v1489 = vpop.f32.mrb[0].mxu0
    %v1490 = vadd.f32 %v1274, %v1489
    %v1491 = vpop.f32.mrb[0].mxu0
    %v1492 = vadd.f32 %v1278, %v1491
    %1493 = vmatprep.mubr.bf16.mxu0 %v1234
    %1494 = vmatmul.mubr.bf16.gmra.mrb[0].mxu0 %v1233
    %v1495 = vpop.f32.mrb[0].mxu0
    %v1496 = vadd.f32 %v1274, %v1495
    %v1497 = vpop.f32.mrb[0].mxu0
    %v1498 = vadd.f32 %v1278, %v1497
    %v1499 = vpop.f32.mrb[0].mxu0
    %v1500 = vadd.f32 %v1274, %v1499
    %v1501 = vpop.f32.mrb[0].mxu0
    %v1502 = vadd.f32 %v1278, %v1501
    %1503 = vmatprep.mubr.bf16.mxu0 %v1236
    %1504 = vmatmul.mubr.bf16.gmra.mrb[0].mxu0 %v1235
    %v1505 = vpop.f32.mrb[0].mxu0
    %v1506 = vadd.f32 %v1274, %v1505
    %v1507 = vpop.f32.mrb[0].mxu0
    %v1508 = vadd.f32 %v1278, %v1507
    %v1509 = vpop.f32.mrb[0].mxu0
    %v1510 = vadd.f32 %v1274, %v1509
    %v1511 = vpop.f32.mrb[0].mxu0
    %v1512 = vadd.f32 %v1278, %v1511
    %1513 = vdwg.mxu0
    %v1514 = vmax.f32 %v1476, 0.0
    %v1515 = vmax.f32 %v1478, 0.0
    %v1516 = vmax.f32 %v1480, 0.0
    %v1517 = vmax.f32 %v1482, 0.0
    %v1518 = vmax.f32 %v1486, 0.0
    %v1519 = vmax.f32 %v1488, 0.0
    %v1520 = vmax.f32 %v1490, 0.0
    %v1521 = vmax.f32 %v1492, 0.0
    %v1522 = vmax.f32 %v1496, 0.0
    %v1523 = vmax.f32 %v1498, 0.0
    %v1524 = vmax.f32 %v1500, 0.0
    %v1525 = vmax.f32 %v1502, 0.0
    %v1526 = vmax.f32 %v1506, 0.0
    %v1527 = vmax.f32 %v1508, 0.0
    %v1528 = vmax.f32 %v1510, 0.0
    %v1529 = vmax.f32 %v1512, 0.0
    %v1530 = vpack.c.bf16 %v1516, %v1514
    %v1531 = vpack.c.bf16 %v1517, %v1515
    %v1532 = vpack.c.bf16 %v1520, %v1518
    %v1533 = vpack.c.bf16 %v1521, %v1519
    %v1534 = vpack.c.bf16 %v1524, %v1522
    %v1535 = vpack.c.bf16 %v1525, %v1523
    %v1536 = vpack.c.bf16 %v1528, %v1526
    %v1537 = vpack.c.bf16 %v1529, %v1527
    %v1538 = vld [vmem:[#allocation4] sm:$0xff]
    %v1539 = vld [vmem:[#allocation4 + $0x8] sm:$0xff]
    %v1540 = vld [vmem:[#allocation4 + $0x10] sm:$0xff]
    %v1541 = vld [vmem:[#allocation4 + $0x18] sm:$0xff]
    %v1542 = vld [vmem:[#allocation4 + $0x20] sm:$0xff]
    %v1543 = vld [vmem:[#allocation4 + $0x28] sm:$0xff]
    %v1544 = vld [vmem:[#allocation4 + $0x30] sm:$0xff]
    %v1545 = vld [vmem:[#allocation4 + $0x38] sm:$0xff]
    %v1546 = vld [vmem:[#allocation4 + $0x40] sm:$0xff]
    %v1547 = vld [vmem:[#allocation4 + $0x48] sm:$0xff]
    %v1548 = vld [vmem:[#allocation4 + $0x50] sm:$0xff]
    %v1549 = vld [vmem:[#allocation4 + $0x58] sm:$0xff]
    %v1550 = vld [vmem:[#allocation4 + $0x60] sm:$0xff]
    %v1551 = vld [vmem:[#allocation4 + $0x68] sm:$0xff]
    %v1552 = vld [vmem:[#allocation4 + $0x70] sm:$0xff]
    %v1553 = vld [vmem:[#allocation4 + $0x78] sm:$0xff]
    %v1554 = vld [vmem:[#allocation4 + $0x80] sm:$0xff]
    %v1555 = vld [vmem:[#allocation4 + $0x88] sm:$0xff]
    %v1556 = vld [vmem:[#allocation4 + $0x90] sm:$0xff]
    %v1557 = vld [vmem:[#allocation4 + $0x98] sm:$0xff]
    %v1558 = vld [vmem:[#allocation4 + $0xa0] sm:$0xff]
    %v1559 = vld [vmem:[#allocation4 + $0xa8] sm:$0xff]
    %v1560 = vld [vmem:[#allocation4 + $0xb0] sm:$0xff]
    %v1561 = vld [vmem:[#allocation4 + $0xb8] sm:$0xff]
    %v1562 = vld [vmem:[#allocation4 + $0xc0] sm:$0xff]
    %v1563 = vld [vmem:[#allocation4 + $0xc8] sm:$0xff]
    %v1564 = vld [vmem:[#allocation4 + $0xd0] sm:$0xff]
    %v1565 = vld [vmem:[#allocation4 + $0xd8] sm:$0xff]
    %v1566 = vld [vmem:[#allocation4 + $0xe0] sm:$0xff]
    %v1567 = vld [vmem:[#allocation4 + $0xe8] sm:$0xff]
    %v1568 = vld [vmem:[#allocation4 + $0xf0] sm:$0xff]
    %v1569 = vld [vmem:[#allocation4 + $0xf8] sm:$0xff]
    %v1570 = vld [vmem:[%s7] sm:$0x3]
    %v1572 = vlaneseq
    %v1573 = vshrl.u32 %v1572, 7
    %v1574 = vsub.s32 0, %v1573
    %v1575 = vrot.slane %v1570, %v1574
    %v1576 = vlaneseq
    %v1577 = vshrl.u32 %v1576, 7
    %v1578 = vsub.s32 1, %v1577
    %v1579 = vrot.slane %v1570, %v1578
    %v1614 = vunpack.c.l.b16 %v1538
    %v1615 = vunpack.c.h.b16 %v1538
    %v1616 = vunpack.c.l.b16 %v1539
    %v1617 = vunpack.c.h.b16 %v1539
    %v1618 = vunpack.c.l.b16 %v1540
    %v1619 = vunpack.c.h.b16 %v1540
    %v1620 = vunpack.c.l.b16 %v1541
    %v1621 = vunpack.c.h.b16 %v1541
    %v1622 = vunpack.c.l.b16 %v1542
    %v1623 = vunpack.c.h.b16 %v1542
    %v1624 = vunpack.c.l.b16 %v1543
    %v1625 = vunpack.c.h.b16 %v1543
    %v1626 = vunpack.c.l.b16 %v1544
    %v1627 = vunpack.c.h.b16 %v1544
    %v1628 = vunpack.c.l.b16 %v1545
    %v1629 = vunpack.c.h.b16 %v1545
    %v1630 = vunpack.c.l.b16 %v1546
    %v1631 = vunpack.c.h.b16 %v1546
    %v1632 = vunpack.c.l.b16 %v1547
    %v1633 = vunpack.c.h.b16 %v1547
    %v1634 = vunpack.c.l.b16 %v1548
    %v1635 = vunpack.c.h.b16 %v1548
    %v1636 = vunpack.c.l.b16 %v1549
    %v1637 = vunpack.c.h.b16 %v1549
    %v1638 = vunpack.c.l.b16 %v1550
    %v1639 = vunpack.c.h.b16 %v1550
    %v1640 = vunpack.c.l.b16 %v1551
    %v1641 = vunpack.c.h.b16 %v1551
    %v1642 = vunpack.c.l.b16 %v1552
    %v1643 = vunpack.c.h.b16 %v1552
    %v1644 = vunpack.c.l.b16 %v1553
    %v1645 = vunpack.c.h.b16 %v1553
    %v1646 = vunpack.c.l.b16 %v1554
    %v1647 = vunpack.c.h.b16 %v1554
    %v1648 = vunpack.c.l.b16 %v1555
    %v1649 = vunpack.c.h.b16 %v1555
    %v1650 = vunpack.c.l.b16 %v1556
    %v1651 = vunpack.c.h.b16 %v1556
    %v1652 = vunpack.c.l.b16 %v1557
    %v1653 = vunpack.c.h.b16 %v1557
    %v1654 = vunpack.c.l.b16 %v1558
    %v1655 = vunpack.c.h.b16 %v1558
    %v1656 = vunpack.c.l.b16 %v1559
    %v1657 = vunpack.c.h.b16 %v1559
    %v1658 = vunpack.c.l.b16 %v1560
    %v1659 = vunpack.c.h.b16 %v1560
    %v1660 = vunpack.c.l.b16 %v1561
    %v1661 = vunpack.c.h.b16 %v1561
    %v1662 = vunpack.c.l.b16 %v1562
    %v1663 = vunpack.c.h.b16 %v1562
    %v1664 = vunpack.c.l.b16 %v1563
    %v1665 = vunpack.c.h.b16 %v1563
    %v1666 = vunpack.c.l.b16 %v1564
    %v1667 = vunpack.c.h.b16 %v1564
    %v1668 = vunpack.c.l.b16 %v1565
    %v1669 = vunpack.c.h.b16 %v1565
    %v1670 = vunpack.c.l.b16 %v1566
    %v1671 = vunpack.c.h.b16 %v1566
    %v1672 = vunpack.c.l.b16 %v1567
    %v1673 = vunpack.c.h.b16 %v1567
    %v1674 = vunpack.c.l.b16 %v1568
    %v1675 = vunpack.c.h.b16 %v1568
    %v1676 = vunpack.c.l.b16 %v1569
    %v1677 = vunpack.c.h.b16 %v1569
    %v1678 = vpack.c.b16 %v1616, %v1614
    %v1679 = vpack.c.b16 %v1617, %v1615
    %v1680 = vpack.c.b16 %v1620, %v1618
    %v1681 = vpack.c.b16 %v1621, %v1619
    %v1682 = vpack.c.b16 %v1624, %v1622
    %v1683 = vpack.c.b16 %v1625, %v1623
    %v1684 = vpack.c.b16 %v1628, %v1626
    %v1685 = vpack.c.b16 %v1629, %v1627
    %v1686 = vpack.c.b16 %v1632, %v1630
    %v1687 = vpack.c.b16 %v1633, %v1631
    %v1688 = vpack.c.b16 %v1636, %v1634
    %v1689 = vpack.c.b16 %v1637, %v1635
    %v1690 = vpack.c.b16 %v1640, %v1638
    %v1691 = vpack.c.b16 %v1641, %v1639
    %v1692 = vpack.c.b16 %v1644, %v1642
    %v1693 = vpack.c.b16 %v1645, %v1643
    %v1694 = vpack.c.b16 %v1648, %v1646
    %v1695 = vpack.c.b16 %v1649, %v1647
    %v1696 = vpack.c.b16 %v1652, %v1650
    %v1697 = vpack.c.b16 %v1653, %v1651
    %v1698 = vpack.c.b16 %v1656, %v1654
    %v1699 = vpack.c.b16 %v1657, %v1655
    %v1700 = vpack.c.b16 %v1660, %v1658
    %v1701 = vpack.c.b16 %v1661, %v1659
    %v1702 = vpack.c.b16 %v1664, %v1662
    %v1703 = vpack.c.b16 %v1665, %v1663
    %v1704 = vpack.c.b16 %v1668, %v1666
    %v1705 = vpack.c.b16 %v1669, %v1667
    %v1706 = vpack.c.b16 %v1672, %v1670
    %v1707 = vpack.c.b16 %v1673, %v1671
    %v1708 = vpack.c.b16 %v1676, %v1674
    %v1709 = vpack.c.b16 %v1677, %v1675
    %1742 = vmatprep.subr.bf16.mxu0 %v1679
    %1743 = vmatpush1.bf16.msra.mxu0 %v1678
    %1744 = vmatprep.subr.bf16.mxu0 %v1681
    %1745 = vmatpush1.bf16.msra.mxu0 %v1680
    %1746 = vmatprep.subr.bf16.mxu0 %v1683
    %1747 = vmatpush1.bf16.msra.mxu0 %v1682
    %1748 = vmatprep.subr.bf16.mxu0 %v1685
    %1749 = vmatpush1.bf16.msra.mxu0 %v1684
    %1750 = vmatprep.subr.bf16.mxu0 %v1687
    %1751 = vmatpush1.bf16.msra.mxu0 %v1686
    %1752 = vmatprep.subr.bf16.mxu0 %v1689
    %1753 = vmatpush1.bf16.msra.mxu0 %v1688
    %1754 = vmatprep.subr.bf16.mxu0 %v1691
    %1755 = vmatpush1.bf16.msra.mxu0 %v1690
    %1756 = vmatprep.subr.bf16.mxu0 %v1693
    %1757 = vmatpush1.bf16.msra.mxu0 %v1692
    %1758 = vmatprep.subr.bf16.mxu0 %v1695
    %1759 = vmatpush1.bf16.msra.mxu0 %v1694
    %1760 = vmatprep.subr.bf16.mxu0 %v1697
    %1761 = vmatpush1.bf16.msra.mxu0 %v1696
    %1762 = vmatprep.subr.bf16.mxu0 %v1699
    %1763 = vmatpush1.bf16.msra.mxu0 %v1698
    %1764 = vmatprep.subr.bf16.mxu0 %v1701
    %1765 = vmatpush1.bf16.msra.mxu0 %v1700
    %1766 = vmatprep.subr.bf16.mxu0 %v1703
    %1767 = vmatpush1.bf16.msra.mxu0 %v1702
    %1768 = vmatprep.subr.bf16.mxu0 %v1705
    %1769 = vmatpush1.bf16.msra.mxu0 %v1704
    %1770 = vmatprep.subr.bf16.mxu0 %v1707
    %1771 = vmatpush1.bf16.msra.mxu0 %v1706
    %1772 = vmatprep.subr.bf16.mxu0 %v1709
    %1773 = vmatpush1.bf16.msra.mxu0 %v1708
    %1774 = vmatprep.mubr.bf16.mxu0 %v1531
    %1775 = vmatmul.mubr.bf16.gmra.mrb[0].mxu0 %v1530
    %v1776 = vpop.f32.mrb[0].mxu0
    %v1777 = vadd.f32 %v1575, %v1776
    %v1778 = vpop.f32.mrb[0].mxu0
    %v1779 = vadd.f32 %v1579, %v1778
    %v1780 = vpop.f32.mrb[0].mxu0
    %v1781 = vadd.f32 %v1575, %v1780
    %v1782 = vpop.f32.mrb[0].mxu0
    %v1783 = vadd.f32 %v1579, %v1782
    %1784 = vmatprep.mubr.bf16.mxu0 %v1533
    %1785 = vmatmul.mubr.bf16.gmra.mrb[0].mxu0 %v1532
    %v1786 = vpop.f32.mrb[0].mxu0
    %v1787 = vadd.f32 %v1575, %v1786
    %v1788 = vpop.f32.mrb[0].mxu0
    %v1789 = vadd.f32 %v1579, %v1788
    %v1790 = vpop.f32.mrb[0].mxu0
    %v1791 = vadd.f32 %v1575, %v1790
    %v1792 = vpop.f32.mrb[0].mxu0
    %v1793 = vadd.f32 %v1579, %v1792
    %1794 = vmatprep.mubr.bf16.mxu0 %v1535
    %1795 = vmatmul.mubr.bf16.gmra.mrb[0].mxu0 %v1534
    %v1796 = vpop.f32.mrb[0].mxu0
    %v1797 = vadd.f32 %v1575, %v1796
    %v1798 = vpop.f32.mrb[0].mxu0
    %v1799 = vadd.f32 %v1579, %v1798
    %v1800 = vpop.f32.mrb[0].mxu0
    %v1801 = vadd.f32 %v1575, %v1800
    %v1802 = vpop.f32.mrb[0].mxu0
    %v1803 = vadd.f32 %v1579, %v1802
    %1804 = vmatprep.mubr.bf16.mxu0 %v1537
    %1805 = vmatmul.mubr.bf16.gmra.mrb[0].mxu0 %v1536
    %v1806 = vpop.f32.mrb[0].mxu0
    %v1807 = vadd.f32 %v1575, %v1806
    %v1808 = vpop.f32.mrb[0].mxu0
    %v1809 = vadd.f32 %v1579, %v1808
    %v1810 = vpop.f32.mrb[0].mxu0
    %v1811 = vadd.f32 %v1575, %v1810
    %v1812 = vpop.f32.mrb[0].mxu0
    %v1813 = vadd.f32 %v1579, %v1812
    %1814 = vdwg.mxu0
    %v1815 = vmax.f32 %v1777, 0.0
    %v1816 = vmax.f32 %v1779, 0.0
    %v1817 = vmax.f32 %v1781, 0.0
    %v1818 = vmax.f32 %v1783, 0.0
    %v1819 = vmax.f32 %v1787, 0.0
    %v1820 = vmax.f32 %v1789, 0.0
    %v1821 = vmax.f32 %v1791, 0.0
    %v1822 = vmax.f32 %v1793, 0.0
    %v1823 = vmax.f32 %v1797, 0.0
    %v1824 = vmax.f32 %v1799, 0.0
    %v1825 = vmax.f32 %v1801, 0.0
    %v1826 = vmax.f32 %v1803, 0.0
    %v1827 = vmax.f32 %v1807, 0.0
    %v1828 = vmax.f32 %v1809, 0.0
    %v1829 = vmax.f32 %v1811, 0.0
    %v1830 = vmax.f32 %v1813, 0.0
    %v1831 = vpack.c.bf16 %v1817, %v1815
    %v1832 = vpack.c.bf16 %v1818, %v1816
    %v1833 = vpack.c.bf16 %v1821, %v1819
    %v1834 = vpack.c.bf16 %v1822, %v1820
    %v1835 = vpack.c.bf16 %v1825, %v1823
    %v1836 = vpack.c.bf16 %v1826, %v1824
    %v1837 = vpack.c.bf16 %v1829, %v1827
    %v1838 = vpack.c.bf16 %v1830, %v1828
    %v1839 = vld [vmem:[%s4] sm:$0xf]
    %v1840 = vld [vmem:[%s4 + $0x4] sm:$0xf]
    %v1841 = vld [vmem:[%s4 + $0x8] sm:$0xf]
    %v1842 = vld [vmem:[%s4 + $0xc] sm:$0xf]
    %v1843 = vld [vmem:[%s4 + $0x10] sm:$0xf]
    %v1844 = vld [vmem:[%s4 + $0x14] sm:$0xf]
    %v1845 = vld [vmem:[%s4 + $0x18] sm:$0xf]
    %v1846 = vld [vmem:[%s4 + $0x1c] sm:$0xf]
    %v1847 = vld [vmem:[%s4 + $0x20] sm:$0xf]
    %v1848 = vld [vmem:[%s4 + $0x24] sm:$0xf]
    %v1849 = vld [vmem:[%s4 + $0x28] sm:$0xf]
    %v1850 = vld [vmem:[%s4 + $0x2c] sm:$0xf]
    %v1851 = vld [vmem:[%s4 + $0x30] sm:$0xf]
    %v1852 = vld [vmem:[%s4 + $0x34] sm:$0xf]
    %v1853 = vld [vmem:[%s4 + $0x38] sm:$0xf]
    %v1854 = vld [vmem:[%s4 + $0x3c] sm:$0xf]
    %v1855 = vld [vmem:[%s4 + $0x40] sm:$0xf]
    %v1856 = vld [vmem:[%s4 + $0x44] sm:$0xf]
    %v1857 = vld [vmem:[%s4 + $0x48] sm:$0xf]
    %v1858 = vld [vmem:[%s4 + $0x4c] sm:$0xf]
    %v1859 = vld [vmem:[%s4 + $0x50] sm:$0xf]
    %v1860 = vld [vmem:[%s4 + $0x54] sm:$0xf]
    %v1861 = vld [vmem:[%s4 + $0x58] sm:$0xf]
    %v1862 = vld [vmem:[%s4 + $0x5c] sm:$0xf]
    %v1863 = vld [vmem:[%s4 + $0x60] sm:$0xf]
    %v1864 = vld [vmem:[%s4 + $0x64] sm:$0xf]
    %v1865 = vld [vmem:[%s4 + $0x68] sm:$0xf]
    %v1866 = vld [vmem:[%s4 + $0x6c] sm:$0xf]
    %v1867 = vld [vmem:[%s4 + $0x70] sm:$0xf]
    %v1868 = vld [vmem:[%s4 + $0x74] sm:$0xf]
    %v1869 = vld [vmem:[%s4 + $0x78] sm:$0xf]
    %v1870 = vld [vmem:[%s4 + $0x7c] sm:$0xf]
    %v1871 = vld [vmem:[%s8] sm:$0x1]
    %v1873 = vlaneseq
    %v1874 = vshrl.u32 %v1873, 7
    %v1875 = vsub.s32 0, %v1874
    %v1876 = vrot.slane %v1871, %v1875
    %v1910 = vunpack.c.l.b16 %v1839
    %v1911 = vunpack.c.l.b16 %v1840
    %v1912 = vunpack.c.l.b16 %v1841
    %v1913 = vunpack.c.l.b16 %v1842
    %v1914 = vunpack.c.l.b16 %v1843
    %v1915 = vunpack.c.l.b16 %v1844
    %v1916 = vunpack.c.l.b16 %v1845
    %v1917 = vunpack.c.l.b16 %v1846
    %v1918 = vunpack.c.l.b16 %v1847
    %v1919 = vunpack.c.l.b16 %v1848
    %v1920 = vunpack.c.l.b16 %v1849
    %v1921 = vunpack.c.l.b16 %v1850
    %v1922 = vunpack.c.l.b16 %v1851
    %v1923 = vunpack.c.l.b16 %v1852
    %v1924 = vunpack.c.l.b16 %v1853
    %v1925 = vunpack.c.l.b16 %v1854
    %v1926 = vunpack.c.l.b16 %v1855
    %v1927 = vunpack.c.l.b16 %v1856
    %v1928 = vunpack.c.l.b16 %v1857
    %v1929 = vunpack.c.l.b16 %v1858
    %v1930 = vunpack.c.l.b16 %v1859
    %v1931 = vunpack.c.l.b16 %v1860
    %v1932 = vunpack.c.l.b16 %v1861
    %v1933 = vunpack.c.l.b16 %v1862
    %v1934 = vunpack.c.l.b16 %v1863
    %v1935 = vunpack.c.l.b16 %v1864
    %v1936 = vunpack.c.l.b16 %v1865
    %v1937 = vunpack.c.l.b16 %v1866
    %v1938 = vunpack.c.l.b16 %v1867
    %v1939 = vunpack.c.l.b16 %v1868
    %v1940 = vunpack.c.l.b16 %v1869
    %v1941 = vunpack.c.l.b16 %v1870
    %v1942 = vpack.c.b16 %v1911, %v1910
    %v1943 = vpack.c.b16 %v1913, %v1912
    %v1944 = vpack.c.b16 %v1915, %v1914
    %v1945 = vpack.c.b16 %v1917, %v1916
    %v1946 = vpack.c.b16 %v1919, %v1918
    %v1947 = vpack.c.b16 %v1921, %v1920
    %v1948 = vpack.c.b16 %v1923, %v1922
    %v1949 = vpack.c.b16 %v1925, %v1924
    %v1950 = vpack.c.b16 %v1927, %v1926
    %v1951 = vpack.c.b16 %v1929, %v1928
    %v1952 = vpack.c.b16 %v1931, %v1930
    %v1953 = vpack.c.b16 %v1933, %v1932
    %v1954 = vpack.c.b16 %v1935, %v1934
    %v1955 = vpack.c.b16 %v1937, %v1936
    %v1956 = vpack.c.b16 %v1939, %v1938
    %v1957 = vpack.c.b16 %v1941, %v1940
    %1974 = vmatprep.subr.bf16.mxu0 0
    %1975 = vmatpush1.bf16.msra.mxu0 %v1942
    %1976 = vmatprep.subr.bf16.mxu0 0
    %1977 = vmatpush1.bf16.msra.mxu0 %v1943
    %1978 = vmatprep.subr.bf16.mxu0 0
    %1979 = vmatpush1.bf16.msra.mxu0 %v1944
    %1980 = vmatprep.subr.bf16.mxu0 0
    %1981 = vmatpush1.bf16.msra.mxu0 %v1945
    %1982 = vmatprep.subr.bf16.mxu0 0
    %1983 = vmatpush1.bf16.msra.mxu0 %v1946
    %1984 = vmatprep.subr.bf16.mxu0 0
    %1985 = vmatpush1.bf16.msra.mxu0 %v1947
    %1986 = vmatprep.subr.bf16.mxu0 0
    %1987 = vmatpush1.bf16.msra.mxu0 %v1948
    %1988 = vmatprep.subr.bf16.mxu0 0
    %1989 = vmatpush1.bf16.msra.mxu0 %v1949
    %1990 = vmatprep.subr.bf16.mxu0 0
    %1991 = vmatpush1.bf16.msra.mxu0 %v1950
    %1992 = vmatprep.subr.bf16.mxu0 0
    %1993 = vmatpush1.bf16.msra.mxu0 %v1951
    %1994 = vmatprep.subr.bf16.mxu0 0
    %1995 = vmatpush1.bf16.msra.mxu0 %v1952
    %1996 = vmatprep.subr.bf16.mxu0 0
    %1997 = vmatpush1.bf16.msra.mxu0 %v1953
    %1998 = vmatprep.subr.bf16.mxu0 0
    %1999 = vmatpush1.bf16.msra.mxu0 %v1954
    %2000 = vmatprep.subr.bf16.mxu0 0
    %2001 = vmatpush1.bf16.msra.mxu0 %v1955
    %2002 = vmatprep.subr.bf16.mxu0 0
    %2003 = vmatpush1.bf16.msra.mxu0 %v1956
    %2004 = vmatprep.subr.bf16.mxu0 0
    %2005 = vmatpush1.bf16.msra.mxu0 %v1957
    %2006 = vmatprep.mubr.bf16.mxu0 %v1832
    %2007 = vmatmul.mubr.bf16.gmra.mrb[0].mxu0 %v1831
    %v2008 = vpop.f32.mrb[0].mxu0
    %v2009 = vadd.f32 %v1876, %v2008
    %v2010 = vpop.f32.mrb[0].mxu0
    %v2011 = vpop.f32.mrb[0].mxu0
    %v2012 = vadd.f32 %v1876, %v2011
    %v2013 = vpop.f32.mrb[0].mxu0
    %2014 = vmatprep.mubr.bf16.mxu0 %v1834
    %2015 = vmatmul.mubr.bf16.gmra.mrb[0].mxu0 %v1833
    %v2016 = vpop.f32.mrb[0].mxu0
    %v2017 = vadd.f32 %v1876, %v2016
    %v2018 = vpop.f32.mrb[0].mxu0
    %v2019 = vpop.f32.mrb[0].mxu0
    %v2020 = vadd.f32 %v1876, %v2019
    %v2021 = vpop.f32.mrb[0].mxu0
    %2022 = vmatprep.mubr.bf16.mxu0 %v1836
    %2023 = vmatmul.mubr.bf16.gmra.mrb[0].mxu0 %v1835
    %v2024 = vpop.f32.mrb[0].mxu0
    %v2025 = vadd.f32 %v1876, %v2024
    %v2026 = vpop.f32.mrb[0].mxu0
    %v2027 = vpop.f32.mrb[0].mxu0
    %v2028 = vadd.f32 %v1876, %v2027
    %v2029 = vpop.f32.mrb[0].mxu0
    %2030 = vmatprep.mubr.bf16.mxu0 %v1838
    %2031 = vmatmul.mubr.bf16.gmra.mrb[0].mxu0 %v1837
    %v2032 = vpop.f32.mrb[0].mxu0
    %v2033 = vadd.f32 %v1876, %v2032
    %v2034 = vpop.f32.mrb[0].mxu0
    %v2035 = vpop.f32.mrb[0].mxu0
    %v2036 = vadd.f32 %v1876, %v2035
    %v2037 = vpop.f32.mrb[0].mxu0
    %2038 = vdwg.mxu0
    %2039 = vst [vmem:[%s9] sm:$0xff] %v2009
    %2040 = vst [vmem:[%s9 + $0x8] sm:$0xff] %v2012
    %2041 = vst [vmem:[%s9 + $0x10] sm:$0xff] %v2017
    %2042 = vst [vmem:[%s9 + $0x18] sm:$0xff] %v2020
    %2043 = vst [vmem:[%s9 + $0x20] sm:$0xff] %v2025
    %2044 = vst [vmem:[%s9 + $0x28] sm:$0xff] %v2028
    %2045 = vst [vmem:[%s9 + $0x30] sm:$0xff] %v2033
    %2046 = vst [vmem:[%s9 + $0x38] sm:$0xff] %v2036
    // Predicated region
    $region46: #{adjustable_nn_forward.1} parent=1 // pred_check
      _
    $region47: #{adjustable_nn_forward.1} parent=1 // pred_check_branch
      %2048 = sbr.rel (0) target = $region49
    $region48: #{adjustable_nn_forward.1} parent=1 // pred_region
      _
    $region49: #{adjustable_nn_forward.1} parent=1 // pred_fallthru
      _
    // Predicated region
    $region50: #{adjustable_nn_forward.1} parent=1 // pred_check
      _
    $region51: #{adjustable_nn_forward.1} parent=1 // pred_check_branch
      %2050 = sbr.rel (0) target = $region53
    $region52: #{adjustable_nn_forward.1} parent=1 // pred_region
      _
    $region53: #{adjustable_nn_forward.1} parent=1 // pred_fallthru
      _
    %2051 = vsyncpa [#allocation3], 1
    %2052 = vsyncpa [#allocation5], 1

// kernel: adjustable_nn_forward.1
$region0: #{adjustable_nn_forward.1}
  #allocation0 [shape = 'u32[]', space=smem, size = 0x4, offset = 0x4, fixed_abs, tag = 'smem constant byte address 0x4 - core index']
  #allocation1 [shape = 'u32[144,128]{1,0:T(1,128)}', space=vmem, size = 0x12000, scoped, tag = 'internal scratch']
  %s0 = inlined_call_operand.vmem [shape: bf16[64,896], index: 0, kind: input, shape index: {}]
  %s1 = inlined_call_operand.vmem [shape: bf16[896,256], index: 1, kind: input, shape index: {}]
  %s2 = inlined_call_operand.hbm [shape: bf16[256,256], index: 2, kind: input, shape index: {}]
  %s3 = inlined_call_operand.hbm [shape: bf16[256,256], index: 3, kind: input, shape index: {}]
  %s4 = inlined_call_operand.vmem [shape: bf16[256,128], index: 4, kind: input, shape index: {}]
  %s5 = inlined_call_operand.vmem [shape: f32[1,256], index: 5, kind: input, shape index: {}]
  %s6 = inlined_call_operand.vmem [shape: f32[1,256], index: 6, kind: input, shape index: {}]
  %s7 = inlined_call_operand.vmem [shape: f32[1,256], index: 7, kind: input, shape index: {}]
  %s8 = inlined_call_operand.vmem [shape: f32[1,128], index: 8, kind: input, shape index: {}]
  %s9 = inlined_call_operand.vmem [shape: f32[64,128], index: 9, kind: output, shape index: {}]
  %s10 = sld [smem:[#allocation0]]
  $region54: #{adjustable_nn_forward.1} parent=0
    _
  %s12 = ssub.s32 1, %s10
  %s13 = scalar_select 0, %s12, %s10
  $region1: #{adjustable_nn_forward.1} parent=0
    #allocation2 [shape = 'u8[131072]{0}', space=vmem, size = 0x20000, scoped, tag = 'input window, operand 2, single buffered']
    #allocation3 [shape = 's32[1]{0}', space=sflag, size = 0x4, scoped, tag = 'scoped memory for adjustable_nn_forward.1']
    #allocation4 [shape = 'u8[131072]{0}', space=vmem, size = 0x20000, scoped, tag = 'input window, operand 3, single buffered']
    #allocation5 [shape = 's32[1]{0}', space=sflag, size = 0x4, scoped, tag = 'scoped memory for adjustable_nn_forward.1']
    %14 = vsyncpa [#allocation3], 0
    %15 = vsyncpa [#allocation5], 0
    // Predicated region
    $region2: #{adjustable_nn_forward.1} parent=1 // pred_check
      _
    $region3: #{adjustable_nn_forward.1} parent=1 // pred_check_branch
      %17 = sbr.rel (0) target = $region5
    $region4: #{adjustable_nn_forward.1} parent=1 // pred_region
      _
    $region5: #{adjustable_nn_forward.1} parent=1 // pred_fallthru
      _
    // Predicated region
    $region6: #{adjustable_nn_forward.1} parent=1 // pred_check
      _
    $region7: #{adjustable_nn_forward.1} parent=1 // pred_check_branch
      %19 = sbr.rel (0) target = $region9
    $region8: #{adjustable_nn_forward.1} parent=1 // pred_region
      _
    $region9: #{adjustable_nn_forward.1} parent=1 // pred_fallthru
      _
    // Predicated region
    $region10: #{adjustable_nn_forward.1} parent=1 // pred_check
      _
    $region11: #{adjustable_nn_forward.1} parent=1 // pred_check_branch
      %21 = sbr.rel (0) target = $region13
    $region12: #{adjustable_nn_forward.1} parent=1 // pred_region
      %s23 = ssub.s32 4096, 4096
      %24 = vsyncadd [#allocation3], %s23
      %s25 = sshll.u32 [#allocation2], 4
      %s26 = int_to_ptr.vmem [resolvable:$true] %s25
      %31 = dma.hbm_to_vmem [thread:$0]  %s2, 4096, %s26, [#allocation3], 128, 128, 8
    $region13: #{adjustable_nn_forward.1} parent=1 // pred_fallthru
      _
    // Predicated region
    $region14: #{adjustable_nn_forward.1} parent=1 // pred_check
      _
    $region15: #{adjustable_nn_forward.1} parent=1 // pred_check_branch
      %33 = sbr.rel (0) target = $region17
    $region16: #{adjustable_nn_forward.1} parent=1 // pred_region
      %s35 = ssub.s32 4096, 4096
      %36 = vsyncadd [#allocation5], %s35
      %s37 = sshll.u32 [#allocation4], 4
      %s38 = int_to_ptr.vmem [resolvable:$true] %s37
      %43 = dma.hbm_to_vmem [thread:$0]  %s3, 4096, %s38, [#allocation5], 128, 128, 8
    $region17: #{adjustable_nn_forward.1} parent=1 // pred_fallthru
      _
    // Predicated region
    $region18: #{adjustable_nn_forward.1} parent=1 // pred_check
      _
    $region19: #{adjustable_nn_forward.1} parent=1 // pred_check_branch
      %45 = sbr.rel (0) target = $region21
    $region20: #{adjustable_nn_forward.1} parent=1 // pred_region
      _
    $region21: #{adjustable_nn_forward.1} parent=1 // pred_fallthru
      _
    // Predicated region
    $region22: #{adjustable_nn_forward.1} parent=1 // pred_check
      _
    $region23: #{adjustable_nn_forward.1} parent=1 // pred_check_branch
      %47 = sbr.rel (0) target = $region25
    $region24: #{adjustable_nn_forward.1} parent=1 // pred_region
      _
    $region25: #{adjustable_nn_forward.1} parent=1 // pred_fallthru
      _
    // Predicated region
    $region26: #{adjustable_nn_forward.1} parent=1 // pred_check
      _
    $region27: #{adjustable_nn_forward.1} parent=1 // pred_check_branch
      %49 = sbr.rel (0) target = $region29
    $region28: #{adjustable_nn_forward.1} parent=1 // pred_region
      _
    $region29: #{adjustable_nn_forward.1} parent=1 // pred_fallthru
      _
    // Predicated region
    $region30: #{adjustable_nn_forward.1} parent=1 // pred_check
      _
    $region31: #{adjustable_nn_forward.1} parent=1 // pred_check_branch
      %51 = sbr.rel (0) target = $region33
    $region32: #{adjustable_nn_forward.1} parent=1 // pred_region
      _
    $region33: #{adjustable_nn_forward.1} parent=1 // pred_fallthru
      _
    // Predicated region
    $region34: #{adjustable_nn_forward.1} parent=1 // pred_check
      _
    $region35: #{adjustable_nn_forward.1} parent=1 // pred_check_branch
      %53 = sbr.rel (0) target = $region37
    $region36: #{adjustable_nn_forward.1} parent=1 // pred_region
      _
    $region37: #{adjustable_nn_forward.1} parent=1 // pred_fallthru
      _
    // Predicated region
    $region38: #{adjustable_nn_forward.1} parent=1 // pred_check
      _
    $region39: #{adjustable_nn_forward.1} parent=1 // pred_check_branch
      %55 = sbr.rel (0) target = $region41
    $region40: #{adjustable_nn_forward.1} parent=1 // pred_region
      %56 = dma.done [#allocation3], 4096
    $region41: #{adjustable_nn_forward.1} parent=1 // pred_fallthru
      _
    // Predicated region
    $region42: #{adjustable_nn_forward.1} parent=1 // pred_check
      _
    $region43: #{adjustable_nn_forward.1} parent=1 // pred_check_branch
      %58 = sbr.rel (0) target = $region45
    $region44: #{adjustable_nn_forward.1} parent=1 // pred_region
      %59 = dma.done [#allocation5], 4096
    $region45: #{adjustable_nn_forward.1} parent=1 // pred_fallthru
      _
    %v61 = vld [vmem:[%s0] sm:$0xff]
    %v62 = vld [vmem:[%s0 + $0x8] sm:$0xff]
    %v63 = vld [vmem:[%s0 + $0x10] sm:$0xff]
    %v64 = vld [vmem:[%s0 + $0x18] sm:$0xf]
    %v65 = vld [vmem:[%s0 + $0x1c] sm:$0xff]
    %v66 = vld [vmem:[%s0 + $0x24] sm:$0xff]
    %v67 = vld [vmem:[%s0 + $0x2c] sm:$0xff]
    %v68 = vld [vmem:[%s0 + $0x34] sm:$0xf]
    %v69 = vld [vmem:[%s0 + $0x38] sm:$0xff]
    %v70 = vld [vmem:[%s0 + $0x40] sm:$0xff]
    %v71 = vld [vmem:[%s0 + $0x48] sm:$0xff]
    %v72 = vld [vmem:[%s0 + $0x50] sm:$0xf]
    %v73 = vld [vmem:[%s0 + $0x54] sm:$0xff]
    %v74 = vld [vmem:[%s0 + $0x5c] sm:$0xff]
    %v75 = vld [vmem:[%s0 + $0x64] sm:$0xff]
    %v76 = vld [vmem:[%s0 + $0x6c] sm:$0xf]
    %v77 = vld [vmem:[%s0 + $0x70] sm:$0xff]
    %v78 = vld [vmem:[%s0 + $0x78] sm:$0xff]
    %v79 = vld [vmem:[%s0 + $0x80] sm:$0xff]
    %v80 = vld [vmem:[%s0 + $0x88] sm:$0xf]
    %v81 = vld [vmem:[%s0 + $0x8c] sm:$0xff]
    %v82 = vld [vmem:[%s0 + $0x94] sm:$0xff]
    %v83 = vld [vmem:[%s0 + $0x9c] sm:$0xff]
    %v84 = vld [vmem:[%s0 + $0xa4] sm:$0xf]
    %v85 = vld [vmem:[%s0 + $0xa8] sm:$0xff]
    %v86 = vld [vmem:[%s0 + $0xb0] sm:$0xff]
    %v87 = vld [vmem:[%s0 + $0xb8] sm:$0xff]
    %v88 = vld [vmem:[%s0 + $0xc0] sm:$0xf]
    %v89 = vld [vmem:[%s0 + $0xc4] sm:$0xff]
    %v90 = vld [vmem:[%s0 + $0xcc] sm:$0xff]
    %v91 = vld [vmem:[%s0 + $0xd4] sm:$0xff]
    %v92 = vld [vmem:[%s0 + $0xdc] sm:$0xf]
    %v93 = vld [vmem:[%s1] sm:$0xff]
    %v94 = vld [vmem:[%s1 + $0x8] sm:$0xff]
    %v95 = vld [vmem:[%s1 + $0x10] sm:$0xff]
    %v96 = vld [vmem:[%s1 + $0x18] sm:$0xff]
    %v97 = vld [vmem:[%s1 + $0x20] sm:$0xff]
    %v98 = vld [vmem:[%s1 + $0x28] sm:$0xff]
    %v99 = vld [vmem:[%s1 + $0x30] sm:$0xff]
    %v100 = vld [vmem:[%s1 + $0x38] sm:$0xff]
    %v101 = vld [vmem:[%s1 + $0x40] sm:$0xff]
    %v102 = vld [vmem:[%s1 + $0x48] sm:$0xff]
    %v103 = vld [vmem:[%s1 + $0x50] sm:$0xff]
    %v104 = vld [vmem:[%s1 + $0x58] sm:$0xff]
    %v105 = vld [vmem:[%s1 + $0x60] sm:$0xff]
    %v106 = vld [vmem:[%s1 + $0x68] sm:$0xff]
    %v107 = vld [vmem:[%s1 + $0x70] sm:$0xff]
    %v108 = vld [vmem:[%s1 + $0x78] sm:$0xff]
    %v109 = vld [vmem:[%s1 + $0x80] sm:$0xff]
    %v110 = vld [vmem:[%s1 + $0x88] sm:$0xff]
    %v111 = vld [vmem:[%s1 + $0x90] sm:$0xff]
    %v112 = vld [vmem:[%s1 + $0x98] sm:$0xff]
    %v113 = vld [vmem:[%s1 + $0xa0] sm:$0xff]
    %v114 = vld [vmem:[%s1 + $0xa8] sm:$0xff]
    %v115 = vld [vmem:[%s1 + $0xb0] sm:$0xff]
    %v116 = vld [vmem:[%s1 + $0xb8] sm:$0xff]
    %v117 = vld [vmem:[%s1 + $0xc0] sm:$0xff]
    %v118 = vld [vmem:[%s1 + $0xc8] sm:$0xff]
    %v119 = vld [vmem:[%s1 + $0xd0] sm:$0xff]
    %v120 = vld [vmem:[%s1 + $0xd8] sm:$0xff]
    %v121 = vld [vmem:[%s1 + $0xe0] sm:$0xff]
    %v122 = vld [vmem:[%s1 + $0xe8] sm:$0xff]
    %v123 = vld [vmem:[%s1 + $0xf0] sm:$0xff]
    %v124 = vld [vmem:[%s1 + $0xf8] sm:$0xff]
    %v125 = vld [vmem:[%s1 + $0x100] sm:$0xff]
    %v126 = vld [vmem:[%s1 + $0x108] sm:$0xff]
    %v127 = vld [vmem:[%s1 + $0x110] sm:$0xff]
    %v128 = vld [vmem:[%s1 + $0x118] sm:$0xff]
    %v129 = vld [vmem:[%s1 + $0x120] sm:$0xff]
    %v130 = vld [vmem:[%s1 + $0x128] sm:$0xff]
    %v131 = vld [vmem:[%s1 + $0x130] sm:$0xff]
    %v132 = vld [vmem:[%s1 + $0x138] sm:$0xff]
    %v133 = vld [vmem:[%s1 + $0x140] sm:$0xff]
    %v134 = vld [vmem:[%s1 + $0x148] sm:$0xff]
    %v135 = vld [vmem:[%s1 + $0x150] sm:$0xff]
    %v136 = vld [vmem:[%s1 + $0x158] sm:$0xff]
    %v137 = vld [vmem:[%s1 + $0x160] sm:$0xff]
    %v138 = vld [vmem:[%s1 + $0x168] sm:$0xff]
    %v139 = vld [vmem:[%s1 + $0x170] sm:$0xff]
    %v140 = vld [vmem:[%s1 + $0x178] sm:$0xff]
    %v141 = vld [vmem:[%s1 + $0x180] sm:$0xff]
    %v142 = vld [vmem:[%s1 + $0x188] sm:$0xff]
    %v143 = vld [vmem:[%s1 + $0x190] sm:$0xff]
    %v144 = vld [vmem:[%s1 + $0x198] sm:$0xff]
    %v145 = vld [vmem:[%s1 + $0x1a0] sm:$0xff]
    %v146 = vld [vmem:[%s1 + $0x1a8] sm:$0xff]
    %v147 = vld [vmem:[%s1 + $0x1b0] sm:$0xff]
    %v148 = vld [vmem:[%s1 + $0x1b8] sm:$0xff]
    %v149 = vld [vmem:[%s1 + $0x1c0] sm:$0xff]
    %v150 = vld [vmem:[%s1 + $0x1c8] sm:$0xff]
    %v151 = vld [vmem:[%s1 + $0x1d0] sm:$0xff]
    %v152 = vld [vmem:[%s1 + $0x1d8] sm:$0xff]
    %v153 = vld [vmem:[%s1 + $0x1e0] sm:$0xff]
    %v154 = vld [vmem:[%s1 + $0x1e8] sm:$0xff]
    %v155 = vld [vmem:[%s1 + $0x1f0] sm:$0xff]
    %v156 = vld [vmem:[%s1 + $0x1f8] sm:$0xff]
    %v157 = vld [vmem:[%s1 + $0x200] sm:$0xff]
    %v158 = vld [vmem:[%s1 + $0x208] sm:$0xff]
    %v159 = vld [vmem:[%s1 + $0x210] sm:$0xff]
    %v160 = vld [vmem:[%s1 + $0x218] sm:$0xff]
    %v161 = vld [vmem:[%s1 + $0x220] sm:$0xff]
    %v162 = vld [vmem:[%s1 + $0x228] sm:$0xff]
    %v163 = vld [vmem:[%s1 + $0x230] sm:$0xff]
    %v164 = vld [vmem:[%s1 + $0x238] sm:$0xff]
    %v165 = vld [vmem:[%s1 + $0x240] sm:$0xff]
    %v166 = vld [vmem:[%s1 + $0x248] sm:$0xff]
    %v167 = vld [vmem:[%s1 + $0x250] sm:$0xff]
    %v168 = vld [vmem:[%s1 + $0x258] sm:$0xff]
    %v169 = vld [vmem:[%s1 + $0x260] sm:$0xff]
    %v170 = vld [vmem:[%s1 + $0x268] sm:$0xff]
    %v171 = vld [vmem:[%s1 + $0x270] sm:$0xff]
    %v172 = vld [vmem:[%s1 + $0x278] sm:$0xff]
    %v173 = vld [vmem:[%s1 + $0x280] sm:$0xff]
    %v174 = vld [vmem:[%s1 + $0x288] sm:$0xff]
    %v175 = vld [vmem:[%s1 + $0x290] sm:$0xff]
    %v176 = vld [vmem:[%s1 + $0x298] sm:$0xff]
    %v177 = vld [vmem:[%s1 + $0x2a0] sm:$0xff]
    %v178 = vld [vmem:[%s1 + $0x2a8] sm:$0xff]
    %v179 = vld [vmem:[%s1 + $0x2b0] sm:$0xff]
    %v180 = vld [vmem:[%s1 + $0x2b8] sm:$0xff]
    %v181 = vld [vmem:[%s1 + $0x2c0] sm:$0xff]
    %v182 = vld [vmem:[%s1 + $0x2c8] sm:$0xff]
    %v183 = vld [vmem:[%s1 + $0x2d0] sm:$0xff]
    %v184 = vld [vmem:[%s1 + $0x2d8] sm:$0xff]
    %v185 = vld [vmem:[%s1 + $0x2e0] sm:$0xff]
    %v186 = vld [vmem:[%s1 + $0x2e8] sm:$0xff]
    %v187 = vld [vmem:[%s1 + $0x2f0] sm:$0xff]
    %v188 = vld [vmem:[%s1 + $0x2f8] sm:$0xff]
    %v189 = vld [vmem:[%s1 + $0x300] sm:$0xff]
    %v190 = vld [vmem:[%s1 + $0x308] sm:$0xff]
    %v191 = vld [vmem:[%s1 + $0x310] sm:$0xff]
    %v192 = vld [vmem:[%s1 + $0x318] sm:$0xff]
    %v193 = vld [vmem:[%s1 + $0x320] sm:$0xff]
    %v194 = vld [vmem:[%s1 + $0x328] sm:$0xff]
    %v195 = vld [vmem:[%s1 + $0x330] sm:$0xff]
    %v196 = vld [vmem:[%s1 + $0x338] sm:$0xff]
    %v197 = vld [vmem:[%s1 + $0x340] sm:$0xff]
    %v198 = vld [vmem:[%s1 + $0x348] sm:$0xff]
    %v199 = vld [vmem:[%s1 + $0x350] sm:$0xff]
    %v200 = vld [vmem:[%s1 + $0x358] sm:$0xff]
    %v201 = vld [vmem:[%s1 + $0x360] sm:$0xff]
    %v202 = vld [vmem:[%s1 + $0x368] sm:$0xff]
    %v203 = vld [vmem:[%s1 + $0x370] sm:$0xff]
    %v204 = vld [vmem:[%s1 + $0x378] sm:$0xff]
    %v205 = vld [vmem:[%s5] sm:$0x3]
    %v207 = vlaneseq
    %v208 = vshrl.u32 %v207, 7
    %v209 = vsub.s32 0, %v208
    %v210 = vrot.slane %v205, %v209
    %v211 = vlaneseq
    %v212 = vshrl.u32 %v211, 7
    %v213 = vsub.s32 1, %v212
    %v214 = vrot.slane %v205, %v213
    %v249 = vunpack.c.l.b16 %v61
    %v250 = vunpack.c.h.b16 %v61
    %v251 = vunpack.c.l.b16 %v62
    %v252 = vunpack.c.h.b16 %v62
    %v253 = vunpack.c.l.b16 %v63
    %v254 = vunpack.c.h.b16 %v63
    %v255 = vunpack.c.l.b16 %v64
    %v256 = vunpack.c.l.b16 %v65
    %v257 = vunpack.c.h.b16 %v65
    %v258 = vunpack.c.l.b16 %v66
    %v259 = vunpack.c.h.b16 %v66
    %v260 = vunpack.c.l.b16 %v67
    %v261 = vunpack.c.h.b16 %v67
    %v262 = vunpack.c.l.b16 %v68
    %v263 = vunpack.c.l.b16 %v69
    %v264 = vunpack.c.h.b16 %v69
    %v265 = vunpack.c.l.b16 %v70
    %v266 = vunpack.c.h.b16 %v70
    %v267 = vunpack.c.l.b16 %v71
    %v268 = vunpack.c.h.b16 %v71
    %v269 = vunpack.c.l.b16 %v72
    %v270 = vunpack.c.l.b16 %v73
    %v271 = vunpack.c.h.b16 %v73
    %v272 = vunpack.c.l.b16 %v74
    %v273 = vunpack.c.h.b16 %v74
    %v274 = vunpack.c.l.b16 %v75
    %v275 = vunpack.c.h.b16 %v75
    %v276 = vunpack.c.l.b16 %v76
    %v277 = vunpack.c.l.b16 %v77
    %v278 = vunpack.c.h.b16 %v77
    %v279 = vunpack.c.l.b16 %v78
    %v280 = vunpack.c.h.b16 %v78
    %v281 = vunpack.c.l.b16 %v79
    %v282 = vunpack.c.h.b16 %v79
    %v283 = vunpack.c.l.b16 %v80
    %v284 = vunpack.c.l.b16 %v81
    %v285 = vunpack.c.h.b16 %v81
    %v286 = vunpack.c.l.b16 %v82
    %v287 = vunpack.c.h.b16 %v82
    %v288 = vunpack.c.l.b16 %v83
    %v289 = vunpack.c.h.b16 %v83
    %v290 = vunpack.c.l.b16 %v84
    %v291 = vunpack.c.l.b16 %v85
    %v292 = vunpack.c.h.b16 %v85
    %v293 = vunpack.c.l.b16 %v86
    %v294 = vunpack.c.h.b16 %v86
    %v295 = vunpack.c.l.b16 %v87
    %v296 = vunpack.c.h.b16 %v87
    %v297 = vunpack.c.l.b16 %v88
    %v298 = vunpack.c.l.b16 %v89
    %v299 = vunpack.c.h.b16 %v89
    %v300 = vunpack.c.l.b16 %v90
    %v301 = vunpack.c.h.b16 %v90
    %v302 = vunpack.c.l.b16 %v91
    %v303 = vunpack.c.h.b16 %v91
    %v304 = vunpack.c.l.b16 %v92
    %v305 = vpack.c.b16 %v256, %v249
    %v306 = vpack.c.b16 %v257, %v250
    %v307 = vpack.c.b16 %v258, %v251
    %v308 = vpack.c.b16 %v259, %v252
    %v309 = vpack.c.b16 %v260, %v253
    %v310 = vpack.c.b16 %v261, %v254
    %v311 = vpack.c.b16 %v262, %v255
    %v312 = vpack.c.b16 %v270, %v263
    %v313 = vpack.c.b16 %v271, %v264
    %v314 = vpack.c.b16 %v272, %v265
    %v315 = vpack.c.b16 %v273, %v266
    %v316 = vpack.c.b16 %v274, %v267
    %v317 = vpack.c.b16 %v275, %v268
    %v318 = vpack.c.b16 %v276, %v269
    %v319 = vpack.c.b16 %v284, %v277
    %v320 = vpack.c.b16 %v285, %v278
    %v321 = vpack.c.b16 %v286, %v279
    %v322 = vpack.c.b16 %v287, %v280
    %v323 = vpack.c.b16 %v288, %v281
    %v324 = vpack.c.b16 %v289, %v282
    %v325 = vpack.c.b16 %v290, %v283
    %v326 = vpack.c.b16 %v298, %v291
    %v327 = vpack.c.b16 %v299, %v292
    %v328 = vpack.c.b16 %v300, %v293
    %v329 = vpack.c.b16 %v301, %v294
    %v330 = vpack.c.b16 %v302, %v295
    %v331 = vpack.c.b16 %v303, %v296
    %v332 = vpack.c.b16 %v304, %v297
    %v473 = vunpack.c.l.b16 %v93
    %v474 = vunpack.c.h.b16 %v93
    %v475 = vunpack.c.l.b16 %v94
    %v476 = vunpack.c.h.b16 %v94
    %v477 = vunpack.c.l.b16 %v95
    %v478 = vunpack.c.h.b16 %v95
    %v479 = vunpack.c.l.b16 %v96
    %v480 = vunpack.c.h.b16 %v96
    %v481 = vunpack.c.l.b16 %v97
    %v482 = vunpack.c.h.b16 %v97
    %v483 = vunpack.c.l.b16 %v98
    %v484 = vunpack.c.h.b16 %v98
    %v485 = vunpack.c.l.b16 %v99
    %v486 = vunpack.c.h.b16 %v99
    %v487 = vunpack.c.l.b16 %v100
    %v488 = vunpack.c.h.b16 %v100
    %v489 = vunpack.c.l.b16 %v101
    %v490 = vunpack.c.h.b16 %v101
    %v491 = vunpack.c.l.b16 %v102
    %v492 = vunpack.c.h.b16 %v102
    %v493 = vunpack.c.l.b16 %v103
    %v494 = vunpack.c.h.b16 %v103
    %v495 = vunpack.c.l.b16 %v104
    %v496 = vunpack.c.h.b16 %v104
    %v497 = vunpack.c.l.b16 %v105
    %v498 = vunpack.c.h.b16 %v105
    %v499 = vunpack.c.l.b16 %v106
    %v500 = vunpack.c.h.b16 %v106
    %v501 = vunpack.c.l.b16 %v107
    %v502 = vunpack.c.h.b16 %v107
    %v503 = vunpack.c.l.b16 %v108
    %v504 = vunpack.c.h.b16 %v108
    %v505 = vunpack.c.l.b16 %v109
    %v506 = vunpack.c.h.b16 %v109
    %v507 = vunpack.c.l.b16 %v110
    %v508 = vunpack.c.h.b16 %v110
    %v509 = vunpack.c.l.b16 %v111
    %v510 = vunpack.c.h.b16 %v111
    %v511 = vunpack.c.l.b16 %v112
    %v512 = vunpack.c.h.b16 %v112
    %v513 = vunpack.c.l.b16 %v113
    %v514 = vunpack.c.h.b16 %v113
    %v515 = vunpack.c.l.b16 %v114
    %v516 = vunpack.c.h.b16 %v114
    %v517 = vunpack.c.l.b16 %v115
    %v518 = vunpack.c.h.b16 %v115
    %v519 = vunpack.c.l.b16 %v116
    %v520 = vunpack.c.h.b16 %v116
    %v521 = vunpack.c.l.b16 %v117
    %v522 = vunpack.c.h.b16 %v117
    %v523 = vunpack.c.l.b16 %v118
    %v524 = vunpack.c.h.b16 %v118
    %v525 = vunpack.c.l.b16 %v119
    %v526 = vunpack.c.h.b16 %v119
    %v527 = vunpack.c.l.b16 %v120
    %v528 = vunpack.c.h.b16 %v120
    %v529 = vunpack.c.l.b16 %v121
    %v530 = vunpack.c.h.b16 %v121
    %v531 = vunpack.c.l.b16 %v122
    %v532 = vunpack.c.h.b16 %v122
    %v533 = vunpack.c.l.b16 %v123
    %v534 = vunpack.c.h.b16 %v123
    %v535 = vunpack.c.l.b16 %v124
    %v536 = vunpack.c.h.b16 %v124
    %v537 = vunpack.c.l.b16 %v125
    %v538 = vunpack.c.h.b16 %v125
    %v539 = vunpack.c.l.b16 %v126
    %v540 = vunpack.c.h.b16 %v126
    %v541 = vunpack.c.l.b16 %v127
    %v542 = vunpack.c.h.b16 %v127
    %v543 = vunpack.c.l.b16 %v128
    %v544 = vunpack.c.h.b16 %v128
    %v545 = vunpack.c.l.b16 %v129
    %v546 = vunpack.c.h.b16 %v129
    %v547 = vunpack.c.l.b16 %v130
    %v548 = vunpack.c.h.b16 %v130
    %v549 = vunpack.c.l.b16 %v131
    %v550 = vunpack.c.h.b16 %v131
    %v551 = vunpack.c.l.b16 %v132
    %v552 = vunpack.c.h.b16 %v132
    %v553 = vunpack.c.l.b16 %v133
    %v554 = vunpack.c.h.b16 %v133
    %v555 = vunpack.c.l.b16 %v134
    %v556 = vunpack.c.h.b16 %v134
    %v557 = vunpack.c.l.b16 %v135
    %v558 = vunpack.c.h.b16 %v135
    %v559 = vunpack.c.l.b16 %v136
    %v560 = vunpack.c.h.b16 %v136
    %v561 = vunpack.c.l.b16 %v137
    %v562 = vunpack.c.h.b16 %v137
    %v563 = vunpack.c.l.b16 %v138
    %v564 = vunpack.c.h.b16 %v138
    %v565 = vunpack.c.l.b16 %v139
    %v566 = vunpack.c.h.b16 %v139
    %v567 = vunpack.c.l.b16 %v140
    %v568 = vunpack.c.h.b16 %v140
    %v569 = vunpack.c.l.b16 %v141
    %v570 = vunpack.c.h.b16 %v141
    %v571 = vunpack.c.l.b16 %v142
    %v572 = vunpack.c.h.b16 %v142
    %v573 = vunpack.c.l.b16 %v143
    %v574 = vunpack.c.h.b16 %v143
    %v575 = vunpack.c.l.b16 %v144
    %v576 = vunpack.c.h.b16 %v144
    %v577 = vunpack.c.l.b16 %v145
    %v578 = vunpack.c.h.b16 %v145
    %v579 = vunpack.c.l.b16 %v146
    %v580 = vunpack.c.h.b16 %v146
    %v581 = vunpack.c.l.b16 %v147
    %v582 = vunpack.c.h.b16 %v147
    %v583 = vunpack.c.l.b16 %v148
    %v584 = vunpack.c.h.b16 %v148
    %v585 = vunpack.c.l.b16 %v149
    %v586 = vunpack.c.h.b16 %v149
    %v587 = vunpack.c.l.b16 %v150
    %v588 = vunpack.c.h.b16 %v150
    %v589 = vunpack.c.l.b16 %v151
    %v590 = vunpack.c.h.b16 %v151
    %v591 = vunpack.c.l.b16 %v152
    %v592 = vunpack.c.h.b16 %v152
    %v593 = vunpack.c.l.b16 %v153
    %v594 = vunpack.c.h.b16 %v153
    %v595 = vunpack.c.l.b16 %v154
    %v596 = vunpack.c.h.b16 %v154
    %v597 = vunpack.c.l.b16 %v155
    %v598 = vunpack.c.h.b16 %v155
    %v599 = vunpack.c.l.b16 %v156
    %v600 = vunpack.c.h.b16 %v156
    %v601 = vunpack.c.l.b16 %v157
    %v602 = vunpack.c.h.b16 %v157
    %v603 = vunpack.c.l.b16 %v158
    %v604 = vunpack.c.h.b16 %v158
    %v605 = vunpack.c.l.b16 %v159
    %v606 = vunpack.c.h.b16 %v159
    %v607 = vunpack.c.l.b16 %v160
    %v608 = vunpack.c.h.b16 %v160
    %v609 = vunpack.c.l.b16 %v161
    %v610 = vunpack.c.h.b16 %v161
    %v611 = vunpack.c.l.b16 %v162
    %v612 = vunpack.c.h.b16 %v162
    %v613 = vunpack.c.l.b16 %v163
    %v614 = vunpack.c.h.b16 %v163
    %v615 = vunpack.c.l.b16 %v164
    %v616 = vunpack.c.h.b16 %v164
    %v617 = vunpack.c.l.b16 %v165
    %v618 = vunpack.c.h.b16 %v165
    %v619 = vunpack.c.l.b16 %v166
    %v620 = vunpack.c.h.b16 %v166
    %v621 = vunpack.c.l.b16 %v167
    %v622 = vunpack.c.h.b16 %v167
    %v623 = vunpack.c.l.b16 %v168
    %v624 = vunpack.c.h.b16 %v168
    %v625 = vunpack.c.l.b16 %v169
    %v626 = vunpack.c.h.b16 %v169
    %v627 = vunpack.c.l.b16 %v170
    %v628 = vunpack.c.h.b16 %v170
    %v629 = vunpack.c.l.b16 %v171
    %v630 = vunpack.c.h.b16 %v171
    %v631 = vunpack.c.l.b16 %v172
    %v632 = vunpack.c.h.b16 %v172
    %v633 = vunpack.c.l.b16 %v173
    %v634 = vunpack.c.h.b16 %v173
    %v635 = vunpack.c.l.b16 %v174
    %v636 = vunpack.c.h.b16 %v174
    %v637 = vunpack.c.l.b16 %v175
    %v638 = vunpack.c.h.b16 %v175
    %v639 = vunpack.c.l.b16 %v176
    %v640 = vunpack.c.h.b16 %v176
    %v641 = vunpack.c.l.b16 %v177
    %v642 = vunpack.c.h.b16 %v177
    %v643 = vunpack.c.l.b16 %v178
    %v644 = vunpack.c.h.b16 %v178
    %v645 = vunpack.c.l.b16 %v179
    %v646 = vunpack.c.h.b16 %v179
    %v647 = vunpack.c.l.b16 %v180
    %v648 = vunpack.c.h.b16 %v180
    %v649 = vunpack.c.l.b16 %v181
    %v650 = vunpack.c.h.b16 %v181
    %v651 = vunpack.c.l.b16 %v182
    %v652 = vunpack.c.h.b16 %v182
    %v653 = vunpack.c.l.b16 %v183
    %v654 = vunpack.c.h.b16 %v183
    %v655 = vunpack.c.l.b16 %v184
    %v656 = vunpack.c.h.b16 %v184
    %v657 = vunpack.c.l.b16 %v185
    %v658 = vunpack.c.h.b16 %v185
    %v659 = vunpack.c.l.b16 %v186
    %v660 = vunpack.c.h.b16 %v186
    %v661 = vunpack.c.l.b16 %v187
    %v662 = vunpack.c.h.b16 %v187
    %v663 = vunpack.c.l.b16 %v188
    %v664 = vunpack.c.h.b16 %v188
    %v665 = vunpack.c.l.b16 %v189
    %v666 = vunpack.c.h.b16 %v189
    %v667 = vunpack.c.l.b16 %v190
    %v668 = vunpack.c.h.b16 %v190
    %v669 = vunpack.c.l.b16 %v191
    %v670 = vunpack.c.h.b16 %v191
    %v671 = vunpack.c.l.b16 %v192
    %v672 = vunpack.c.h.b16 %v192
    %v673 = vunpack.c.l.b16 %v193
    %v674 = vunpack.c.h.b16 %v193
    %v675 = vunpack.c.l.b16 %v194
    %v676 = vunpack.c.h.b16 %v194
    %v677 = vunpack.c.l.b16 %v195
    %v678 = vunpack.c.h.b16 %v195
    %v679 = vunpack.c.l.b16 %v196
    %v680 = vunpack.c.h.b16 %v196
    %v681 = vunpack.c.l.b16 %v197
    %v682 = vunpack.c.h.b16 %v197
    %v683 = vunpack.c.l.b16 %v198
    %v684 = vunpack.c.h.b16 %v198
    %v685 = vunpack.c.l.b16 %v199
    %v686 = vunpack.c.h.b16 %v199
    %v687 = vunpack.c.l.b16 %v200
    %v688 = vunpack.c.h.b16 %v200
    %v689 = vunpack.c.l.b16 %v201
    %v690 = vunpack.c.h.b16 %v201
    %v691 = vunpack.c.l.b16 %v202
    %v692 = vunpack.c.h.b16 %v202
    %v693 = vunpack.c.l.b16 %v203
    %v694 = vunpack.c.h.b16 %v203
    %v695 = vunpack.c.l.b16 %v204
    %v696 = vunpack.c.h.b16 %v204
    %v697 = vpack.c.b16 %v475, %v473
    %v698 = vpack.c.b16 %v476, %v474
    %v699 = vpack.c.b16 %v479, %v477
    %v700 = vpack.c.b16 %v480, %v478
    %v701 = vpack.c.b16 %v483, %v481
    %v702 = vpack.c.b16 %v484, %v482
    %v703 = vpack.c.b16 %v487, %v485
    %v704 = vpack.c.b16 %v488, %v486
    %v705 = vpack.c.b16 %v491, %v489
    %v706 = vpack.c.b16 %v492, %v490
    %v707 = vpack.c.b16 %v495, %v493
    %v708 = vpack.c.b16 %v496, %v494
    %v709 = vpack.c.b16 %v499, %v497
    %v710 = vpack.c.b16 %v500, %v498
    %v711 = vpack.c.b16 %v503, %v501
    %v712 = vpack.c.b16 %v504, %v502
    %v713 = vpack.c.b16 %v507, %v505
    %v714 = vpack.c.b16 %v508, %v506
    %v715 = vpack.c.b16 %v511, %v509
    %v716 = vpack.c.b16 %v512, %v510
    %v717 = vpack.c.b16 %v515, %v513
    %v718 = vpack.c.b16 %v516, %v514
    %v719 = vpack.c.b16 %v519, %v517
    %v720 = vpack.c.b16 %v520, %v518
    %v721 = vpack.c.b16 %v523, %v521
    %v722 = vpack.c.b16 %v524, %v522
    %v723 = vpack.c.b16 %v527, %v525
    %v724 = vpack.c.b16 %v528, %v526
    %v725 = vpack.c.b16 %v531, %v529
    %v726 = vpack.c.b16 %v532, %v530
    %v727 = vpack.c.b16 %v535, %v533
    %v728 = vpack.c.b16 %v536, %v534
    %v729 = vpack.c.b16 %v539, %v537
    %v730 = vpack.c.b16 %v540, %v538
    %v731 = vpack.c.b16 %v543, %v541
    %v732 = vpack.c.b16 %v544, %v542
    %v733 = vpack.c.b16 %v547, %v545
    %v734 = vpack.c.b16 %v548, %v546
    %v735 = vpack.c.b16 %v551, %v549
    %v736 = vpack.c.b16 %v552, %v550
    %v737 = vpack.c.b16 %v555, %v553
    %v738 = vpack.c.b16 %v556, %v554
    %v739 = vpack.c.b16 %v559, %v557
    %v740 = vpack.c.b16 %v560, %v558
    %v741 = vpack.c.b16 %v563, %v561
    %v742 = vpack.c.b16 %v564, %v562
    %v743 = vpack.c.b16 %v567, %v565
    %v744 = vpack.c.b16 %v568, %v566
    %v745 = vpack.c.b16 %v571, %v569
    %v746 = vpack.c.b16 %v572, %v570
    %v747 = vpack.c.b16 %v575, %v573
    %v748 = vpack.c.b16 %v576, %v574
    %v749 = vpack.c.b16 %v579, %v577
    %v750 = vpack.c.b16 %v580, %v578
    %v751 = vpack.c.b16 %v583, %v581
    %v752 = vpack.c.b16 %v584, %v582
    %v753 = vpack.c.b16 %v587, %v585
    %v754 = vpack.c.b16 %v588, %v586
    %v755 = vpack.c.b16 %v591, %v589
    %v756 = vpack.c.b16 %v592, %v590
    %v757 = vpack.c.b16 %v595, %v593
    %v758 = vpack.c.b16 %v596, %v594
    %v759 = vpack.c.b16 %v599, %v597
    %v760 = vpack.c.b16 %v600, %v598
    %v761 = vpack.c.b16 %v603, %v601
    %v762 = vpack.c.b16 %v604, %v602
    %v763 = vpack.c.b16 %v607, %v605
    %v764 = vpack.c.b16 %v608, %v606
    %v765 = vpack.c.b16 %v611, %v609
    %v766 = vpack.c.b16 %v612, %v610
    %v767 = vpack.c.b16 %v615, %v613
    %v768 = vpack.c.b16 %v616, %v614
    %v769 = vpack.c.b16 %v619, %v617
    %v770 = vpack.c.b16 %v620, %v618
    %v771 = vpack.c.b16 %v623, %v621
    %v772 = vpack.c.b16 %v624, %v622
    %v773 = vpack.c.b16 %v627, %v625
    %v774 = vpack.c.b16 %v628, %v626
    %v775 = vpack.c.b16 %v631, %v629
    %v776 = vpack.c.b16 %v632, %v630
    %v777 = vpack.c.b16 %v635, %v633
    %v778 = vpack.c.b16 %v636, %v634
    %v779 = vpack.c.b16 %v639, %v637
    %v780 = vpack.c.b16 %v640, %v638
    %v781 = vpack.c.b16 %v643, %v641
    %v782 = vpack.c.b16 %v644, %v642
    %v783 = vpack.c.b16 %v647, %v645
    %v784 = vpack.c.b16 %v648, %v646
    %v785 = vpack.c.b16 %v651, %v649
    %v786 = vpack.c.b16 %v652, %v650
    %v787 = vpack.c.b16 %v655, %v653
    %v788 = vpack.c.b16 %v656, %v654
    %v789 = vpack.c.b16 %v659, %v657
    %v790 = vpack.c.b16 %v660, %v658
    %v791 = vpack.c.b16 %v663, %v661
    %v792 = vpack.c.b16 %v664, %v662
    %v793 = vpack.c.b16 %v667, %v665
    %v794 = vpack.c.b16 %v668, %v666
    %v795 = vpack.c.b16 %v671, %v669
    %v796 = vpack.c.b16 %v672, %v670
    %v797 = vpack.c.b16 %v675, %v673
    %v798 = vpack.c.b16 %v676, %v674
    %v799 = vpack.c.b16 %v679, %v677
    %v800 = vpack.c.b16 %v680, %v678
    %v801 = vpack.c.b16 %v683, %v681
    %v802 = vpack.c.b16 %v684, %v682
    %v803 = vpack.c.b16 %v687, %v685
    %v804 = vpack.c.b16 %v688, %v686
    %v805 = vpack.c.b16 %v691, %v689
    %v806 = vpack.c.b16 %v692, %v690
    %v807 = vpack.c.b16 %v695, %v693
    %v808 = vpack.c.b16 %v696, %v694
    %921 = vmatprep.subr.bf16.mxu0 %v698
    %922 = vmatpush1.bf16.msra.mxu0 %v697
    %923 = vmatprep.subr.bf16.mxu0 %v700
    %924 = vmatpush1.bf16.msra.mxu0 %v699
    %925 = vmatprep.subr.bf16.mxu0 %v702
    %926 = vmatpush1.bf16.msra.mxu0 %v701
    %927 = vmatprep.subr.bf16.mxu0 %v704
    %928 = vmatpush1.bf16.msra.mxu0 %v703
    %929 = vmatprep.subr.bf16.mxu0 %v706
    %930 = vmatpush1.bf16.msra.mxu0 %v705
    %931 = vmatprep.subr.bf16.mxu0 %v708
    %932 = vmatpush1.bf16.msra.mxu0 %v707
    %933 = vmatprep.subr.bf16.mxu0 %v710
    %934 = vmatpush1.bf16.msra.mxu0 %v709
    %935 = vmatprep.subr.bf16.mxu0 %v712
    %936 = vmatpush1.bf16.msra.mxu0 %v711
    %937 = vmatprep.subr.bf16.mxu0 %v714
    %938 = vmatpush1.bf16.msra.mxu0 %v713
    %939 = vmatprep.subr.bf16.mxu0 %v716
    %940 = vmatpush1.bf16.msra.mxu0 %v715
    %941 = vmatprep.subr.bf16.mxu0 %v718
    %942 = vmatpush1.bf16.msra.mxu0 %v717
    %943 = vmatprep.subr.bf16.mxu0 %v720
    %944 = vmatpush1.bf16.msra.mxu0 %v719
    %945 = vmatprep.subr.bf16.mxu0 %v722
    %946 = vmatpush1.bf16.msra.mxu0 %v721
    %947 = vmatprep.subr.bf16.mxu0 %v724
    %948 = vmatpush1.bf16.msra.mxu0 %v723
    %949 = vmatprep.subr.bf16.mxu0 %v726
    %950 = vmatpush1.bf16.msra.mxu0 %v725
    %951 = vmatprep.subr.bf16.mxu0 %v728
    %952 = vmatpush1.bf16.msra.mxu0 %v727
    %953 = vmatprep.mubr.bf16.mxu0 %v306
    %954 = vmatmul.mubr.bf16.gmra.mrb[0].mxu0 %v305
    %v955 = vpop.f32.mrb[0].mxu0
    %v956 = vadd.f32 %v210, %v955
    %v957 = vpop.f32.mrb[0].mxu0
    %v958 = vadd.f32 %v214, %v957
    %v959 = vpop.f32.mrb[0].mxu0
    %v960 = vadd.f32 %v210, %v959
    %v961 = vpop.f32.mrb[0].mxu0
    %v962 = vadd.f32 %v214, %v961
    %963 = vmatprep.mubr.bf16.mxu0 %v313
    %964 = vmatmul.mubr.bf16.gmra.mrb[0].mxu0 %v312
    %v965 = vpop.f32.mrb[0].mxu0
    %v966 = vadd.f32 %v210, %v965
    %v967 = vpop.f32.mrb[0].mxu0
    %v968 = vadd.f32 %v214, %v967
    %v969 = vpop.f32.mrb[0].mxu0
    %v970 = vadd.f32 %v210, %v969
    %v971 = vpop.f32.mrb[0].mxu0
    %v972 = vadd.f32 %v214, %v971
    %973 = vmatprep.mubr.bf16.mxu0 %v320
    %974 = vmatmul.mubr.bf16.gmra.mrb[0].mxu0 %v319
    %v975 = vpop.f32.mrb[0].mxu0
    %v976 = vadd.f32 %v210, %v975
    %v977 = vpop.f32.mrb[0].mxu0
    %v978 = vadd.f32 %v214, %v977
    %v979 = vpop.f32.mrb[0].mxu0
    %v980 = vadd.f32 %v210, %v979
    %v981 = vpop.f32.mrb[0].mxu0
    %v982 = vadd.f32 %v214, %v981
    %983 = vmatprep.mubr.bf16.mxu0 %v327
    %984 = vmatmul.mubr.bf16.gmra.mrb[0].mxu0 %v326
    %v985 = vpop.f32.mrb[0].mxu0
    %v986 = vadd.f32 %v210, %v985
    %v987 = vpop.f32.mrb[0].mxu0
    %v988 = vadd.f32 %v214, %v987
    %v989 = vpop.f32.mrb[0].mxu0
    %v990 = vadd.f32 %v210, %v989
    %v991 = vpop.f32.mrb[0].mxu0
    %v992 = vadd.f32 %v214, %v991
    %993 = vdwg.mxu0
    %994 = vmatprep.subr.bf16.mxu0 %v730
    %995 = vmatpush1.bf16.msra.mxu0 %v729
    %996 = vmatprep.subr.bf16.mxu0 %v732
    %997 = vmatpush1.bf16.msra.mxu0 %v731
    %998 = vmatprep.subr.bf16.mxu0 %v734
    %999 = vmatpush1.bf16.msra.mxu0 %v733
    %1000 = vmatprep.subr.bf16.mxu0 %v736
    %1001 = vmatpush1.bf16.msra.mxu0 %v735
    %1002 = vmatprep.subr.bf16.mxu0 %v738
    %1003 = vmatpush1.bf16.msra.mxu0 %v737
    %1004 = vmatprep.subr.bf16.mxu0 %v740
    %1005 = vmatpush1.bf16.msra.mxu0 %v739
    %1006 = vmatprep.subr.bf16.mxu0 %v742
    %1007 = vmatpush1.bf16.msra.mxu0 %v741
    %1008 = vmatprep.subr.bf16.mxu0 %v744
    %1009 = vmatpush1.bf16.msra.mxu0 %v743
    %1010 = vmatprep.subr.bf16.mxu0 %v746
    %1011 = vmatpush1.bf16.msra.mxu0 %v745
    %1012 = vmatprep.subr.bf16.mxu0 %v748
    %1013 = vmatpush1.bf16.msra.mxu0 %v747
    %1014 = vmatprep.subr.bf16.mxu0 %v750
    %1015 = vmatpush1.bf16.msra.mxu0 %v749
    %1016 = vmatprep.subr.bf16.mxu0 %v752
    %1017 = vmatpush1.bf16.msra.mxu0 %v751
    %1018 = vmatprep.subr.bf16.mxu0 %v754
    %1019 = vmatpush1.bf16.msra.mxu0 %v753
    %1020 = vmatprep.subr.bf16.mxu0 %v756
    %1021 = vmatpush1.bf16.msra.mxu0 %v755
    %1022 = vmatprep.subr.bf16.mxu0 %v758
    %1023 = vmatpush1.bf16.msra.mxu0 %v757
    %1024 = vmatprep.subr.bf16.mxu0 %v760
    %1025 = vmatpush1.bf16.msra.mxu0 %v759
    %1026 = vmatprep.mubr.bf16.mxu0 %v308
    %1027 = vmatmul.mubr.bf16.gmra.mrb[0].mxu0 %v307
    %v1028 = vpop.f32.mrb[0].mxu0
    %v1029 = vadd.f32 %v956, %v1028
    %v1030 = vpop.f32.mrb[0].mxu0
    %v1031 = vadd.f32 %v958, %v1030
    %v1032 = vpop.f32.mrb[0].mxu0
    %v1033 = vadd.f32 %v960, %v1032
    %v1034 = vpop.f32.mrb[0].mxu0
    %v1035 = vadd.f32 %v962, %v1034
    %1036 = vmatprep.mubr.bf16.mxu0 %v315
    %1037 = vmatmul.mubr.bf16.gmra.mrb[0].mxu0 %v314
    %v1038 = vpop.f32.mrb[0].mxu0
    %v1039 = vadd.f32 %v966, %v1038
    %v1040 = vpop.f32.mrb[0].mxu0
    %v1041 = vadd.f32 %v968, %v1040
    %v1042 = vpop.f32.mrb[0].mxu0
    %v1043 = vadd.f32 %v970, %v1042
    %v1044 = vpop.f32.mrb[0].mxu0
    %v1045 = vadd.f32 %v972, %v1044
    %1046 = vmatprep.mubr.bf16.mxu0 %v322
    %1047 = vmatmul.mubr.bf16.gmra.mrb[0].mxu0 %v321
    %v1048 = vpop.f32.mrb[0].mxu0
    %v1049 = vadd.f32 %v976, %v1048
    %v1050 = vpop.f32.mrb[0].mxu0
    %v1051 = vadd.f32 %v978, %v1050
    %v1052 = vpop.f32.mrb[0].mxu0
    %v1053 = vadd.f32 %v980, %v1052
    %v1054 = vpop.f32.mrb[0].mxu0
    %v1055 = vadd.f32 %v982, %v1054
    %1056 = vmatprep.mubr.bf16.mxu0 %v329
    %1057 = vmatmul.mubr.bf16.gmra.mrb[0].mxu0 %v328
    %v1058 = vpop.f32.mrb[0].mxu0
    %v1059 = vadd.f32 %v986, %v1058
    %v1060 = vpop.f32.mrb[0].mxu0
    %v1061 = vadd.f32 %v988, %v1060
    %v1062 = vpop.f32.mrb[0].mxu0
    %v1063 = vadd.f32 %v990, %v1062
    %v1064 = vpop.f32.mrb[0].mxu0
    %v1065 = vadd.f32 %v992, %v1064
    %1066 = vdwg.mxu0
    %1067 = vmatprep.subr.bf16.mxu0 %v762
    %1068 = vmatpush1.bf16.msra.mxu0 %v761
    %1069 = vmatprep.subr.bf16.mxu0 %v764
    %1070 = vmatpush1.bf16.msra.mxu0 %v763
    %1071 = vmatprep.subr.bf16.mxu0 %v766
    %1072 = vmatpush1.bf16.msra.mxu0 %v765
    %1073 = vmatprep.subr.bf16.mxu0 %v768
    %1074 = vmatpush1.bf16.msra.mxu0 %v767
    %1075 = vmatprep.subr.bf16.mxu0 %v770
    %1076 = vmatpush1.bf16.msra.mxu0 %v769
    %1077 = vmatprep.subr.bf16.mxu0 %v772
    %1078 = vmatpush1.bf16.msra.mxu0 %v771
    %1079 = vmatprep.subr.bf16.mxu0 %v774
    %1080 = vmatpush1.bf16.msra.mxu0 %v773
    %1081 = vmatprep.subr.bf16.mxu0 %v776
    %1082 = vmatpush1.bf16.msra.mxu0 %v775
    %1083 = vmatprep.subr.bf16.mxu0 %v778
    %1084 = vmatpush1.bf16.msra.mxu0 %v777
    %1085 = vmatprep.subr.bf16.mxu0 %v780
    %1086 = vmatpush1.bf16.msra.mxu0 %v779
    %1087 = vmatprep.subr.bf16.mxu0 %v782
    %1088 = vmatpush1.bf16.msra.mxu0 %v781
    %1089 = vmatprep.subr.bf16.mxu0 %v784
    %1090 = vmatpush1.bf16.msra.mxu0 %v783
    %1091 = vmatprep.subr.bf16.mxu0 %v786
    %1092 = vmatpush1.bf16.msra.mxu0 %v785
    %1093 = vmatprep.subr.bf16.mxu0 %v788
    %1094 = vmatpush1.bf16.msra.mxu0 %v787
    %1095 = vmatprep.subr.bf16.mxu0 %v790
    %1096 = vmatpush1.bf16.msra.mxu0 %v789
    %1097 = vmatprep.subr.bf16.mxu0 %v792
    %1098 = vmatpush1.bf16.msra.mxu0 %v791
    %1099 = vmatprep.mubr.bf16.mxu0 %v310
    %1100 = vmatmul.mubr.bf16.gmra.mrb[0].mxu0 %v309
    %v1101 = vpop.f32.mrb[0].mxu0
    %v1102 = vadd.f32 %v1029, %v1101
    %v1103 = vpop.f32.mrb[0].mxu0
    %v1104 = vadd.f32 %v1031, %v1103
    %v1105 = vpop.f32.mrb[0].mxu0
    %v1106 = vadd.f32 %v1033, %v1105
    %v1107 = vpop.f32.mrb[0].mxu0
    %v1108 = vadd.f32 %v1035, %v1107
    %1109 = vmatprep.mubr.bf16.mxu0 %v317
    %1110 = vmatmul.mubr.bf16.gmra.mrb[0].mxu0 %v316
    %v1111 = vpop.f32.mrb[0].mxu0
    %v1112 = vadd.f32 %v1039, %v1111
    %v1113 = vpop.f32.mrb[0].mxu0
    %v1114 = vadd.f32 %v1041, %v1113
    %v1115 = vpop.f32.mrb[0].mxu0
    %v1116 = vadd.f32 %v1043, %v1115
    %v1117 = vpop.f32.mrb[0].mxu0
    %v1118 = vadd.f32 %v1045, %v1117
    %1119 = vmatprep.mubr.bf16.mxu0 %v324
    %1120 = vmatmul.mubr.bf16.gmra.mrb[0].mxu0 %v323
    %v1121 = vpop.f32.mrb[0].mxu0
    %v1122 = vadd.f32 %v1049, %v1121
    %v1123 = vpop.f32.mrb[0].mxu0
    %v1124 = vadd.f32 %v1051, %v1123
    %v1125 = vpop.f32.mrb[0].mxu0
    %v1126 = vadd.f32 %v1053, %v1125
    %v1127 = vpop.f32.mrb[0].mxu0
    %v1128 = vadd.f32 %v1055, %v1127
    %1129 = vmatprep.mubr.bf16.mxu0 %v331
    %1130 = vmatmul.mubr.bf16.gmra.mrb[0].mxu0 %v330
    %v1131 = vpop.f32.mrb[0].mxu0
    %v1132 = vadd.f32 %v1059, %v1131
    %v1133 = vpop.f32.mrb[0].mxu0
    %v1134 = vadd.f32 %v1061, %v1133
    %v1135 = vpop.f32.mrb[0].mxu0
    %v1136 = vadd.f32 %v1063, %v1135
    %v1137 = vpop.f32.mrb[0].mxu0
    %v1138 = vadd.f32 %v1065, %v1137
    %1139 = vdwg.mxu0
    %1140 = vmatprep.subr.bf16.mxu0 %v794
    %1141 = vmatpush1.bf16.msra.mxu0 %v793
    %1142 = vmatprep.subr.bf16.mxu0 %v796
    %1143 = vmatpush1.bf16.msra.mxu0 %v795
    %1144 = vmatprep.subr.bf16.mxu0 %v798
    %1145 = vmatpush1.bf16.msra.mxu0 %v797
    %1146 = vmatprep.subr.bf16.mxu0 %v800
    %1147 = vmatpush1.bf16.msra.mxu0 %v799
    %1148 = vmatprep.subr.bf16.mxu0 %v802
    %1149 = vmatpush1.bf16.msra.mxu0 %v801
    %1150 = vmatprep.subr.bf16.mxu0 %v804
    %1151 = vmatpush1.bf16.msra.mxu0 %v803
    %1152 = vmatprep.subr.bf16.mxu0 %v806
    %1153 = vmatpush1.bf16.msra.mxu0 %v805
    %1154 = vmatprep.subr.bf16.mxu0 %v808
    %1155 = vmatpush1.bf16.msra.mxu0 %v807
    %1156 = vmatprep.subr.bf16.mxu0 0
    %1157 = vmatpush1.bf16.msra.mxu0 0
    %1158 = vmatprep.subr.bf16.mxu0 0
    %1159 = vmatpush1.bf16.msra.mxu0 0
    %1160 = vmatprep.subr.bf16.mxu0 0
    %1161 = vmatpush1.bf16.msra.mxu0 0
    %1162 = vmatprep.subr.bf16.mxu0 0
    %1163 = vmatpush1.bf16.msra.mxu0 0
    %1164 = vmatprep.subr.bf16.mxu0 0
    %1165 = vmatpush1.bf16.msra.mxu0 0
    %1166 = vmatprep.subr.bf16.mxu0 0
    %1167 = vmatpush1.bf16.msra.mxu0 0
    %1168 = vmatprep.subr.bf16.mxu0 0
    %1169 = vmatpush1.bf16.msra.mxu0 0
    %1170 = vmatprep.subr.bf16.mxu0 0
    %1171 = vmatpush1.bf16.msra.mxu0 0
    %1172 = vmatprep.mubr.bf16.mxu0 0
    %1173 = vmatmul.mubr.bf16.gmra.mrb[0].mxu0 %v311
    %v1174 = vpop.f32.mrb[0].mxu0
    %v1175 = vadd.f32 %v1102, %v1174
    %v1176 = vpop.f32.mrb[0].mxu0
    %v1177 = vadd.f32 %v1104, %v1176
    %v1178 = vpop.f32.mrb[0].mxu0
    %v1179 = vadd.f32 %v1106, %v1178
    %v1180 = vpop.f32.mrb[0].mxu0
    %v1181 = vadd.f32 %v1108, %v1180
    %1182 = vmatprep.mubr.bf16.mxu0 0
    %1183 = vmatmul.mubr.bf16.gmra.mrb[0].mxu0 %v318
    %v1184 = vpop.f32.mrb[0].mxu0
    %v1185 = vadd.f32 %v1112, %v1184
    %v1186 = vpop.f32.mrb[0].mxu0
    %v1187 = vadd.f32 %v1114, %v1186
    %v1188 = vpop.f32.mrb[0].mxu0
    %v1189 = vadd.f32 %v1116, %v1188
    %v1190 = vpop.f32.mrb[0].mxu0
    %v1191 = vadd.f32 %v1118, %v1190
    %1192 = vmatprep.mubr.bf16.mxu0 0
    %1193 = vmatmul.mubr.bf16.gmra.mrb[0].mxu0 %v325
    %v1194 = vpop.f32.mrb[0].mxu0
    %v1195 = vadd.f32 %v1122, %v1194
    %v1196 = vpop.f32.mrb[0].mxu0
    %v1197 = vadd.f32 %v1124, %v1196
    %v1198 = vpop.f32.mrb[0].mxu0
    %v1199 = vadd.f32 %v1126, %v1198
    %v1200 = vpop.f32.mrb[0].mxu0
    %v1201 = vadd.f32 %v1128, %v1200
    %1202 = vmatprep.mubr.bf16.mxu0 0
    %1203 = vmatmul.mubr.bf16.gmra.mrb[0].mxu0 %v332
    %v1204 = vpop.f32.mrb[0].mxu0
    %v1205 = vadd.f32 %v1132, %v1204
    %v1206 = vpop.f32.mrb[0].mxu0
    %v1207 = vadd.f32 %v1134, %v1206
    %v1208 = vpop.f32.mrb[0].mxu0
    %v1209 = vadd.f32 %v1136, %v1208
    %v1210 = vpop.f32.mrb[0].mxu0
    %v1211 = vadd.f32 %v1138, %v1210
    %1212 = vdwg.mxu0
    %v1213 = vmax.f32 %v1175, 0.0
    %v1214 = vmax.f32 %v1177, 0.0
    %v1215 = vmax.f32 %v1179, 0.0
    %v1216 = vmax.f32 %v1181, 0.0
    %v1217 = vmax.f32 %v1185, 0.0
    %v1218 = vmax.f32 %v1187, 0.0
    %v1219 = vmax.f32 %v1189, 0.0
    %v1220 = vmax.f32 %v1191, 0.0
    %v1221 = vmax.f32 %v1195, 0.0
    %v1222 = vmax.f32 %v1197, 0.0
    %v1223 = vmax.f32 %v1199, 0.0
    %v1224 = vmax.f32 %v1201, 0.0
    %v1225 = vmax.f32 %v1205, 0.0
    %v1226 = vmax.f32 %v1207, 0.0
    %v1227 = vmax.f32 %v1209, 0.0
    %v1228 = vmax.f32 %v1211, 0.0
    %v1229 = vpack.c.bf16 %v1215, %v1213
    %v1230 = vpack.c.bf16 %v1216, %v1214
    %v1231 = vpack.c.bf16 %v1219, %v1217
    %v1232 = vpack.c.bf16 %v1220, %v1218
    %v1233 = vpack.c.bf16 %v1223, %v1221
    %v1234 = vpack.c.bf16 %v1224, %v1222
    %v1235 = vpack.c.bf16 %v1227, %v1225
    %v1236 = vpack.c.bf16 %v1228, %v1226
    %v1237 = vld [vmem:[#allocation2] sm:$0xff]
    %v1238 = vld [vmem:[#allocation2 + $0x8] sm:$0xff]
    %v1239 = vld [vmem:[#allocation2 + $0x10] sm:$0xff]
    %v1240 = vld [vmem:[#allocation2 + $0x18] sm:$0xff]
    %v1241 = vld [vmem:[#allocation2 + $0x20] sm:$0xff]
    %v1242 = vld [vmem:[#allocation2 + $0x28] sm:$0xff]
    %v1243 = vld [vmem:[#allocation2 + $0x30] sm:$0xff]
    %v1244 = vld [vmem:[#allocation2 + $0x38] sm:$0xff]
    %v1245 = vld [vmem:[#allocation2 + $0x40] sm:$0xff]
    %v1246 = vld [vmem:[#allocation2 + $0x48] sm:$0xff]
    %v1247 = vld [vmem:[#allocation2 + $0x50] sm:$0xff]
    %v1248 = vld [vmem:[#allocation2 + $0x58] sm:$0xff]
    %v1249 = vld [vmem:[#allocation2 + $0x60] sm:$0xff]
    %v1250 = vld [vmem:[#allocation2 + $0x68] sm:$0xff]
    %v1251 = vld [vmem:[#allocation2 + $0x70] sm:$0xff]
    %v1252 = vld [vmem:[#allocation2 + $0x78] sm:$0xff]
    %v1253 = vld [vmem:[#allocation2 + $0x80] sm:$0xff]
    %v1254 = vld [vmem:[#allocation2 + $0x88] sm:$0xff]
    %v1255 = vld [vmem:[#allocation2 + $0x90] sm:$0xff]
    %v1256 = vld [vmem:[#allocation2 + $0x98] sm:$0xff]
    %v1257 = vld [vmem:[#allocation2 + $0xa0] sm:$0xff]
    %v1258 = vld [vmem:[#allocation2 + $0xa8] sm:$0xff]
    %v1259 = vld [vmem:[#allocation2 + $0xb0] sm:$0xff]
    %v1260 = vld [vmem:[#allocation2 + $0xb8] sm:$0xff]
    %v1261 = vld [vmem:[#allocation2 + $0xc0] sm:$0xff]
    %v1262 = vld [vmem:[#allocation2 + $0xc8] sm:$0xff]
    %v1263 = vld [vmem:[#allocation2 + $0xd0] sm:$0xff]
    %v1264 = vld [vmem:[#allocation2 + $0xd8] sm:$0xff]
    %v1265 = vld [vmem:[#allocation2 + $0xe0] sm:$0xff]
    %v1266 = vld [vmem:[#allocation2 + $0xe8] sm:$0xff]
    %v1267 = vld [vmem:[#allocation2 + $0xf0] sm:$0xff]
    %v1268 = vld [vmem:[#allocation2 + $0xf8] sm:$0xff]
    %v1269 = vld [vmem:[%s6] sm:$0x3]
    %v1271 = vlaneseq
    %v1272 = vshrl.u32 %v1271, 7
    %v1273 = vsub.s32 0, %v1272
    %v1274 = vrot.slane %v1269, %v1273
    %v1275 = vlaneseq
    %v1276 = vshrl.u32 %v1275, 7
    %v1277 = vsub.s32 1, %v1276
    %v1278 = vrot.slane %v1269, %v1277
    %v1313 = vunpack.c.l.b16 %v1237
    %v1314 = vunpack.c.h.b16 %v1237
    %v1315 = vunpack.c.l.b16 %v1238
    %v1316 = vunpack.c.h.b16 %v1238
    %v1317 = vunpack.c.l.b16 %v1239
    %v1318 = vunpack.c.h.b16 %v1239
    %v1319 = vunpack.c.l.b16 %v1240
    %v1320 = vunpack.c.h.b16 %v1240
    %v1321 = vunpack.c.l.b16 %v1241
    %v1322 = vunpack.c.h.b16 %v1241
    %v1323 = vunpack.c.l.b16 %v1242
    %v1324 = vunpack.c.h.b16 %v1242
    %v1325 = vunpack.c.l.b16 %v1243
    %v1326 = vunpack.c.h.b16 %v1243
    %v1327 = vunpack.c.l.b16 %v1244
    %v1328 = vunpack.c.h.b16 %v1244
    %v1329 = vunpack.c.l.b16 %v1245
    %v1330 = vunpack.c.h.b16 %v1245
    %v1331 = vunpack.c.l.b16 %v1246
    %v1332 = vunpack.c.h.b16 %v1246
    %v1333 = vunpack.c.l.b16 %v1247
    %v1334 = vunpack.c.h.b16 %v1247
    %v1335 = vunpack.c.l.b16 %v1248
    %v1336 = vunpack.c.h.b16 %v1248
    %v1337 = vunpack.c.l.b16 %v1249
    %v1338 = vunpack.c.h.b16 %v1249
    %v1339 = vunpack.c.l.b16 %v1250
    %v1340 = vunpack.c.h.b16 %v1250
    %v1341 = vunpack.c.l.b16 %v1251
    %v1342 = vunpack.c.h.b16 %v1251
    %v1343 = vunpack.c.l.b16 %v1252
    %v1344 = vunpack.c.h.b16 %v1252
    %v1345 = vunpack.c.l.b16 %v1253
    %v1346 = vunpack.c.h.b16 %v1253
    %v1347 = vunpack.c.l.b16 %v1254
    %v1348 = vunpack.c.h.b16 %v1254
    %v1349 = vunpack.c.l.b16 %v1255
    %v1350 = vunpack.c.h.b16 %v1255
    %v1351 = vunpack.c.l.b16 %v1256
    %v1352 = vunpack.c.h.b16 %v1256
    %v1353 = vunpack.c.l.b16 %v1257
    %v1354 = vunpack.c.h.b16 %v1257
    %v1355 = vunpack.c.l.b16 %v1258
    %v1356 = vunpack.c.h.b16 %v1258
    %v1357 = vunpack.c.l.b16 %v1259
    %v1358 = vunpack.c.h.b16 %v1259
    %v1359 = vunpack.c.l.b16 %v1260
    %v1360 = vunpack.c.h.b16 %v1260
    %v1361 = vunpack.c.l.b16 %v1261
    %v1362 = vunpack.c.h.b16 %v1261
    %v1363 = vunpack.c.l.b16 %v1262
    %v1364 = vunpack.c.h.b16 %v1262
    %v1365 = vunpack.c.l.b16 %v1263
    %v1366 = vunpack.c.h.b16 %v1263
    %v1367 = vunpack.c.l.b16 %v1264
    %v1368 = vunpack.c.h.b16 %v1264
    %v1369 = vunpack.c.l.b16 %v1265
    %v1370 = vunpack.c.h.b16 %v1265
    %v1371 = vunpack.c.l.b16 %v1266
    %v1372 = vunpack.c.h.b16 %v1266
    %v1373 = vunpack.c.l.b16 %v1267
    %v1374 = vunpack.c.h.b16 %v1267
    %v1375 = vunpack.c.l.b16 %v1268
    %v1376 = vunpack.c.h.b16 %v1268
    %v1377 = vpack.c.b16 %v1315, %v1313
    %v1378 = vpack.c.b16 %v1316, %v1314
    %v1379 = vpack.c.b16 %v1319, %v1317
    %v1380 = vpack.c.b16 %v1320, %v1318
    %v1381 = vpack.c.b16 %v1323, %v1321
    %v1382 = vpack.c.b16 %v1324, %v1322
    %v1383 = vpack.c.b16 %v1327, %v1325
    %v1384 = vpack.c.b16 %v1328, %v1326
    %v1385 = vpack.c.b16 %v1331, %v1329
    %v1386 = vpack.c.b16 %v1332, %v1330
    %v1387 = vpack.c.b16 %v1335, %v1333
    %v1388 = vpack.c.b16 %v1336, %v1334
    %v1389 = vpack.c.b16 %v1339, %v1337
    %v1390 = vpack.c.b16 %v1340, %v1338
    %v1391 = vpack.c.b16 %v1343, %v1341
    %v1392 = vpack.c.b16 %v1344, %v1342
    %v1393 = vpack.c.b16 %v1347, %v1345
    %v1394 = vpack.c.b16 %v1348, %v1346
    %v1395 = vpack.c.b16 %v1351, %v1349
    %v1396 = vpack.c.b16 %v1352, %v1350
    %v1397 = vpack.c.b16 %v1355, %v1353
    %v1398 = vpack.c.b16 %v1356, %v1354
    %v1399 = vpack.c.b16 %v1359, %v1357
    %v1400 = vpack.c.b16 %v1360, %v1358
    %v1401 = vpack.c.b16 %v1363, %v1361
    %v1402 = vpack.c.b16 %v1364, %v1362
    %v1403 = vpack.c.b16 %v1367, %v1365
    %v1404 = vpack.c.b16 %v1368, %v1366
    %v1405 = vpack.c.b16 %v1371, %v1369
    %v1406 = vpack.c.b16 %v1372, %v1370
    %v1407 = vpack.c.b16 %v1375, %v1373
    %v1408 = vpack.c.b16 %v1376, %v1374
    %1441 = vmatprep.subr.bf16.mxu0 %v1378
    %1442 = vmatpush1.bf16.msra.mxu0 %v1377
    %1443 = vmatprep.subr.bf16.mxu0 %v1380
    %1444 = vmatpush1.bf16.msra.mxu0 %v1379
    %1445 = vmatprep.subr.bf16.mxu0 %v1382
    %1446 = vmatpush1.bf16.msra.mxu0 %v1381
    %1447 = vmatprep.subr.bf16.mxu0 %v1384
    %1448 = vmatpush1.bf16.msra.mxu0 %v1383
    %1449 = vmatprep.subr.bf16.mxu0 %v1386
    %1450 = vmatpush1.bf16.msra.mxu0 %v1385
    %1451 = vmatprep.subr.bf16.mxu0 %v1388
    %1452 = vmatpush1.bf16.msra.mxu0 %v1387
    %1453 = vmatprep.subr.bf16.mxu0 %v1390
    %1454 = vmatpush1.bf16.msra.mxu0 %v1389
    %1455 = vmatprep.subr.bf16.mxu0 %v1392
    %1456 = vmatpush1.bf16.msra.mxu0 %v1391
    %1457 = vmatprep.subr.bf16.mxu0 %v1394
    %1458 = vmatpush1.bf16.msra.mxu0 %v1393
    %1459 = vmatprep.subr.bf16.mxu0 %v1396
    %1460 = vmatpush1.bf16.msra.mxu0 %v1395
    %1461 = vmatprep.subr.bf16.mxu0 %v1398
    %1462 = vmatpush1.bf16.msra.mxu0 %v1397
    %1463 = vmatprep.subr.bf16.mxu0 %v1400
    %1464 = vmatpush1.bf16.msra.mxu0 %v1399
    %1465 = vmatprep.subr.bf16.mxu0 %v1402
    %1466 = vmatpush1.bf16.msra.mxu0 %v1401
    %1467 = vmatprep.subr.bf16.mxu0 %v1404
    %1468 = vmatpush1.bf16.msra.mxu0 %v1403
    %1469 = vmatprep.subr.bf16.mxu0 %v1406
    %1470 = vmatpush1.bf16.msra.mxu0 %v1405
    %1471 = vmatprep.subr.bf16.mxu0 %v1408
    %1472 = vmatpush1.bf16.msra.mxu0 %v1407
    %1473 = vmatprep.mubr.bf16.mxu0 %v1230
    %1474 = vmatmul.mubr.bf16.gmra.mrb[0].mxu0 %v1229
    %v1475 = vpop.f32.mrb[0].mxu0
    %v1476 = vadd.f32 %v1274, %v1475
    %v1477 = vpop.f32.mrb[0].mxu0
    %v1478 = vadd.f32 %v1278, %v1477
    %v1479 = vpop.f32.mrb[0].mxu0
    %v1480 = vadd.f32 %v1274, %v1479
    %v1481 = vpop.f32.mrb[0].mxu0
    %v1482 = vadd.f32 %v1278, %v1481
    %1483 = vmatprep.mubr.bf16.mxu0 %v1232
    %1484 = vmatmul.mubr.bf16.gmra.mrb[0].mxu0 %v1231
    %v1485 = vpop.f32.mrb[0].mxu0
    %v1486 = vadd.f32 %v1274, %v1485
    %v1487 = vpop.f32.mrb[0].mxu0
    %v1488 = vadd.f32 %v1278, %v1487
    %v1489 = vpop.f32.mrb[0].mxu0
    %v1490 = vadd.f32 %v1274, %v1489
    %v1491 = vpop.f32.mrb[0].mxu0
    %v1492 = vadd.f32 %v1278, %v1491
    %1493 = vmatprep.mubr.bf16.mxu0 %v1234
    %1494 = vmatmul.mubr.bf16.gmra.mrb[0].mxu0 %v1233
    %v1495 = vpop.f32.mrb[0].mxu0
    %v1496 = vadd.f32 %v1274, %v1495
    %v1497 = vpop.f32.mrb[0].mxu0
    %v1498 = vadd.f32 %v1278, %v1497
    %v1499 = vpop.f32.mrb[0].mxu0
    %v1500 = vadd.f32 %v1274, %v1499
    %v1501 = vpop.f32.mrb[0].mxu0
    %v1502 = vadd.f32 %v1278, %v1501
    %1503 = vmatprep.mubr.bf16.mxu0 %v1236
    %1504 = vmatmul.mubr.bf16.gmra.mrb[0].mxu0 %v1235
    %v1505 = vpop.f32.mrb[0].mxu0
    %v1506 = vadd.f32 %v1274, %v1505
    %v1507 = vpop.f32.mrb[0].mxu0
    %v1508 = vadd.f32 %v1278, %v1507
    %v1509 = vpop.f32.mrb[0].mxu0
    %v1510 = vadd.f32 %v1274, %v1509
    %v1511 = vpop.f32.mrb[0].mxu0
    %v1512 = vadd.f32 %v1278, %v1511
    %1513 = vdwg.mxu0
    %v1514 = vmax.f32 %v1476, 0.0
    %v1515 = vmax.f32 %v1478, 0.0
    %v1516 = vmax.f32 %v1480, 0.0
    %v1517 = vmax.f32 %v1482, 0.0
    %v1518 = vmax.f32 %v1486, 0.0
    %v1519 = vmax.f32 %v1488, 0.0
    %v1520 = vmax.f32 %v1490, 0.0
    %v1521 = vmax.f32 %v1492, 0.0
    %v1522 = vmax.f32 %v1496, 0.0
    %v1523 = vmax.f32 %v1498, 0.0
    %v1524 = vmax.f32 %v1500, 0.0
    %v1525 = vmax.f32 %v1502, 0.0
    %v1526 = vmax.f32 %v1506, 0.0
    %v1527 = vmax.f32 %v1508, 0.0
    %v1528 = vmax.f32 %v1510, 0.0
    %v1529 = vmax.f32 %v1512, 0.0
    %v1530 = vpack.c.bf16 %v1516, %v1514
    %v1531 = vpack.c.bf16 %v1517, %v1515
    %v1532 = vpack.c.bf16 %v1520, %v1518
    %v1533 = vpack.c.bf16 %v1521, %v1519
    %v1534 = vpack.c.bf16 %v1524, %v1522
    %v1535 = vpack.c.bf16 %v1525, %v1523
    %v1536 = vpack.c.bf16 %v1528, %v1526
    %v1537 = vpack.c.bf16 %v1529, %v1527
    %v1538 = vld [vmem:[#allocation4] sm:$0xff]
    %v1539 = vld [vmem:[#allocation4 + $0x8] sm:$0xff]
    %v1540 = vld [vmem:[#allocation4 + $0x10] sm:$0xff]
    %v1541 = vld [vmem:[#allocation4 + $0x18] sm:$0xff]
    %v1542 = vld [vmem:[#allocation4 + $0x20] sm:$0xff]
    %v1543 = vld [vmem:[#allocation4 + $0x28] sm:$0xff]
    %v1544 = vld [vmem:[#allocation4 + $0x30] sm:$0xff]
    %v1545 = vld [vmem:[#allocation4 + $0x38] sm:$0xff]
    %v1546 = vld [vmem:[#allocation4 + $0x40] sm:$0xff]
    %v1547 = vld [vmem:[#allocation4 + $0x48] sm:$0xff]
    %v1548 = vld [vmem:[#allocation4 + $0x50] sm:$0xff]
    %v1549 = vld [vmem:[#allocation4 + $0x58] sm:$0xff]
    %v1550 = vld [vmem:[#allocation4 + $0x60] sm:$0xff]
    %v1551 = vld [vmem:[#allocation4 + $0x68] sm:$0xff]
    %v1552 = vld [vmem:[#allocation4 + $0x70] sm:$0xff]
    %v1553 = vld [vmem:[#allocation4 + $0x78] sm:$0xff]
    %v1554 = vld [vmem:[#allocation4 + $0x80] sm:$0xff]
    %v1555 = vld [vmem:[#allocation4 + $0x88] sm:$0xff]
    %v1556 = vld [vmem:[#allocation4 + $0x90] sm:$0xff]
    %v1557 = vld [vmem:[#allocation4 + $0x98] sm:$0xff]
    %v1558 = vld [vmem:[#allocation4 + $0xa0] sm:$0xff]
    %v1559 = vld [vmem:[#allocation4 + $0xa8] sm:$0xff]
    %v1560 = vld [vmem:[#allocation4 + $0xb0] sm:$0xff]
    %v1561 = vld [vmem:[#allocation4 + $0xb8] sm:$0xff]
    %v1562 = vld [vmem:[#allocation4 + $0xc0] sm:$0xff]
    %v1563 = vld [vmem:[#allocation4 + $0xc8] sm:$0xff]
    %v1564 = vld [vmem:[#allocation4 + $0xd0] sm:$0xff]
    %v1565 = vld [vmem:[#allocation4 + $0xd8] sm:$0xff]
    %v1566 = vld [vmem:[#allocation4 + $0xe0] sm:$0xff]
    %v1567 = vld [vmem:[#allocation4 + $0xe8] sm:$0xff]
    %v1568 = vld [vmem:[#allocation4 + $0xf0] sm:$0xff]
    %v1569 = vld [vmem:[#allocation4 + $0xf8] sm:$0xff]
    %v1570 = vld [vmem:[%s7] sm:$0x3]
    %v1572 = vlaneseq
    %v1573 = vshrl.u32 %v1572, 7
    %v1574 = vsub.s32 0, %v1573
    %v1575 = vrot.slane %v1570, %v1574
    %v1576 = vlaneseq
    %v1577 = vshrl.u32 %v1576, 7
    %v1578 = vsub.s32 1, %v1577
    %v1579 = vrot.slane %v1570, %v1578
    %v1614 = vunpack.c.l.b16 %v1538
    %v1615 = vunpack.c.h.b16 %v1538
    %v1616 = vunpack.c.l.b16 %v1539
    %v1617 = vunpack.c.h.b16 %v1539
    %v1618 = vunpack.c.l.b16 %v1540
    %v1619 = vunpack.c.h.b16 %v1540
    %v1620 = vunpack.c.l.b16 %v1541
    %v1621 = vunpack.c.h.b16 %v1541
    %v1622 = vunpack.c.l.b16 %v1542
    %v1623 = vunpack.c.h.b16 %v1542
    %v1624 = vunpack.c.l.b16 %v1543
    %v1625 = vunpack.c.h.b16 %v1543
    %v1626 = vunpack.c.l.b16 %v1544
    %v1627 = vunpack.c.h.b16 %v1544
    %v1628 = vunpack.c.l.b16 %v1545
    %v1629 = vunpack.c.h.b16 %v1545
    %v1630 = vunpack.c.l.b16 %v1546
    %v1631 = vunpack.c.h.b16 %v1546
    %v1632 = vunpack.c.l.b16 %v1547
    %v1633 = vunpack.c.h.b16 %v1547
    %v1634 = vunpack.c.l.b16 %v1548
    %v1635 = vunpack.c.h.b16 %v1548
    %v1636 = vunpack.c.l.b16 %v1549
    %v1637 = vunpack.c.h.b16 %v1549
    %v1638 = vunpack.c.l.b16 %v1550
    %v1639 = vunpack.c.h.b16 %v1550
    %v1640 = vunpack.c.l.b16 %v1551
    %v1641 = vunpack.c.h.b16 %v1551
    %v1642 = vunpack.c.l.b16 %v1552
    %v1643 = vunpack.c.h.b16 %v1552
    %v1644 = vunpack.c.l.b16 %v1553
    %v1645 = vunpack.c.h.b16 %v1553
    %v1646 = vunpack.c.l.b16 %v1554
    %v1647 = vunpack.c.h.b16 %v1554
    %v1648 = vunpack.c.l.b16 %v1555
    %v1649 = vunpack.c.h.b16 %v1555
    %v1650 = vunpack.c.l.b16 %v1556
    %v1651 = vunpack.c.h.b16 %v1556
    %v1652 = vunpack.c.l.b16 %v1557
    %v1653 = vunpack.c.h.b16 %v1557
    %v1654 = vunpack.c.l.b16 %v1558
    %v1655 = vunpack.c.h.b16 %v1558
    %v1656 = vunpack.c.l.b16 %v1559
    %v1657 = vunpack.c.h.b16 %v1559
    %v1658 = vunpack.c.l.b16 %v1560
    %v1659 = vunpack.c.h.b16 %v1560
    %v1660 = vunpack.c.l.b16 %v1561
    %v1661 = vunpack.c.h.b16 %v1561
    %v1662 = vunpack.c.l.b16 %v1562
    %v1663 = vunpack.c.h.b16 %v1562
    %v1664 = vunpack.c.l.b16 %v1563
    %v1665 = vunpack.c.h.b16 %v1563
    %v1666 = vunpack.c.l.b16 %v1564
    %v1667 = vunpack.c.h.b16 %v1564
    %v1668 = vunpack.c.l.b16 %v1565
    %v1669 = vunpack.c.h.b16 %v1565
    %v1670 = vunpack.c.l.b16 %v1566
    %v1671 = vunpack.c.h.b16 %v1566
    %v1672 = vunpack.c.l.b16 %v1567
    %v1673 = vunpack.c.h.b16 %v1567
    %v1674 = vunpack.c.l.b16 %v1568
    %v1675 = vunpack.c.h.b16 %v1568
    %v1676 = vunpack.c.l.b16 %v1569
    %v1677 = vunpack.c.h.b16 %v1569
    %v1678 = vpack.c.b16 %v1616, %v1614
    %v1679 = vpack.c.b16 %v1617, %v1615
    %v1680 = vpack.c.b16 %v1620, %v1618
    %v1681 = vpack.c.b16 %v1621, %v1619
    %v1682 = vpack.c.b16 %v1624, %v1622
    %v1683 = vpack.c.b16 %v1625, %v1623
    %v1684 = vpack.c.b16 %v1628, %v1626
    %v1685 = vpack.c.b16 %v1629, %v1627
    %v1686 = vpack.c.b16 %v1632, %v1630
    %v1687 = vpack.c.b16 %v1633, %v1631
    %v1688 = vpack.c.b16 %v1636, %v1634
    %v1689 = vpack.c.b16 %v1637, %v1635
    %v1690 = vpack.c.b16 %v1640, %v1638
    %v1691 = vpack.c.b16 %v1641, %v1639
    %v1692 = vpack.c.b16 %v1644, %v1642
    %v1693 = vpack.c.b16 %v1645, %v1643
    %v1694 = vpack.c.b16 %v1648, %v1646
    %v1695 = vpack.c.b16 %v1649, %v1647
    %v1696 = vpack.c.b16 %v1652, %v1650
    %v1697 = vpack.c.b16 %v1653, %v1651
    %v1698 = vpack.c.b16 %v1656, %v1654
    %v1699 = vpack.c.b16 %v1657, %v1655
    %v1700 = vpack.c.b16 %v1660, %v1658
    %v1701 = vpack.c.b16 %v1661, %v1659
    %v1702 = vpack.c.b16 %v1664, %v1662
    %v1703 = vpack.c.b16 %v1665, %v1663
    %v1704 = vpack.c.b16 %v1668, %v1666
    %v1705 = vpack.c.b16 %v1669, %v1667
    %v1706 = vpack.c.b16 %v1672, %v1670
    %v1707 = vpack.c.b16 %v1673, %v1671
    %v1708 = vpack.c.b16 %v1676, %v1674
    %v1709 = vpack.c.b16 %v1677, %v1675
    %1742 = vmatprep.subr.bf16.mxu0 %v1679
    %1743 = vmatpush1.bf16.msra.mxu0 %v1678
    %1744 = vmatprep.subr.bf16.mxu0 %v1681
    %1745 = vmatpush1.bf16.msra.mxu0 %v1680
    %1746 = vmatprep.subr.bf16.mxu0 %v1683
    %1747 = vmatpush1.bf16.msra.mxu0 %v1682
    %1748 = vmatprep.subr.bf16.mxu0 %v1685
    %1749 = vmatpush1.bf16.msra.mxu0 %v1684
    %1750 = vmatprep.subr.bf16.mxu0 %v1687
    %1751 = vmatpush1.bf16.msra.mxu0 %v1686
    %1752 = vmatprep.subr.bf16.mxu0 %v1689
    %1753 = vmatpush1.bf16.msra.mxu0 %v1688
    %1754 = vmatprep.subr.bf16.mxu0 %v1691
    %1755 = vmatpush1.bf16.msra.mxu0 %v1690
    %1756 = vmatprep.subr.bf16.mxu0 %v1693
    %1757 = vmatpush1.bf16.msra.mxu0 %v1692
    %1758 = vmatprep.subr.bf16.mxu0 %v1695
    %1759 = vmatpush1.bf16.msra.mxu0 %v1694
    %1760 = vmatprep.subr.bf16.mxu0 %v1697
    %1761 = vmatpush1.bf16.msra.mxu0 %v1696
    %1762 = vmatprep.subr.bf16.mxu0 %v1699
    %1763 = vmatpush1.bf16.msra.mxu0 %v1698
    %1764 = vmatprep.subr.bf16.mxu0 %v1701
    %1765 = vmatpush1.bf16.msra.mxu0 %v1700
    %1766 = vmatprep.subr.bf16.mxu0 %v1703
    %1767 = vmatpush1.bf16.msra.mxu0 %v1702
    %1768 = vmatprep.subr.bf16.mxu0 %v1705
    %1769 = vmatpush1.bf16.msra.mxu0 %v1704
    %1770 = vmatprep.subr.bf16.mxu0 %v1707
    %1771 = vmatpush1.bf16.msra.mxu0 %v1706
    %1772 = vmatprep.subr.bf16.mxu0 %v1709
    %1773 = vmatpush1.bf16.msra.mxu0 %v1708
    %1774 = vmatprep.mubr.bf16.mxu0 %v1531
    %1775 = vmatmul.mubr.bf16.gmra.mrb[0].mxu0 %v1530
    %v1776 = vpop.f32.mrb[0].mxu0
    %v1777 = vadd.f32 %v1575, %v1776
    %v1778 = vpop.f32.mrb[0].mxu0
    %v1779 = vadd.f32 %v1579, %v1778
    %v1780 = vpop.f32.mrb[0].mxu0
    %v1781 = vadd.f32 %v1575, %v1780
    %v1782 = vpop.f32.mrb[0].mxu0
    %v1783 = vadd.f32 %v1579, %v1782
    %1784 = vmatprep.mubr.bf16.mxu0 %v1533
    %1785 = vmatmul.mubr.bf16.gmra.mrb[0].mxu0 %v1532
    %v1786 = vpop.f32.mrb[0].mxu0
    %v1787 = vadd.f32 %v1575, %v1786
    %v1788 = vpop.f32.mrb[0].mxu0
    %v1789 = vadd.f32 %v1579, %v1788
    %v1790 = vpop.f32.mrb[0].mxu0
    %v1791 = vadd.f32 %v1575, %v1790
    %v1792 = vpop.f32.mrb[0].mxu0
    %v1793 = vadd.f32 %v1579, %v1792
    %1794 = vmatprep.mubr.bf16.mxu0 %v1535
    %1795 = vmatmul.mubr.bf16.gmra.mrb[0].mxu0 %v1534
    %v1796 = vpop.f32.mrb[0].mxu0
    %v1797 = vadd.f32 %v1575, %v1796
    %v1798 = vpop.f32.mrb[0].mxu0
    %v1799 = vadd.f32 %v1579, %v1798
    %v1800 = vpop.f32.mrb[0].mxu0
    %v1801 = vadd.f32 %v1575, %v1800
    %v1802 = vpop.f32.mrb[0].mxu0
    %v1803 = vadd.f32 %v1579, %v1802
    %1804 = vmatprep.mubr.bf16.mxu0 %v1537
    %1805 = vmatmul.mubr.bf16.gmra.mrb[0].mxu0 %v1536
    %v1806 = vpop.f32.mrb[0].mxu0
    %v1807 = vadd.f32 %v1575, %v1806
    %v1808 = vpop.f32.mrb[0].mxu0
    %v1809 = vadd.f32 %v1579, %v1808
    %v1810 = vpop.f32.mrb[0].mxu0
    %v1811 = vadd.f32 %v1575, %v1810
    %v1812 = vpop.f32.mrb[0].mxu0
    %v1813 = vadd.f32 %v1579, %v1812
    %1814 = vdwg.mxu0
    %v1815 = vmax.f32 %v1777, 0.0
    %v1816 = vmax.f32 %v1779, 0.0
    %v1817 = vmax.f32 %v1781, 0.0
    %v1818 = vmax.f32 %v1783, 0.0
    %v1819 = vmax.f32 %v1787, 0.0
    %v1820 = vmax.f32 %v1789, 0.0
    %v1821 = vmax.f32 %v1791, 0.0
    %v1822 = vmax.f32 %v1793, 0.0
    %v1823 = vmax.f32 %v1797, 0.0
    %v1824 = vmax.f32 %v1799, 0.0
    %v1825 = vmax.f32 %v1801, 0.0
    %v1826 = vmax.f32 %v1803, 0.0
    %v1827 = vmax.f32 %v1807, 0.0
    %v1828 = vmax.f32 %v1809, 0.0
    %v1829 = vmax.f32 %v1811, 0.0
    %v1830 = vmax.f32 %v1813, 0.0
    %v1831 = vpack.c.bf16 %v1817, %v1815
    %v1832 = vpack.c.bf16 %v1818, %v1816
    %v1833 = vpack.c.bf16 %v1821, %v1819
    %v1834 = vpack.c.bf16 %v1822, %v1820
    %v1835 = vpack.c.bf16 %v1825, %v1823
    %v1836 = vpack.c.bf16 %v1826, %v1824
    %v1837 = vpack.c.bf16 %v1829, %v1827
    %v1838 = vpack.c.bf16 %v1830, %v1828
    %v1839 = vld [vmem:[%s4] sm:$0xf]
    %v1840 = vld [vmem:[%s4 + $0x4] sm:$0xf]
    %v1841 = vld [vmem:[%s4 + $0x8] sm:$0xf]
    %v1842 = vld [vmem:[%s4 + $0xc] sm:$0xf]
    %v1843 = vld [vmem:[%s4 + $0x10] sm:$0xf]
    %v1844 = vld [vmem:[%s4 + $0x14] sm:$0xf]
    %v1845 = vld [vmem:[%s4 + $0x18] sm:$0xf]
    %v1846 = vld [vmem:[%s4 + $0x1c] sm:$0xf]
    %v1847 = vld [vmem:[%s4 + $0x20] sm:$0xf]
    %v1848 = vld [vmem:[%s4 + $0x24] sm:$0xf]
    %v1849 = vld [vmem:[%s4 + $0x28] sm:$0xf]
    %v1850 = vld [vmem:[%s4 + $0x2c] sm:$0xf]
    %v1851 = vld [vmem:[%s4 + $0x30] sm:$0xf]
    %v1852 = vld [vmem:[%s4 + $0x34] sm:$0xf]
    %v1853 = vld [vmem:[%s4 + $0x38] sm:$0xf]
    %v1854 = vld [vmem:[%s4 + $0x3c] sm:$0xf]
    %v1855 = vld [vmem:[%s4 + $0x40] sm:$0xf]
    %v1856 = vld [vmem:[%s4 + $0x44] sm:$0xf]
    %v1857 = vld [vmem:[%s4 + $0x48] sm:$0xf]
    %v1858 = vld [vmem:[%s4 + $0x4c] sm:$0xf]
    %v1859 = vld [vmem:[%s4 + $0x50] sm:$0xf]
    %v1860 = vld [vmem:[%s4 + $0x54] sm:$0xf]
    %v1861 = vld [vmem:[%s4 + $0x58] sm:$0xf]
    %v1862 = vld [vmem:[%s4 + $0x5c] sm:$0xf]
    %v1863 = vld [vmem:[%s4 + $0x60] sm:$0xf]
    %v1864 = vld [vmem:[%s4 + $0x64] sm:$0xf]
    %v1865 = vld [vmem:[%s4 + $0x68] sm:$0xf]
    %v1866 = vld [vmem:[%s4 + $0x6c] sm:$0xf]
    %v1867 = vld [vmem:[%s4 + $0x70] sm:$0xf]
    %v1868 = vld [vmem:[%s4 + $0x74] sm:$0xf]
    %v1869 = vld [vmem:[%s4 + $0x78] sm:$0xf]
    %v1870 = vld [vmem:[%s4 + $0x7c] sm:$0xf]
    %v1871 = vld [vmem:[%s8] sm:$0x1]
    %v1873 = vlaneseq
    %v1874 = vshrl.u32 %v1873, 7
    %v1875 = vsub.s32 0, %v1874
    %v1876 = vrot.slane %v1871, %v1875
    %v1910 = vunpack.c.l.b16 %v1839
    %v1911 = vunpack.c.l.b16 %v1840
    %v1912 = vunpack.c.l.b16 %v1841
    %v1913 = vunpack.c.l.b16 %v1842
    %v1914 = vunpack.c.l.b16 %v1843
    %v1915 = vunpack.c.l.b16 %v1844
    %v1916 = vunpack.c.l.b16 %v1845
    %v1917 = vunpack.c.l.b16 %v1846
    %v1918 = vunpack.c.l.b16 %v1847
    %v1919 = vunpack.c.l.b16 %v1848
    %v1920 = vunpack.c.l.b16 %v1849
    %v1921 = vunpack.c.l.b16 %v1850
    %v1922 = vunpack.c.l.b16 %v1851
    %v1923 = vunpack.c.l.b16 %v1852
    %v1924 = vunpack.c.l.b16 %v1853
    %v1925 = vunpack.c.l.b16 %v1854
    %v1926 = vunpack.c.l.b16 %v1855
    %v1927 = vunpack.c.l.b16 %v1856
    %v1928 = vunpack.c.l.b16 %v1857
    %v1929 = vunpack.c.l.b16 %v1858
    %v1930 = vunpack.c.l.b16 %v1859
    %v1931 = vunpack.c.l.b16 %v1860
    %v1932 = vunpack.c.l.b16 %v1861
    %v1933 = vunpack.c.l.b16 %v1862
    %v1934 = vunpack.c.l.b16 %v1863
    %v1935 = vunpack.c.l.b16 %v1864
    %v1936 = vunpack.c.l.b16 %v1865
    %v1937 = vunpack.c.l.b16 %v1866
    %v1938 = vunpack.c.l.b16 %v1867
    %v1939 = vunpack.c.l.b16 %v1868
    %v1940 = vunpack.c.l.b16 %v1869
    %v1941 = vunpack.c.l.b16 %v1870
    %v1942 = vpack.c.b16 %v1911, %v1910
    %v1943 = vpack.c.b16 %v1913, %v1912
    %v1944 = vpack.c.b16 %v1915, %v1914
    %v1945 = vpack.c.b16 %v1917, %v1916
    %v1946 = vpack.c.b16 %v1919, %v1918
    %v1947 = vpack.c.b16 %v1921, %v1920
    %v1948 = vpack.c.b16 %v1923, %v1922
    %v1949 = vpack.c.b16 %v1925, %v1924
    %v1950 = vpack.c.b16 %v1927, %v1926
    %v1951 = vpack.c.b16 %v1929, %v1928
    %v1952 = vpack.c.b16 %v1931, %v1930
    %v1953 = vpack.c.b16 %v1933, %v1932
    %v1954 = vpack.c.b16 %v1935, %v1934
    %v1955 = vpack.c.b16 %v1937, %v1936
    %v1956 = vpack.c.b16 %v1939, %v1938
    %v1957 = vpack.c.b16 %v1941, %v1940
    %1974 = vmatprep.subr.bf16.mxu0 0
    %1975 = vmatpush1.bf16.msra.mxu0 %v1942
    %1976 = vmatprep.subr.bf16.mxu0 0
    %1977 = vmatpush1.bf16.msra.mxu0 %v1943
    %1978 = vmatprep.subr.bf16.mxu0 0
    %1979 = vmatpush1.bf16.msra.mxu0 %v1944
    %1980 = vmatprep.subr.bf16.mxu0 0
    %1981 = vmatpush1.bf16.msra.mxu0 %v1945
    %1982 = vmatprep.subr.bf16.mxu0 0
    %1983 = vmatpush1.bf16.msra.mxu0 %v1946
    %1984 = vmatprep.subr.bf16.mxu0 0
    %1985 = vmatpush1.bf16.msra.mxu0 %v1947
    %1986 = vmatprep.subr.bf16.mxu0 0
    %1987 = vmatpush1.bf16.msra.mxu0 %v1948
    %1988 = vmatprep.subr.bf16.mxu0 0
    %1989 = vmatpush1.bf16.msra.mxu0 %v1949
    %1990 = vmatprep.subr.bf16.mxu0 0
    %1991 = vmatpush1.bf16.msra.mxu0 %v1950
    %1992 = vmatprep.subr.bf16.mxu0 0
    %1993 = vmatpush1.bf16.msra.mxu0 %v1951
    %1994 = vmatprep.subr.bf16.mxu0 0
    %1995 = vmatpush1.bf16.msra.mxu0 %v1952
    %1996 = vmatprep.subr.bf16.mxu0 0
    %1997 = vmatpush1.bf16.msra.mxu0 %v1953
    %1998 = vmatprep.subr.bf16.mxu0 0
    %1999 = vmatpush1.bf16.msra.mxu0 %v1954
    %2000 = vmatprep.subr.bf16.mxu0 0
    %2001 = vmatpush1.bf16.msra.mxu0 %v1955
    %2002 = vmatprep.subr.bf16.mxu0 0
    %2003 = vmatpush1.bf16.msra.mxu0 %v1956
    %2004 = vmatprep.subr.bf16.mxu0 0
    %2005 = vmatpush1.bf16.msra.mxu0 %v1957
    %2006 = vmatprep.mubr.bf16.mxu0 %v1832
    %2007 = vmatmul.mubr.bf16.gmra.mrb[0].mxu0 %v1831
    %v2008 = vpop.f32.mrb[0].mxu0
    %v2009 = vadd.f32 %v1876, %v2008
    %v2010 = vpop.f32.mrb[0].mxu0
    %v2011 = vpop.f32.mrb[0].mxu0
    %v2012 = vadd.f32 %v1876, %v2011
    %v2013 = vpop.f32.mrb[0].mxu0
    %2014 = vmatprep.mubr.bf16.mxu0 %v1834
    %2015 = vmatmul.mubr.bf16.gmra.mrb[0].mxu0 %v1833
    %v2016 = vpop.f32.mrb[0].mxu0
    %v2017 = vadd.f32 %v1876, %v2016
    %v2018 = vpop.f32.mrb[0].mxu0
    %v2019 = vpop.f32.mrb[0].mxu0
    %v2020 = vadd.f32 %v1876, %v2019
    %v2021 = vpop.f32.mrb[0].mxu0
    %2022 = vmatprep.mubr.bf16.mxu0 %v1836
    %2023 = vmatmul.mubr.bf16.gmra.mrb[0].mxu0 %v1835
    %v2024 = vpop.f32.mrb[0].mxu0
    %v2025 = vadd.f32 %v1876, %v2024
    %v2026 = vpop.f32.mrb[0].mxu0
    %v2027 = vpop.f32.mrb[0].mxu0
    %v2028 = vadd.f32 %v1876, %v2027
    %v2029 = vpop.f32.mrb[0].mxu0
    %2030 = vmatprep.mubr.bf16.mxu0 %v1838
    %2031 = vmatmul.mubr.bf16.gmra.mrb[0].mxu0 %v1837
    %v2032 = vpop.f32.mrb[0].mxu0
    %v2033 = vadd.f32 %v1876, %v2032
    %v2034 = vpop.f32.mrb[0].mxu0
    %v2035 = vpop.f32.mrb[0].mxu0
    %v2036 = vadd.f32 %v1876, %v2035
    %v2037 = vpop.f32.mrb[0].mxu0
    %2038 = vdwg.mxu0
    %2039 = vst [vmem:[%s9] sm:$0xff] %v2009
    %2040 = vst [vmem:[%s9 + $0x8] sm:$0xff] %v2012
    %2041 = vst [vmem:[%s9 + $0x10] sm:$0xff] %v2017
    %2042 = vst [vmem:[%s9 + $0x18] sm:$0xff] %v2020
    %2043 = vst [vmem:[%s9 + $0x20] sm:$0xff] %v2025
    %2044 = vst [vmem:[%s9 + $0x28] sm:$0xff] %v2028
    %2045 = vst [vmem:[%s9 + $0x30] sm:$0xff] %v2033
    %2046 = vst [vmem:[%s9 + $0x38] sm:$0xff] %v2036
    // Predicated region
    $region46: #{adjustable_nn_forward.1} parent=1 // pred_check
      _
    $region47: #{adjustable_nn_forward.1} parent=1 // pred_check_branch
      %2048 = sbr.rel (0) target = $region49
    $region48: #{adjustable_nn_forward.1} parent=1 // pred_region
      _
    $region49: #{adjustable_nn_forward.1} parent=1 // pred_fallthru
      _
    // Predicated region
    $region50: #{adjustable_nn_forward.1} parent=1 // pred_check
      _
    $region51: #{adjustable_nn_forward.1} parent=1 // pred_check_branch
      %2050 = sbr.rel (0) target = $region53
    $region52: #{adjustable_nn_forward.1} parent=1 // pred_region
      _
    $region53: #{adjustable_nn_forward.1} parent=1 // pred_fallthru
      _
    %2051 = vsyncpa [#allocation3], 1
    %2052 = vsyncpa [#allocation5], 1

</llo_original>
